<compile_context>
chip_gen: v6e
topology: v6e:2x2x1
jax: 0.10.0
libtpu: 0.0.40
codegen_flags: <defaults>
</compile_context>

<pallas_src>
import jax
import jax.numpy as jnp
from jax.experimental import pallas as pl
from jax.experimental.pallas import tpu as pltpu

# ---------------- model hyper-params (small, consistent with the module) ----------------
INPUT_DIM = 8
EDGE_DIM = 4
LATENT_DIM = 4
COND_DIM = 4
OUTPUT_DIM = INPUT_DIM          # decoder output_dim=None -> reconstruct input_dim
HIDDEN_DIM = 32
HIDDEN_LAYERS = 2
NEG_SLOPE = 0.1
BN_EPS = 1e-5
OUT_PAD = 128                   # lane-dense packed output width

N_NODES = 16
N_EDGES = 32

# packed output lane layout: [ y | l | z | kld | zero-pad ]
Y_OFF = 0
L_OFF = OUTPUT_DIM
Z_OFF = L_OFF + 2 * LATENT_DIM
K_OFF = Z_OFF + LATENT_DIM


# ---------------- fused GraphCVAE forward kernel ----------------
def graph_cvae_kernel(x_ref, ea_ref, cond_ref, eps_ref, gidx_ref, dst_row_ref,
                      # encoder params
                      we_in_ref, be_in_ref, we_ed_ref, be_ed_ref,
                      we_full_ref, be_full_ref, bne_g_ref, bne_b_ref,
                      we_out_ref, be_out_ref,
                      # decoder params (input weight pre-split into z / condition parts)
                      wd_in_z_ref, wd_in_c_ref, bd_in_ref, wd_ed_ref, bd_ed_ref,
                      wd_full_ref, bd_full_ref, bnd_g_ref, bnd_b_ref,
                      wd_out_ref, bd_out_ref,
                      out_ref, z_scratch):
    f32 = jnp.float32
    H = HIDDEN_DIM

    def leaky(v):
        return jnp.where(v > 0, v, NEG_SLOPE * v)

    def sigmoid(v):                       # EUP tanh instead of VPU divide
        return 0.5 * (jnp.tanh(0.5 * v) + 1.0)

    def softplus(v):                      # numerically stable
        return jnp.maximum(v, 0.0) + jnp.log1p(jnp.exp(-jnp.abs(v)))

    n_nodes = x_ref.shape[0]
    n_edges = ea_ref.shape[0]

    # Edge-index one-hot operators, built ONCE and shared by encoder and decoder.
    # rows [0,E) select x_i (dst / target), rows [E,2E) select x_j (src / source).
    gh_oh = (jax.lax.broadcasted_iota(jnp.int32, (2 * n_edges, n_nodes), 1)
             == gidx_ref[...]).astype(f32)                        # (2E, N) gather
    dst_oh_t = (jax.lax.broadcasted_iota(jnp.int32, (n_nodes, n_edges), 0)
                == dst_row_ref[...]).astype(f32)                  # (N, E) scatter-add

    def graph_layers(h, e, w_full_ref, b_full_ref, bn_g_ref, bn_b_ref):
        # edge slice of z never changes across layers: write it to scratch once per block
        z_scratch[:, 2 * H:3 * H] = e
        for layer in range(HIDDEN_LAYERS):
            # fused endpoint gather: one (2E,N)x(N,H) matmul gives [x_i ; x_j]
            xij = jnp.dot(gh_oh, h, preferred_element_type=f32)   # (2E, H)
            z_scratch[:, 0:H] = xij[0:n_edges, :]                 # x_i (dst feats)
            z_scratch[:, H:2 * H] = xij[n_edges:2 * n_edges, :]   # x_j (src feats)
            # fused gate/score projection: (E,3H) x (3H,2H) = [gate_logits | score_logits]
            zz = (jnp.dot(z_scratch[...], w_full_ref[layer],
                          preferred_element_type=f32) + b_full_ref[layer])
            m = sigmoid(zz[:, 0:H]) * softplus(zz[:, H:2 * H])    # (E, H) messages
            # scatter-add over target nodes + residual + eval-mode BatchNorm affine
            agg = jnp.dot(dst_oh_t, m, preferred_element_type=f32)
            h = (h + agg) * bn_g_ref[layer] + bn_b_ref[layer]
            # Dropout in eval mode == identity.
        return h

    # -------- encoder block --------
    h = leaky(jnp.dot(x_ref[...], we_in_ref[...], preferred_element_type=f32)
              + be_in_ref[...])                                   # (N, H)
    e = leaky(jnp.dot(ea_ref[...], we_ed_ref[...], preferred_element_type=f32)
              + be_ed_ref[...])                                   # (E, H)
    h = graph_layers(h, e, we_full_ref, be_full_ref, bne_g_ref, bne_b_ref)
    l = (jnp.dot(h, we_out_ref[...], preferred_element_type=f32)
         + be_out_ref[...])                                       # (N, 2*LATENT)

    # -------- reparameterization (deterministic eps supplied as input) --------
    mu = l[:, 0:LATENT_DIM]
    log_var = l[:, LATENT_DIM:2 * LATENT_DIM]
    z = mu + eps_ref[...] * jnp.exp(0.5 * log_var)
    kld = -0.5 * jnp.sum(1.0 + log_var - mu * mu - jnp.exp(log_var),
                         axis=-1, keepdims=True)                  # (N, 1)

    # -------- decoder block; x_dec = [z ; condition] folded into split matmuls --------
    hd = leaky(jnp.dot(z, wd_in_z_ref[...], preferred_element_type=f32)
               + jnp.dot(cond_ref[...], wd_in_c_ref[...], preferred_element_type=f32)
               + bd_in_ref[...])                                  # (N, H)
    ed = leaky(jnp.dot(ea_ref[...], wd_ed_ref[...], preferred_element_type=f32)
               + bd_ed_ref[...])                                  # (E, H)
    hd = graph_layers(hd, ed, wd_full_ref, bd_full_ref, bnd_g_ref, bnd_b_ref)

    # -------- packed, lane-dense output: [ y | l | z | kld | 0-pad ] --------
    # wd_out is zero-padded to OUT_PAD lanes -> full dense (N,128) store first,
    # then small masked lane stores for the extra views.
    out_ref[...] = (jnp.dot(hd, wd_out_ref[...], preferred_element_type=f32)
                    + bd_out_ref[...])
    out_ref[:, L_OFF:L_OFF + 2 * LATENT_DIM] = l
    out_ref[:, Z_OFF:Z_OFF + LATENT_DIM] = z
    out_ref[:, K_OFF:K_OFF + 1] = kld


# ---------------- wrapper ----------------
def graph_cvae_forward(x, edge_index, edge_attr, condition, eps, enc_params, dec_params):
    n_nodes = x.shape[0]
    n_edges = edge_attr.shape[0]
    src = edge_index[0].astype(jnp.int32)
    dst = edge_index[1].astype(jnp.int32)
    gidx = jnp.concatenate([dst, src], axis=0).reshape(2 * n_edges, 1)  # [dst ; src]
    dst_row = dst.reshape(1, n_edges)

    # split decoder input weight (avoids in-kernel lane concat of [z, condition])
    wd_in = dec_params["w_in"]
    wd_in_z = wd_in[:LATENT_DIM, :]
    wd_in_c = wd_in[LATENT_DIM:, :]
    # pad decoder output projection to OUT_PAD lanes (lane-dense kernel store)
    wd_out = dec_params["w_out"]
    bd_out = dec_params["b_out"]
    wd_out_p = jnp.zeros((HIDDEN_DIM, OUT_PAD), jnp.float32).at[:, :wd_out.shape[1]].set(wd_out)
    bd_out_p = jnp.zeros((1, OUT_PAD), jnp.float32).at[:, :bd_out.shape[1]].set(bd_out)

    args = (x, edge_attr, condition, eps, gidx, dst_row,
            enc_params["w_in"], enc_params["b_in"],
            enc_params["w_ed"], enc_params["b_ed"],
            enc_params["w_full"], enc_params["b_full"],
            enc_params["bn_g"], enc_params["bn_b"],
            enc_params["w_out"], enc_params["b_out"],
            wd_in_z, wd_in_c, dec_params["b_in"],
            dec_params["w_ed"], dec_params["b_ed"],
            dec_params["w_full"], dec_params["b_full"],
            dec_params["bn_g"], dec_params["bn_b"],
            wd_out_p, bd_out_p)

    H, L = HIDDEN_DIM, HIDDEN_LAYERS
    per_block_layer = (2 * (2 * n_edges) * n_nodes * H       # fused gather
                       + 2 * n_edges * (3 * H) * (2 * H)     # fused projection
                       + 2 * n_nodes * n_edges * H)          # scatter
    flops = int(
        2 * (2 * n_nodes * INPUT_DIM * H + 2 * n_edges * EDGE_DIM * H)   # embeds (both blocks)
        + 2 * L * per_block_layer
        + 2 * n_nodes * H * (2 * LATENT_DIM)                 # encoder out proj
        + 2 * n_nodes * H * OUT_PAD)                         # decoder out proj (padded)
    transcendentals = int(2 * L * n_edges * H * 3 + 3 * n_nodes * LATENT_DIM)
    bytes_accessed = int(sum(a.size * a.dtype.itemsize for a in args)
                         + 4 * n_nodes * OUT_PAD)

    vmem = pl.BlockSpec(memory_space=pltpu.MemorySpace.VMEM)
    packed = pl.pallas_call(
        graph_cvae_kernel,
        out_shape=jax.ShapeDtypeStruct((n_nodes, OUT_PAD), jnp.float32),
        in_specs=[vmem] * len(args),
        out_specs=vmem,
        scratch_shapes=[pltpu.VMEM((n_edges, 3 * HIDDEN_DIM), jnp.float32)],
        compiler_params=pltpu.CompilerParams(vmem_limit_bytes=8 * 1024 * 1024),
        cost_estimate=pl.CostEstimate(flops=flops,
                                      transcendentals=transcendentals,
                                      bytes_accessed=bytes_accessed),
    )(*args)

    y = packed[:, Y_OFF:Y_OFF + OUTPUT_DIM]
    l = packed[:, L_OFF:L_OFF + 2 * LATENT_DIM]
    z = packed[:, Z_OFF:Z_OFF + LATENT_DIM]
    kld = packed[:, K_OFF:K_OFF + 1]
    return y, kld, l, z


# ---------------- deterministic parameter setup (glue) ----------------
def init_gcb_params(key, in_dim, edge_dim, out_dim):
    ks = jax.random.split(key, 3 + 2 * HIDDEN_LAYERS)

    def lin(k, fan_in, fan_out):
        bound = 1.0 / (fan_in ** 0.5)
        kw, kb = jax.random.split(k)
        w = jax.random.uniform(kw, (fan_in, fan_out), jnp.float32, -bound, bound)
        b = jax.random.uniform(kb, (1, fan_out), jnp.float32, -bound, bound)
        return w, b

    # BatchNorm1d(eval): gamma=1, beta=0, running_mean=0, running_var=1 -> scale only
    bn_scale = 1.0 / ((1.0 + BN_EPS) ** 0.5)

    w_in, b_in = lin(ks[0], in_dim, HIDDEN_DIM)
    w_ed, b_ed = lin(ks[1], edge_dim, HIDDEN_DIM)
    w_in, b_in = w_in * bn_scale, b_in * bn_scale      # fold embed BN
    w_ed, b_ed = w_ed * bn_scale, b_ed * bn_scale

    w_full, b_full = [], []
    for li in range(HIDDEN_LAYERS):
        wf, bf = lin(ks[2 + 2 * li], 3 * HIDDEN_DIM, HIDDEN_DIM)   # gate (lin_f)
        ws, bs = lin(ks[3 + 2 * li], 3 * HIDDEN_DIM, HIDDEN_DIM)   # score (lin_s)
        w_full.append(jnp.concatenate([wf, ws], axis=-1))          # (3H, 2H)
        b_full.append(jnp.concatenate([bf, bs], axis=-1))          # (1, 2H)

    # graph-layer BatchNorm1d (eval, default stats) folded to per-layer affine
    bn_g = jnp.full((HIDDEN_LAYERS, 1, HIDDEN_DIM), bn_scale, jnp.float32)
    bn_b = jnp.zeros((HIDDEN_LAYERS, 1, HIDDEN_DIM), jnp.float32)

    w_out, b_out = lin(ks[2 + 2 * HIDDEN_LAYERS], HIDDEN_DIM, out_dim)

    return dict(w_in=w_in, b_in=b_in, w_ed=w_ed, b_ed=b_ed,
                w_full=jnp.stack(w_full), b_full=jnp.stack(b_full),
                bn_g=bn_g, bn_b=bn_b,
                w_out=w_out, b_out=b_out)


# ---------------- pure-JAX reference (correctness check) ----------------
def gcb_reference(x, edge_index, edge_attr, p):
    def leaky(v):
        return jnp.where(v > 0, v, NEG_SLOPE * v)

    H = HIDDEN_DIM
    h = leaky(x @ p["w_in"] + p["b_in"])
    e = leaky(edge_attr @ p["w_ed"] + p["b_ed"])
    src, dst = edge_index[0], edge_index[1]
    for li in range(HIDDEN_LAYERS):
        x_j = h[src]
        x_i = h[dst]
        z = jnp.concatenate([x_i, x_j, e], axis=-1)
        zz = z @ p["w_full"][li] + p["b_full"][li]
        m = jax.nn.sigmoid(zz[:, :H]) * jax.nn.softplus(zz[:, H:])
        agg = jax.ops.segment_sum(m, dst, num_segments=h.shape[0])
        h = (h + agg) * p["bn_g"][li] + p["bn_b"][li]
    return h @ p["w_out"] + p["b_out"]


def graph_cvae_reference(x, edge_index, edge_attr, condition, eps, enc_p, dec_p):
    l = gcb_reference(x, edge_index, edge_attr, enc_p)
    mu, log_var = jnp.split(l, 2, axis=-1)
    z = mu + eps * jnp.exp(0.5 * log_var)
    kld = -0.5 * jnp.sum(1.0 + log_var - mu ** 2 - jnp.exp(log_var),
                         axis=-1, keepdims=True)
    x_dec = jnp.concatenate([z, condition], axis=-1)
    y = gcb_reference(x_dec, edge_index, edge_attr, dec_p)
    return y, kld, l, z


if __name__ == "__main__":
    key = jax.random.PRNGKey(0)
    k_x, k_e, k_idx, k_c, k_eps, k_enc, k_dec = jax.random.split(key, 7)

    x = jax.random.normal(k_x, (N_NODES, INPUT_DIM), jnp.float32)
    edge_attr = jax.random.normal(k_e, (N_EDGES, EDGE_DIM), jnp.float32)
    edge_index = jax.random.randint(k_idx, (2, N_EDGES), 0, N_NODES, jnp.int32)
    condition = jax.random.normal(k_c, (N_NODES, COND_DIM), jnp.float32)
    eps = jax.random.normal(k_eps, (N_NODES, LATENT_DIM), jnp.float32)

    enc_params = init_gcb_params(k_enc, INPUT_DIM, EDGE_DIM, 2 * LATENT_DIM)
    dec_params = init_gcb_params(k_dec, LATENT_DIM + COND_DIM, EDGE_DIM, OUTPUT_DIM)

    y, kld, l, z = graph_cvae_forward(x, edge_index, edge_attr, condition, eps,
                                      enc_params, dec_params)
    (y, kld, l, z) = jax.block_until_ready((y, kld, l, z))

    y_r, kld_r, l_r, z_r = graph_cvae_reference(x, edge_index, edge_attr, condition, eps,
                                                enc_params, dec_params)
    for got, ref, name in ((l, l_r, "l"), (z, z_r, "z"), (kld, kld_r, "kld"), (y, y_r, "y")):
        assert got.shape == ref.shape, (name, got.shape, ref.shape)
        assert jnp.allclose(got, ref, atol=1e-4, rtol=1e-4), (
            name, float(jnp.max(jnp.abs(got - ref))))

    print("KERNEL_OK")
</pallas_src>

<mosaic_0001>
module attributes {stable_mosaic.version = 11 : i64} {
  func.func @graph_cvae_kernel(%arg0: memref<16x8xf32, #tpu.memory_space<vmem>>, %arg1: memref<32x4xf32, #tpu.memory_space<vmem>>, %arg2: memref<16x4xf32, #tpu.memory_space<vmem>>, %arg3: memref<16x4xf32, #tpu.memory_space<vmem>>, %arg4: memref<64x1xi32, #tpu.memory_space<vmem>>, %arg5: memref<1x32xi32, #tpu.memory_space<vmem>>, %arg6: memref<8x32xf32, #tpu.memory_space<vmem>>, %arg7: memref<1x32xf32, #tpu.memory_space<vmem>>, %arg8: memref<4x32xf32, #tpu.memory_space<vmem>>, %arg9: memref<1x32xf32, #tpu.memory_space<vmem>>, %arg10: memref<2x96x64xf32, #tpu.memory_space<vmem>>, %arg11: memref<2x1x64xf32, #tpu.memory_space<vmem>>, %arg12: memref<2x1x32xf32, #tpu.memory_space<vmem>>, %arg13: memref<2x1x32xf32, #tpu.memory_space<vmem>>, %arg14: memref<32x8xf32, #tpu.memory_space<vmem>>, %arg15: memref<1x8xf32, #tpu.memory_space<vmem>>, %arg16: memref<4x32xf32, #tpu.memory_space<vmem>>, %arg17: memref<4x32xf32, #tpu.memory_space<vmem>>, %arg18: memref<1x32xf32, #tpu.memory_space<vmem>>, %arg19: memref<4x32xf32, #tpu.memory_space<vmem>>, %arg20: memref<1x32xf32, #tpu.memory_space<vmem>>, %arg21: memref<2x96x64xf32, #tpu.memory_space<vmem>>, %arg22: memref<2x1x64xf32, #tpu.memory_space<vmem>>, %arg23: memref<2x1x32xf32, #tpu.memory_space<vmem>>, %arg24: memref<2x1x32xf32, #tpu.memory_space<vmem>>, %arg25: memref<32x128xf32, #tpu.memory_space<vmem>>, %arg26: memref<1x128xf32, #tpu.memory_space<vmem>>, %arg27: memref<16x128xf32, #tpu.memory_space<vmem>>, %arg28: memref<32x96xf32, #tpu.memory_space<vmem>>) attributes {dimension_semantics = [], scalar_prefetch = 0 : i64, scratch_operands = 1 : i64, tpu.core_type = #tpu.core_type<tc>} {
    %0 = tpu.iota {dimensions = array<i32: 1>} : vector<64x16xi32>
    %c0 = arith.constant 0 : index
    %c0_0 = arith.constant 0 : index
    %1 = vector.load %arg4[%c0, %c0_0] : memref<64x1xi32, #tpu.memory_space<vmem>>, vector<64x1xi32>
    %2 = vector.broadcast %1 : vector<64x1xi32> to vector<64x16xi32>
    %3 = arith.cmpi eq, %0, %2 : vector<64x16xi32>
    %4 = arith.extui %3 : vector<64x16xi1> to vector<64x16xi32>
    %5 = arith.sitofp %4 : vector<64x16xi32> to vector<64x16xf32>
    %6 = tpu.iota {dimensions = array<i32: 0>} : vector<16x32xi32>
    %c0_1 = arith.constant 0 : index
    %c0_2 = arith.constant 0 : index
    %7 = vector.load %arg5[%c0_1, %c0_2] : memref<1x32xi32, #tpu.memory_space<vmem>>, vector<1x32xi32>
    %8 = vector.broadcast %7 : vector<1x32xi32> to vector<16x32xi32>
    %9 = arith.cmpi eq, %6, %8 : vector<16x32xi32>
    %10 = arith.extui %9 : vector<16x32xi1> to vector<16x32xi32>
    %11 = arith.sitofp %10 : vector<16x32xi32> to vector<16x32xf32>
    %c0_3 = arith.constant 0 : index
    %c0_4 = arith.constant 0 : index
    %12 = vector.load %arg0[%c0_3, %c0_4] : memref<16x8xf32, #tpu.memory_space<vmem>>, vector<16x8xf32>
    %c0_5 = arith.constant 0 : index
    %c0_6 = arith.constant 0 : index
    %13 = vector.load %arg6[%c0_5, %c0_6] : memref<8x32xf32, #tpu.memory_space<vmem>>, vector<8x32xf32>
    %cst = arith.constant dense<0.000000e+00> : vector<16x32xf32>
    %14 = tpu.matmul %12, %13, %cst {dimension_numbers = #tpu.dot_dimension_numbers<[1], [0], [0], [1], [0, 0, 1, 1], [], []>} : vector<16x8xf32>, vector<8x32xf32>, vector<16x32xf32> -> vector<16x32xf32>
    %c0_7 = arith.constant 0 : index
    %c0_8 = arith.constant 0 : index
    %15 = vector.load %arg7[%c0_7, %c0_8] : memref<1x32xf32, #tpu.memory_space<vmem>>, vector<1x32xf32>
    %16 = vector.broadcast %15 : vector<1x32xf32> to vector<16x32xf32>
    %17 = arith.addf %14, %16 : vector<16x32xf32>
    %cst_9 = arith.constant 0.000000e+00 : f32
    %18 = vector.broadcast %cst_9 : f32 to vector<16x32xf32>
    %19 = arith.cmpf ogt, %17, %18 : vector<16x32xf32>
    %cst_10 = arith.constant 1.000000e-01 : f32
    %20 = vector.broadcast %cst_10 : f32 to vector<16x32xf32>
    %21 = arith.mulf %20, %17 : vector<16x32xf32>
    %22 = arith.select %19, %17, %21 : vector<16x32xi1>, vector<16x32xf32>
    %c0_11 = arith.constant 0 : index
    %c0_12 = arith.constant 0 : index
    %23 = vector.load %arg1[%c0_11, %c0_12] : memref<32x4xf32, #tpu.memory_space<vmem>>, vector<32x4xf32>
    %c0_13 = arith.constant 0 : index
    %c0_14 = arith.constant 0 : index
    %24 = vector.load %arg8[%c0_13, %c0_14] : memref<4x32xf32, #tpu.memory_space<vmem>>, vector<4x32xf32>
    %cst_15 = arith.constant dense<0.000000e+00> : vector<32x32xf32>
    %25 = tpu.matmul %23, %24, %cst_15 {dimension_numbers = #tpu.dot_dimension_numbers<[1], [0], [0], [1], [0, 0, 1, 1], [], []>} : vector<32x4xf32>, vector<4x32xf32>, vector<32x32xf32> -> vector<32x32xf32>
    %c0_16 = arith.constant 0 : index
    %c0_17 = arith.constant 0 : index
    %26 = vector.load %arg9[%c0_16, %c0_17] : memref<1x32xf32, #tpu.memory_space<vmem>>, vector<1x32xf32>
    %27 = vector.broadcast %26 : vector<1x32xf32> to vector<32x32xf32>
    %28 = arith.addf %25, %27 : vector<32x32xf32>
    %cst_18 = arith.constant 0.000000e+00 : f32
    %29 = vector.broadcast %cst_18 : f32 to vector<32x32xf32>
    %30 = arith.cmpf ogt, %28, %29 : vector<32x32xf32>
    %cst_19 = arith.constant 1.000000e-01 : f32
    %31 = vector.broadcast %cst_19 : f32 to vector<32x32xf32>
    %32 = arith.mulf %31, %28 : vector<32x32xf32>
    %33 = arith.select %30, %28, %32 : vector<32x32xi1>, vector<32x32xf32>
    %c0_20 = arith.constant 0 : index
    %c64 = arith.constant 64 : index
    %34 = vector.load %arg28[%c0_20, %c64] : memref<32x96xf32, #tpu.memory_space<vmem>>, vector<32x32xf32>
    tpu.vector_store %arg28[%c0_20, %c64], %33 {strides = array<i32>} : memref<32x96xf32, #tpu.memory_space<vmem>>, vector<32x32xf32>,
    %cst_21 = arith.constant dense<0.000000e+00> : vector<64x32xf32>
    %35 = tpu.matmul %5, %22, %cst_21 {dimension_numbers = #tpu.dot_dimension_numbers<[1], [0], [0], [1], [0, 0, 1, 1], [], []>} : vector<64x16xf32>, vector<16x32xf32>, vector<64x32xf32> -> vector<64x32xf32>
    %36 = vector.extract_strided_slice %35 {offsets = [0, 0], sizes = [32, 32], strides = [1, 1]} : vector<64x32xf32> to vector<32x32xf32>
    %c0_22 = arith.constant 0 : index
    %c0_23 = arith.constant 0 : index
    %37 = vector.load %arg28[%c0_22, %c0_23] : memref<32x96xf32, #tpu.memory_space<vmem>>, vector<32x32xf32>
    tpu.vector_store %arg28[%c0_22, %c0_23], %36 {strides = array<i32>} : memref<32x96xf32, #tpu.memory_space<vmem>>, vector<32x32xf32>,
    %38 = vector.extract_strided_slice %35 {offsets = [32, 0], sizes = [32, 32], strides = [1, 1]} : vector<64x32xf32> to vector<32x32xf32>
    %c0_24 = arith.constant 0 : index
    %c32 = arith.constant 32 : index
    %39 = vector.load %arg28[%c0_24, %c32] : memref<32x96xf32, #tpu.memory_space<vmem>>, vector<32x32xf32>
    tpu.vector_store %arg28[%c0_24, %c32], %38 {strides = array<i32>} : memref<32x96xf32, #tpu.memory_space<vmem>>, vector<32x32xf32>,
    %c0_25 = arith.constant 0 : index
    %c0_26 = arith.constant 0 : index
    %40 = vector.load %arg28[%c0_25, %c0_26] : memref<32x96xf32, #tpu.memory_space<vmem>>, vector<32x96xf32>
    %c0_27 = arith.constant 0 : index
    %c0_28 = arith.constant 0 : index
    %c0_29 = arith.constant 0 : index
    %41 = vector.load %arg10[%c0_27, %c0_28, %c0_29] : memref<2x96x64xf32, #tpu.memory_space<vmem>>, vector<1x96x64xf32>
    %42 = vector.shape_cast %41 : vector<1x96x64xf32> to vector<96x64xf32>
    %cst_30 = arith.constant dense<0.000000e+00> : vector<32x64xf32>
    %43 = tpu.matmul %40, %42, %cst_30 {dimension_numbers = #tpu.dot_dimension_numbers<[1], [0], [0], [1], [0, 0, 1, 1], [], []>} : vector<32x96xf32>, vector<96x64xf32>, vector<32x64xf32> -> vector<32x64xf32>
    %c0_31 = arith.constant 0 : index
    %c0_32 = arith.constant 0 : index
    %c0_33 = arith.constant 0 : index
    %44 = vector.load %arg11[%c0_31, %c0_32, %c0_33] : memref<2x1x64xf32, #tpu.memory_space<vmem>>, vector<1x1x64xf32>
    %45 = vector.shape_cast %44 : vector<1x1x64xf32> to vector<1x64xf32>
    %46 = vector.broadcast %45 : vector<1x64xf32> to vector<32x64xf32>
    %47 = arith.addf %43, %46 : vector<32x64xf32>
    %48 = vector.extract_strided_slice %47 {offsets = [0, 0], sizes = [32, 32], strides = [1, 1]} : vector<32x64xf32> to vector<32x32xf32>
    %cst_34 = arith.constant 5.000000e-01 : f32
    %49 = vector.broadcast %cst_34 : f32 to vector<32x32xf32>
    %50 = arith.mulf %49, %48 : vector<32x32xf32>
    %51 = math.tanh %50 : vector<32x32xf32>
    %cst_35 = arith.constant 1.000000e+00 : f32
    %52 = vector.broadcast %cst_35 : f32 to vector<32x32xf32>
    %53 = arith.addf %51, %52 : vector<32x32xf32>
    %cst_36 = arith.constant 5.000000e-01 : f32
    %54 = vector.broadcast %cst_36 : f32 to vector<32x32xf32>
    %55 = arith.mulf %54, %53 : vector<32x32xf32>
    %56 = vector.extract_strided_slice %47 {offsets = [0, 32], sizes = [32, 32], strides = [1, 1]} : vector<32x64xf32> to vector<32x32xf32>
    %cst_37 = arith.constant 0.000000e+00 : f32
    %57 = vector.broadcast %cst_37 : f32 to vector<32x32xf32>
    %58 = arith.maximumf %56, %57 : vector<32x32xf32>
    %59 = math.absf %56 : vector<32x32xf32>
    %cst_38 = arith.constant 0.000000e+00 : f32
    %60 = vector.broadcast %cst_38 : f32 to vector<32x32xf32>
    %61 = arith.subf %60, %59 : vector<32x32xf32>
    %62 = math.exp %61 : vector<32x32xf32>
    %63 = math.log1p %62 : vector<32x32xf32>
    %64 = arith.addf %58, %63 : vector<32x32xf32>
    %65 = arith.mulf %55, %64 : vector<32x32xf32>
    %cst_39 = arith.constant dense<0.000000e+00> : vector<16x32xf32>
    %66 = tpu.matmul %11, %65, %cst_39 {dimension_numbers = #tpu.dot_dimension_numbers<[1], [0], [0], [1], [0, 0, 1, 1], [], []>} : vector<16x32xf32>, vector<32x32xf32>, vector<16x32xf32> -> vector<16x32xf32>
    %67 = arith.addf %22, %66 : vector<16x32xf32>
    %c0_40 = arith.constant 0 : index
    %c0_41 = arith.constant 0 : index
    %c0_42 = arith.constant 0 : index
    %68 = vector.load %arg12[%c0_40, %c0_41, %c0_42] : memref<2x1x32xf32, #tpu.memory_space<vmem>>, vector<1x1x32xf32>
    %69 = vector.shape_cast %68 : vector<1x1x32xf32> to vector<1x32xf32>
    %70 = vector.broadcast %69 : vector<1x32xf32> to vector<16x32xf32>
    %71 = arith.mulf %67, %70 : vector<16x32xf32>
    %c0_43 = arith.constant 0 : index
    %c0_44 = arith.constant 0 : index
    %c0_45 = arith.constant 0 : index
    %72 = vector.load %arg13[%c0_43, %c0_44, %c0_45] : memref<2x1x32xf32, #tpu.memory_space<vmem>>, vector<1x1x32xf32>
    %73 = vector.shape_cast %72 : vector<1x1x32xf32> to vector<1x32xf32>
    %74 = vector.broadcast %73 : vector<1x32xf32> to vector<16x32xf32>
    %75 = arith.addf %71, %74 : vector<16x32xf32>
    %cst_46 = arith.constant dense<0.000000e+00> : vector<64x32xf32>
    %76 = tpu.matmul %5, %75, %cst_46 {dimension_numbers = #tpu.dot_dimension_numbers<[1], [0], [0], [1], [0, 0, 1, 1], [], []>} : vector<64x16xf32>, vector<16x32xf32>, vector<64x32xf32> -> vector<64x32xf32>
    %77 = vector.extract_strided_slice %76 {offsets = [0, 0], sizes = [32, 32], strides = [1, 1]} : vector<64x32xf32> to vector<32x32xf32>
    %c0_47 = arith.constant 0 : index
    %c0_48 = arith.constant 0 : index
    %78 = vector.load %arg28[%c0_47, %c0_48] : memref<32x96xf32, #tpu.memory_space<vmem>>, vector<32x32xf32>
    tpu.vector_store %arg28[%c0_47, %c0_48], %77 {strides = array<i32>} : memref<32x96xf32, #tpu.memory_space<vmem>>, vector<32x32xf32>,
    %79 = vector.extract_strided_slice %76 {offsets = [32, 0], sizes = [32, 32], strides = [1, 1]} : vector<64x32xf32> to vector<32x32xf32>
    %c0_49 = arith.constant 0 : index
    %c32_50 = arith.constant 32 : index
    %80 = vector.load %arg28[%c0_49, %c32_50] : memref<32x96xf32, #tpu.memory_space<vmem>>, vector<32x32xf32>
    tpu.vector_store %arg28[%c0_49, %c32_50], %79 {strides = array<i32>} : memref<32x96xf32, #tpu.memory_space<vmem>>, vector<32x32xf32>,
    %c0_51 = arith.constant 0 : index
    %c0_52 = arith.constant 0 : index
    %81 = vector.load %arg28[%c0_51, %c0_52] : memref<32x96xf32, #tpu.memory_space<vmem>>, vector<32x96xf32>
    %c1 = arith.constant 1 : index
    %c0_53 = arith.constant 0 : index
    %c0_54 = arith.constant 0 : index
    %82 = vector.load %arg10[%c1, %c0_53, %c0_54] : memref<2x96x64xf32, #tpu.memory_space<vmem>>, vector<1x96x64xf32>
    %83 = vector.shape_cast %82 : vector<1x96x64xf32> to vector<96x64xf32>
    %cst_55 = arith.constant dense<0.000000e+00> : vector<32x64xf32>
    %84 = tpu.matmul %81, %83, %cst_55 {dimension_numbers = #tpu.dot_dimension_numbers<[1], [0], [0], [1], [0, 0, 1, 1], [], []>} : vector<32x96xf32>, vector<96x64xf32>, vector<32x64xf32> -> vector<32x64xf32>
    %c1_56 = arith.constant 1 : index
    %c0_57 = arith.constant 0 : index
    %c0_58 = arith.constant 0 : index
    %85 = vector.load %arg11[%c1_56, %c0_57, %c0_58] : memref<2x1x64xf32, #tpu.memory_space<vmem>>, vector<1x1x64xf32>
    %86 = vector.shape_cast %85 : vector<1x1x64xf32> to vector<1x64xf32>
    %87 = vector.broadcast %86 : vector<1x64xf32> to vector<32x64xf32>
    %88 = arith.addf %84, %87 : vector<32x64xf32>
    %89 = vector.extract_strided_slice %88 {offsets = [0, 0], sizes = [32, 32], strides = [1, 1]} : vector<32x64xf32> to vector<32x32xf32>
    %cst_59 = arith.constant 5.000000e-01 : f32
    %90 = vector.broadcast %cst_59 : f32 to vector<32x32xf32>
    %91 = arith.mulf %90, %89 : vector<32x32xf32>
    %92 = math.tanh %91 : vector<32x32xf32>
    %cst_60 = arith.constant 1.000000e+00 : f32
    %93 = vector.broadcast %cst_60 : f32 to vector<32x32xf32>
    %94 = arith.addf %92, %93 : vector<32x32xf32>
    %cst_61 = arith.constant 5.000000e-01 : f32
    %95 = vector.broadcast %cst_61 : f32 to vector<32x32xf32>
    %96 = arith.mulf %95, %94 : vector<32x32xf32>
    %97 = vector.extract_strided_slice %88 {offsets = [0, 32], sizes = [32, 32], strides = [1, 1]} : vector<32x64xf32> to vector<32x32xf32>
    %cst_62 = arith.constant 0.000000e+00 : f32
    %98 = vector.broadcast %cst_62 : f32 to vector<32x32xf32>
    %99 = arith.maximumf %97, %98 : vector<32x32xf32>
    %100 = math.absf %97 : vector<32x32xf32>
    %cst_63 = arith.constant 0.000000e+00 : f32
    %101 = vector.broadcast %cst_63 : f32 to vector<32x32xf32>
    %102 = arith.subf %101, %100 : vector<32x32xf32>
    %103 = math.exp %102 : vector<32x32xf32>
    %104 = math.log1p %103 : vector<32x32xf32>
    %105 = arith.addf %99, %104 : vector<32x32xf32>
    %106 = arith.mulf %96, %105 : vector<32x32xf32>
    %cst_64 = arith.constant dense<0.000000e+00> : vector<16x32xf32>
    %107 = tpu.matmul %11, %106, %cst_64 {dimension_numbers = #tpu.dot_dimension_numbers<[1], [0], [0], [1], [0, 0, 1, 1], [], []>} : vector<16x32xf32>, vector<32x32xf32>, vector<16x32xf32> -> vector<16x32xf32>
    %108 = arith.addf %75, %107 : vector<16x32xf32>
    %c1_65 = arith.constant 1 : index
    %c0_66 = arith.constant 0 : index
    %c0_67 = arith.constant 0 : index
    %109 = vector.load %arg12[%c1_65, %c0_66, %c0_67] : memref<2x1x32xf32, #tpu.memory_space<vmem>>, vector<1x1x32xf32>
    %110 = vector.shape_cast %109 : vector<1x1x32xf32> to vector<1x32xf32>
    %111 = vector.broadcast %110 : vector<1x32xf32> to vector<16x32xf32>
    %112 = arith.mulf %108, %111 : vector<16x32xf32>
    %c1_68 = arith.constant 1 : index
    %c0_69 = arith.constant 0 : index
    %c0_70 = arith.constant 0 : index
    %113 = vector.load %arg13[%c1_68, %c0_69, %c0_70] : memref<2x1x32xf32, #tpu.memory_space<vmem>>, vector<1x1x32xf32>
    %114 = vector.shape_cast %113 : vector<1x1x32xf32> to vector<1x32xf32>
    %115 = vector.broadcast %114 : vector<1x32xf32> to vector<16x32xf32>
    %116 = arith.addf %112, %115 : vector<16x32xf32>
    %c0_71 = arith.constant 0 : index
    %c0_72 = arith.constant 0 : index
    %117 = vector.load %arg14[%c0_71, %c0_72] : memref<32x8xf32, #tpu.memory_space<vmem>>, vector<32x8xf32>
    %cst_73 = arith.constant dense<0.000000e+00> : vector<16x8xf32>
    %118 = tpu.matmul %116, %117, %cst_73 {dimension_numbers = #tpu.dot_dimension_numbers<[1], [0], [0], [1], [0, 0, 1, 1], [], []>} : vector<16x32xf32>, vector<32x8xf32>, vector<16x8xf32> -> vector<16x8xf32>
    %c0_74 = arith.constant 0 : index
    %c0_75 = arith.constant 0 : index
    %119 = vector.load %arg15[%c0_74, %c0_75] : memref<1x8xf32, #tpu.memory_space<vmem>>, vector<1x8xf32>
    %120 = vector.broadcast %119 : vector<1x8xf32> to vector<16x8xf32>
    %121 = arith.addf %118, %120 : vector<16x8xf32>
    %122 = vector.extract_strided_slice %121 {offsets = [0, 0], sizes = [16, 4], strides = [1, 1]} : vector<16x8xf32> to vector<16x4xf32>
    %123 = vector.extract_strided_slice %121 {offsets = [0, 4], sizes = [16, 4], strides = [1, 1]} : vector<16x8xf32> to vector<16x4xf32>
    %c0_76 = arith.constant 0 : index
    %c0_77 = arith.constant 0 : index
    %124 = vector.load %arg3[%c0_76, %c0_77] : memref<16x4xf32, #tpu.memory_space<vmem>>, vector<16x4xf32>
    %cst_78 = arith.constant 5.000000e-01 : f32
    %125 = vector.broadcast %cst_78 : f32 to vector<16x4xf32>
    %126 = arith.mulf %125, %123 : vector<16x4xf32>
    %127 = math.exp %126 : vector<16x4xf32>
    %128 = arith.mulf %124, %127 : vector<16x4xf32>
    %129 = arith.addf %122, %128 : vector<16x4xf32>
    %cst_79 = arith.constant 1.000000e+00 : f32
    %130 = vector.broadcast %cst_79 : f32 to vector<16x4xf32>
    %131 = arith.addf %130, %123 : vector<16x4xf32>
    %132 = arith.mulf %122, %122 : vector<16x4xf32>
    %133 = arith.subf %131, %132 : vector<16x4xf32>
    %134 = math.exp %123 : vector<16x4xf32>
    %135 = arith.subf %133, %134 : vector<16x4xf32>
    %cst_80 = arith.constant dense<0.000000e+00> : vector<16xf32>
    %136 = vector.multi_reduction <add>, %135, %cst_80 [1] : vector<16x4xf32> to vector<16xf32>
    %137 = vector.shape_cast %136 : vector<16xf32> to vector<16x1xf32>
    %cst_81 = arith.constant -5.000000e-01 : f32
    %138 = vector.broadcast %cst_81 : f32 to vector<16x1xf32>
    %139 = arith.mulf %138, %137 : vector<16x1xf32>
    %c0_82 = arith.constant 0 : index
    %c0_83 = arith.constant 0 : index
    %140 = vector.load %arg16[%c0_82, %c0_83] : memref<4x32xf32, #tpu.memory_space<vmem>>, vector<4x32xf32>
    %cst_84 = arith.constant dense<0.000000e+00> : vector<16x32xf32>
    %141 = tpu.matmul %129, %140, %cst_84 {dimension_numbers = #tpu.dot_dimension_numbers<[1], [0], [0], [1], [0, 0, 1, 1], [], []>} : vector<16x4xf32>, vector<4x32xf32>, vector<16x32xf32> -> vector<16x32xf32>
    %c0_85 = arith.constant 0 : index
    %c0_86 = arith.constant 0 : index
    %142 = vector.load %arg2[%c0_85, %c0_86] : memref<16x4xf32, #tpu.memory_space<vmem>>, vector<16x4xf32>
    %c0_87 = arith.constant 0 : index
    %c0_88 = arith.constant 0 : index
    %143 = vector.load %arg17[%c0_87, %c0_88] : memref<4x32xf32, #tpu.memory_space<vmem>>, vector<4x32xf32>
    %cst_89 = arith.constant dense<0.000000e+00> : vector<16x32xf32>
    %144 = tpu.matmul %142, %143, %cst_89 {dimension_numbers = #tpu.dot_dimension_numbers<[1], [0], [0], [1], [0, 0, 1, 1], [], []>} : vector<16x4xf32>, vector<4x32xf32>, vector<16x32xf32> -> vector<16x32xf32>
    %145 = arith.addf %141, %144 : vector<16x32xf32>
    %c0_90 = arith.constant 0 : index
    %c0_91 = arith.constant 0 : index
    %146 = vector.load %arg18[%c0_90, %c0_91] : memref<1x32xf32, #tpu.memory_space<vmem>>, vector<1x32xf32>
    %147 = vector.broadcast %146 : vector<1x32xf32> to vector<16x32xf32>
    %148 = arith.addf %145, %147 : vector<16x32xf32>
    %cst_92 = arith.constant 0.000000e+00 : f32
    %149 = vector.broadcast %cst_92 : f32 to vector<16x32xf32>
    %150 = arith.cmpf ogt, %148, %149 : vector<16x32xf32>
    %cst_93 = arith.constant 1.000000e-01 : f32
    %151 = vector.broadcast %cst_93 : f32 to vector<16x32xf32>
    %152 = arith.mulf %151, %148 : vector<16x32xf32>
    %153 = arith.select %150, %148, %152 : vector<16x32xi1>, vector<16x32xf32>
    %c0_94 = arith.constant 0 : index
    %c0_95 = arith.constant 0 : index
    %154 = vector.load %arg1[%c0_94, %c0_95] : memref<32x4xf32, #tpu.memory_space<vmem>>, vector<32x4xf32>
    %c0_96 = arith.constant 0 : index
    %c0_97 = arith.constant 0 : index
    %155 = vector.load %arg19[%c0_96, %c0_97] : memref<4x32xf32, #tpu.memory_space<vmem>>, vector<4x32xf32>
    %cst_98 = arith.constant dense<0.000000e+00> : vector<32x32xf32>
    %156 = tpu.matmul %154, %155, %cst_98 {dimension_numbers = #tpu.dot_dimension_numbers<[1], [0], [0], [1], [0, 0, 1, 1], [], []>} : vector<32x4xf32>, vector<4x32xf32>, vector<32x32xf32> -> vector<32x32xf32>
    %c0_99 = arith.constant 0 : index
    %c0_100 = arith.constant 0 : index
    %157 = vector.load %arg20[%c0_99, %c0_100] : memref<1x32xf32, #tpu.memory_space<vmem>>, vector<1x32xf32>
    %158 = vector.broadcast %157 : vector<1x32xf32> to vector<32x32xf32>
    %159 = arith.addf %156, %158 : vector<32x32xf32>
    %cst_101 = arith.constant 0.000000e+00 : f32
    %160 = vector.broadcast %cst_101 : f32 to vector<32x32xf32>
    %161 = arith.cmpf ogt, %159, %160 : vector<32x32xf32>
    %cst_102 = arith.constant 1.000000e-01 : f32
    %162 = vector.broadcast %cst_102 : f32 to vector<32x32xf32>
    %163 = arith.mulf %162, %159 : vector<32x32xf32>
    %164 = arith.select %161, %159, %163 : vector<32x32xi1>, vector<32x32xf32>
    %c0_103 = arith.constant 0 : index
    %c64_104 = arith.constant 64 : index
    %165 = vector.load %arg28[%c0_103, %c64_104] : memref<32x96xf32, #tpu.memory_space<vmem>>, vector<32x32xf32>
    tpu.vector_store %arg28[%c0_103, %c64_104], %164 {strides = array<i32>} : memref<32x96xf32, #tpu.memory_space<vmem>>, vector<32x32xf32>,
    %cst_105 = arith.constant dense<0.000000e+00> : vector<64x32xf32>
    %166 = tpu.matmul %5, %153, %cst_105 {dimension_numbers = #tpu.dot_dimension_numbers<[1], [0], [0], [1], [0, 0, 1, 1], [], []>} : vector<64x16xf32>, vector<16x32xf32>, vector<64x32xf32> -> vector<64x32xf32>
    %167 = vector.extract_strided_slice %166 {offsets = [0, 0], sizes = [32, 32], strides = [1, 1]} : vector<64x32xf32> to vector<32x32xf32>
    %c0_106 = arith.constant 0 : index
    %c0_107 = arith.constant 0 : index
    %168 = vector.load %arg28[%c0_106, %c0_107] : memref<32x96xf32, #tpu.memory_space<vmem>>, vector<32x32xf32>
    tpu.vector_store %arg28[%c0_106, %c0_107], %167 {strides = array<i32>} : memref<32x96xf32, #tpu.memory_space<vmem>>, vector<32x32xf32>,
    %169 = vector.extract_strided_slice %166 {offsets = [32, 0], sizes = [32, 32], strides = [1, 1]} : vector<64x32xf32> to vector<32x32xf32>
    %c0_108 = arith.constant 0 : index
    %c32_109 = arith.constant 32 : index
    %170 = vector.load %arg28[%c0_108, %c32_109] : memref<32x96xf32, #tpu.memory_space<vmem>>, vector<32x32xf32>
    tpu.vector_store %arg28[%c0_108, %c32_109], %169 {strides = array<i32>} : memref<32x96xf32, #tpu.memory_space<vmem>>, vector<32x32xf32>,
    %c0_110 = arith.constant 0 : index
    %c0_111 = arith.constant 0 : index
    %171 = vector.load %arg28[%c0_110, %c0_111] : memref<32x96xf32, #tpu.memory_space<vmem>>, vector<32x96xf32>
    %c0_112 = arith.constant 0 : index
    %c0_113 = arith.constant 0 : index
    %c0_114 = arith.constant 0 : index
    %172 = vector.load %arg21[%c0_112, %c0_113, %c0_114] : memref<2x96x64xf32, #tpu.memory_space<vmem>>, vector<1x96x64xf32>
    %173 = vector.shape_cast %172 : vector<1x96x64xf32> to vector<96x64xf32>
    %cst_115 = arith.constant dense<0.000000e+00> : vector<32x64xf32>
    %174 = tpu.matmul %171, %173, %cst_115 {dimension_numbers = #tpu.dot_dimension_numbers<[1], [0], [0], [1], [0, 0, 1, 1], [], []>} : vector<32x96xf32>, vector<96x64xf32>, vector<32x64xf32> -> vector<32x64xf32>
    %c0_116 = arith.constant 0 : index
    %c0_117 = arith.constant 0 : index
    %c0_118 = arith.constant 0 : index
    %175 = vector.load %arg22[%c0_116, %c0_117, %c0_118] : memref<2x1x64xf32, #tpu.memory_space<vmem>>, vector<1x1x64xf32>
    %176 = vector.shape_cast %175 : vector<1x1x64xf32> to vector<1x64xf32>
    %177 = vector.broadcast %176 : vector<1x64xf32> to vector<32x64xf32>
    %178 = arith.addf %174, %177 : vector<32x64xf32>
    %179 = vector.extract_strided_slice %178 {offsets = [0, 0], sizes = [32, 32], strides = [1, 1]} : vector<32x64xf32> to vector<32x32xf32>
    %cst_119 = arith.constant 5.000000e-01 : f32
    %180 = vector.broadcast %cst_119 : f32 to vector<32x32xf32>
    %181 = arith.mulf %180, %179 : vector<32x32xf32>
    %182 = math.tanh %181 : vector<32x32xf32>
    %cst_120 = arith.constant 1.000000e+00 : f32
    %183 = vector.broadcast %cst_120 : f32 to vector<32x32xf32>
    %184 = arith.addf %182, %183 : vector<32x32xf32>
    %cst_121 = arith.constant 5.000000e-01 : f32
    %185 = vector.broadcast %cst_121 : f32 to vector<32x32xf32>
    %186 = arith.mulf %185, %184 : vector<32x32xf32>
    %187 = vector.extract_strided_slice %178 {offsets = [0, 32], sizes = [32, 32], strides = [1, 1]} : vector<32x64xf32> to vector<32x32xf32>
    %cst_122 = arith.constant 0.000000e+00 : f32
    %188 = vector.broadcast %cst_122 : f32 to vector<32x32xf32>
    %189 = arith.maximumf %187, %188 : vector<32x32xf32>
    %190 = math.absf %187 : vector<32x32xf32>
    %cst_123 = arith.constant 0.000000e+00 : f32
    %191 = vector.broadcast %cst_123 : f32 to vector<32x32xf32>
    %192 = arith.subf %191, %190 : vector<32x32xf32>
    %193 = math.exp %192 : vector<32x32xf32>
    %194 = math.log1p %193 : vector<32x32xf32>
    %195 = arith.addf %189, %194 : vector<32x32xf32>
    %196 = arith.mulf %186, %195 : vector<32x32xf32>
    %cst_124 = arith.constant dense<0.000000e+00> : vector<16x32xf32>
    %197 = tpu.matmul %11, %196, %cst_124 {dimension_numbers = #tpu.dot_dimension_numbers<[1], [0], [0], [1], [0, 0, 1, 1], [], []>} : vector<16x32xf32>, vector<32x32xf32>, vector<16x32xf32> -> vector<16x32xf32>
    %198 = arith.addf %153, %197 : vector<16x32xf32>
    %c0_125 = arith.constant 0 : index
    %c0_126 = arith.constant 0 : index
    %c0_127 = arith.constant 0 : index
    %199 = vector.load %arg23[%c0_125, %c0_126, %c0_127] : memref<2x1x32xf32, #tpu.memory_space<vmem>>, vector<1x1x32xf32>
    %200 = vector.shape_cast %199 : vector<1x1x32xf32> to vector<1x32xf32>
    %201 = vector.broadcast %200 : vector<1x32xf32> to vector<16x32xf32>
    %202 = arith.mulf %198, %201 : vector<16x32xf32>
    %c0_128 = arith.constant 0 : index
    %c0_129 = arith.constant 0 : index
    %c0_130 = arith.constant 0 : index
    %203 = vector.load %arg24[%c0_128, %c0_129, %c0_130] : memref<2x1x32xf32, #tpu.memory_space<vmem>>, vector<1x1x32xf32>
    %204 = vector.shape_cast %203 : vector<1x1x32xf32> to vector<1x32xf32>
    %205 = vector.broadcast %204 : vector<1x32xf32> to vector<16x32xf32>
    %206 = arith.addf %202, %205 : vector<16x32xf32>
    %cst_131 = arith.constant dense<0.000000e+00> : vector<64x32xf32>
    %207 = tpu.matmul %5, %206, %cst_131 {dimension_numbers = #tpu.dot_dimension_numbers<[1], [0], [0], [1], [0, 0, 1, 1], [], []>} : vector<64x16xf32>, vector<16x32xf32>, vector<64x32xf32> -> vector<64x32xf32>
    %208 = vector.extract_strided_slice %207 {offsets = [0, 0], sizes = [32, 32], strides = [1, 1]} : vector<64x32xf32> to vector<32x32xf32>
    %c0_132 = arith.constant 0 : index
    %c0_133 = arith.constant 0 : index
    %209 = vector.load %arg28[%c0_132, %c0_133] : memref<32x96xf32, #tpu.memory_space<vmem>>, vector<32x32xf32>
    tpu.vector_store %arg28[%c0_132, %c0_133], %208 {strides = array<i32>} : memref<32x96xf32, #tpu.memory_space<vmem>>, vector<32x32xf32>,
    %210 = vector.extract_strided_slice %207 {offsets = [32, 0], sizes = [32, 32], strides = [1, 1]} : vector<64x32xf32> to vector<32x32xf32>
    %c0_134 = arith.constant 0 : index
    %c32_135 = arith.constant 32 : index
    %211 = vector.load %arg28[%c0_134, %c32_135] : memref<32x96xf32, #tpu.memory_space<vmem>>, vector<32x32xf32>
    tpu.vector_store %arg28[%c0_134, %c32_135], %210 {strides = array<i32>} : memref<32x96xf32, #tpu.memory_space<vmem>>, vector<32x32xf32>,
    %c0_136 = arith.constant 0 : index
    %c0_137 = arith.constant 0 : index
    %212 = vector.load %arg28[%c0_136, %c0_137] : memref<32x96xf32, #tpu.memory_space<vmem>>, vector<32x96xf32>
    %c1_138 = arith.constant 1 : index
    %c0_139 = arith.constant 0 : index
    %c0_140 = arith.constant 0 : index
    %213 = vector.load %arg21[%c1_138, %c0_139, %c0_140] : memref<2x96x64xf32, #tpu.memory_space<vmem>>, vector<1x96x64xf32>
    %214 = vector.shape_cast %213 : vector<1x96x64xf32> to vector<96x64xf32>
    %cst_141 = arith.constant dense<0.000000e+00> : vector<32x64xf32>
    %215 = tpu.matmul %212, %214, %cst_141 {dimension_numbers = #tpu.dot_dimension_numbers<[1], [0], [0], [1], [0, 0, 1, 1], [], []>} : vector<32x96xf32>, vector<96x64xf32>, vector<32x64xf32> -> vector<32x64xf32>
    %c1_142 = arith.constant 1 : index
    %c0_143 = arith.constant 0 : index
    %c0_144 = arith.constant 0 : index
    %216 = vector.load %arg22[%c1_142, %c0_143, %c0_144] : memref<2x1x64xf32, #tpu.memory_space<vmem>>, vector<1x1x64xf32>
    %217 = vector.shape_cast %216 : vector<1x1x64xf32> to vector<1x64xf32>
    %218 = vector.broadcast %217 : vector<1x64xf32> to vector<32x64xf32>
    %219 = arith.addf %215, %218 : vector<32x64xf32>
    %220 = vector.extract_strided_slice %219 {offsets = [0, 0], sizes = [32, 32], strides = [1, 1]} : vector<32x64xf32> to vector<32x32xf32>
    %cst_145 = arith.constant 5.000000e-01 : f32
    %221 = vector.broadcast %cst_145 : f32 to vector<32x32xf32>
    %222 = arith.mulf %221, %220 : vector<32x32xf32>
    %223 = math.tanh %222 : vector<32x32xf32>
    %cst_146 = arith.constant 1.000000e+00 : f32
    %224 = vector.broadcast %cst_146 : f32 to vector<32x32xf32>
    %225 = arith.addf %223, %224 : vector<32x32xf32>
    %cst_147 = arith.constant 5.000000e-01 : f32
    %226 = vector.broadcast %cst_147 : f32 to vector<32x32xf32>
    %227 = arith.mulf %226, %225 : vector<32x32xf32>
    %228 = vector.extract_strided_slice %219 {offsets = [0, 32], sizes = [32, 32], strides = [1, 1]} : vector<32x64xf32> to vector<32x32xf32>
    %cst_148 = arith.constant 0.000000e+00 : f32
    %229 = vector.broadcast %cst_148 : f32 to vector<32x32xf32>
    %230 = arith.maximumf %228, %229 : vector<32x32xf32>
    %231 = math.absf %228 : vector<32x32xf32>
    %cst_149 = arith.constant 0.000000e+00 : f32
    %232 = vector.broadcast %cst_149 : f32 to vector<32x32xf32>
    %233 = arith.subf %232, %231 : vector<32x32xf32>
    %234 = math.exp %233 : vector<32x32xf32>
    %235 = math.log1p %234 : vector<32x32xf32>
    %236 = arith.addf %230, %235 : vector<32x32xf32>
    %237 = arith.mulf %227, %236 : vector<32x32xf32>
    %cst_150 = arith.constant dense<0.000000e+00> : vector<16x32xf32>
    %238 = tpu.matmul %11, %237, %cst_150 {dimension_numbers = #tpu.dot_dimension_numbers<[1], [0], [0], [1], [0, 0, 1, 1], [], []>} : vector<16x32xf32>, vector<32x32xf32>, vector<16x32xf32> -> vector<16x32xf32>
    %239 = arith.addf %206, %238 : vector<16x32xf32>
    %c1_151 = arith.constant 1 : index
    %c0_152 = arith.constant 0 : index
    %c0_153 = arith.constant 0 : index
    %240 = vector.load %arg23[%c1_151, %c0_152, %c0_153] : memref<2x1x32xf32, #tpu.memory_space<vmem>>, vector<1x1x32xf32>
    %241 = vector.shape_cast %240 : vector<1x1x32xf32> to vector<1x32xf32>
    %242 = vector.broadcast %241 : vector<1x32xf32> to vector<16x32xf32>
    %243 = arith.mulf %239, %242 : vector<16x32xf32>
    %c1_154 = arith.constant 1 : index
    %c0_155 = arith.constant 0 : index
    %c0_156 = arith.constant 0 : index
    %244 = vector.load %arg24[%c1_154, %c0_155, %c0_156] : memref<2x1x32xf32, #tpu.memory_space<vmem>>, vector<1x1x32xf32>
    %245 = vector.shape_cast %244 : vector<1x1x32xf32> to vector<1x32xf32>
    %246 = vector.broadcast %245 : vector<1x32xf32> to vector<16x32xf32>
    %247 = arith.addf %243, %246 : vector<16x32xf32>
    %c0_157 = arith.constant 0 : index
    %c0_158 = arith.constant 0 : index
    %248 = vector.load %arg25[%c0_157, %c0_158] : memref<32x128xf32, #tpu.memory_space<vmem>>, vector<32x128xf32>
    %cst_159 = arith.constant dense<0.000000e+00> : vector<16x128xf32>
    %249 = tpu.matmul %247, %248, %cst_159 {dimension_numbers = #tpu.dot_dimension_numbers<[1], [0], [0], [1], [0, 0, 1, 1], [], []>} : vector<16x32xf32>, vector<32x128xf32>, vector<16x128xf32> -> vector<16x128xf32>
    %c0_160 = arith.constant 0 : index
    %c0_161 = arith.constant 0 : index
    %250 = vector.load %arg26[%c0_160, %c0_161] : memref<1x128xf32, #tpu.memory_space<vmem>>, vector<1x128xf32>
    %251 = vector.broadcast %250 : vector<1x128xf32> to vector<16x128xf32>
    %252 = arith.addf %249, %251 : vector<16x128xf32>
    %c0_162 = arith.constant 0 : index
    %c0_163 = arith.constant 0 : index
    %253 = vector.load %arg27[%c0_162, %c0_163] : memref<16x128xf32, #tpu.memory_space<vmem>>, vector<16x128xf32>
    tpu.vector_store %arg27[%c0_162, %c0_163], %252 {strides = array<i32>} : memref<16x128xf32, #tpu.memory_space<vmem>>, vector<16x128xf32>,
    %c0_164 = arith.constant 0 : index
    %c8 = arith.constant 8 : index
    %254 = vector.load %arg27[%c0_164, %c8] : memref<16x128xf32, #tpu.memory_space<vmem>>, vector<16x8xf32>
    tpu.vector_store %arg27[%c0_164, %c8], %121 {strides = array<i32>} : memref<16x128xf32, #tpu.memory_space<vmem>>, vector<16x8xf32>,
    %c0_165 = arith.constant 0 : index
    %c16 = arith.constant 16 : index
    %255 = vector.load %arg27[%c0_165, %c16] : memref<16x128xf32, #tpu.memory_space<vmem>>, vector<16x4xf32>
    tpu.vector_store %arg27[%c0_165, %c16], %129 {strides = array<i32>} : memref<16x128xf32, #tpu.memory_space<vmem>>, vector<16x4xf32>,
    %c0_166 = arith.constant 0 : index
    %c20 = arith.constant 20 : index
    %256 = vector.load %arg27[%c0_166, %c20] : memref<16x128xf32, #tpu.memory_space<vmem>>, vector<16x1xf32>
    tpu.vector_store %arg27[%c0_166, %c20], %139 {strides = array<i32>} : memref<16x128xf32, #tpu.memory_space<vmem>>, vector<16x1xf32>,
    return
  }
}

</mosaic_0001>

<llo_original>
// kernel: tpu_custom_call.1
$region0: #{tpu_custom_call.1}
  #allocation0 [shape = 'u32[]', space=smem, size = 0x4, offset = 0x4, fixed_abs, tag = 'smem constant byte address 0x4 - core index']
  #allocation1 [shape = 'u32[144,128]{1,0:T(1,128)}', space=vmem, size = 0x12000, scoped, tag = 'internal scratch']
  #allocation2 [shape = 'f32[32,96]{1,0:T(8,128)}', space=vmem, size = 0x4000, scoped, tag = 'scratch operand']
  %s0 = inlined_call_operand.vmem [shape: f32[16,8], index: 0, kind: input, shape index: {}]
  %s1 = inlined_call_operand.vmem [shape: f32[32,4], index: 1, kind: input, shape index: {}]
  %s2 = inlined_call_operand.vmem [shape: f32[16,4], index: 2, kind: input, shape index: {}]
  %s3 = inlined_call_operand.vmem [shape: f32[16,4], index: 3, kind: input, shape index: {}]
  %s4 = inlined_call_operand.vmem [shape: s32[64,1], index: 4, kind: input, shape index: {}]
  %s5 = inlined_call_operand.vmem [shape: s32[1,32], index: 5, kind: input, shape index: {}]
  %s6 = inlined_call_operand.vmem [shape: f32[8,32], index: 6, kind: input, shape index: {}]
  %s7 = inlined_call_operand.vmem [shape: f32[1,32], index: 7, kind: input, shape index: {}]
  %s8 = inlined_call_operand.vmem [shape: f32[4,32], index: 8, kind: input, shape index: {}]
  %s9 = inlined_call_operand.vmem [shape: f32[1,32], index: 9, kind: input, shape index: {}]
  %s10 = inlined_call_operand.vmem [shape: f32[2,96,64], index: 10, kind: input, shape index: {}]
  %s11 = inlined_call_operand.vmem [shape: f32[2,1,64], index: 11, kind: input, shape index: {}]
  %s12 = inlined_call_operand.vmem [shape: f32[2,1,32], index: 12, kind: input, shape index: {}]
  %s13 = inlined_call_operand.vmem [shape: f32[2,1,32], index: 13, kind: input, shape index: {}]
  %s14 = inlined_call_operand.vmem [shape: f32[32,8], index: 14, kind: input, shape index: {}]
  %s15 = inlined_call_operand.vmem [shape: f32[1,8], index: 15, kind: input, shape index: {}]
  %s16 = inlined_call_operand.vmem [shape: f32[4,32], index: 16, kind: input, shape index: {}]
  %s17 = inlined_call_operand.vmem [shape: f32[4,32], index: 17, kind: input, shape index: {}]
  %s18 = inlined_call_operand.vmem [shape: f32[1,32], index: 18, kind: input, shape index: {}]
  %s19 = inlined_call_operand.vmem [shape: f32[4,32], index: 19, kind: input, shape index: {}]
  %s20 = inlined_call_operand.vmem [shape: f32[1,32], index: 20, kind: input, shape index: {}]
  %s21 = inlined_call_operand.vmem [shape: f32[2,96,64], index: 21, kind: input, shape index: {}]
  %s22 = inlined_call_operand.vmem [shape: f32[2,1,64], index: 22, kind: input, shape index: {}]
  %s23 = inlined_call_operand.vmem [shape: f32[2,1,32], index: 23, kind: input, shape index: {}]
  %s24 = inlined_call_operand.vmem [shape: f32[2,1,32], index: 24, kind: input, shape index: {}]
  %s25 = inlined_call_operand.vmem [shape: f32[32,128], index: 25, kind: input, shape index: {}]
  %s26 = inlined_call_operand.vmem [shape: f32[1,128], index: 26, kind: input, shape index: {}]
  %s27 = inlined_call_operand.hbm [shape: f32[16,128], index: 27, kind: output, shape index: {}]
  %s28 = sld [smem:[#allocation0]]
  $region118: #{tpu_custom_call.1} parent=0
    _
  %s30 = ssub.s32 1, %s28
  %s31 = scalar_select 0, %s30, %s28
  $region1: #{tpu_custom_call.1} parent=0
    #allocation3 [shape = 'u8[8192]{0}', space=vmem, size = 0x2000, scoped, tag = 'output window, operand 0, single buffered']
    #allocation4 [shape = 's32[1]{0}', space=sflag, size = 0x4, scoped, tag = 'scoped memory for tpu_custom_call.1']
    %32 = vsyncpa [#allocation4], 0
    // Predicated region
    $region2: #{tpu_custom_call.1} parent=1 // pred_check
      _
    $region3: #{tpu_custom_call.1} parent=1 // pred_check_branch
      %34 = sbr.rel (0) target = $region5
    $region4: #{tpu_custom_call.1} parent=1 // pred_region
      _
    $region5: #{tpu_custom_call.1} parent=1 // pred_fallthru
      _
    // Predicated region
    $region6: #{tpu_custom_call.1} parent=1 // pred_check
      _
    $region7: #{tpu_custom_call.1} parent=1 // pred_check_branch
      %36 = sbr.rel (0) target = $region9
    $region8: #{tpu_custom_call.1} parent=1 // pred_region
      _
    $region9: #{tpu_custom_call.1} parent=1 // pred_fallthru
      _
    // Predicated region
    $region10: #{tpu_custom_call.1} parent=1 // pred_check
      _
    $region11: #{tpu_custom_call.1} parent=1 // pred_check_branch
      %38 = sbr.rel (0) target = $region13
    $region12: #{tpu_custom_call.1} parent=1 // pred_region
      _
    $region13: #{tpu_custom_call.1} parent=1 // pred_fallthru
      _
    // Predicated region
    $region14: #{tpu_custom_call.1} parent=1 // pred_check
      _
    $region15: #{tpu_custom_call.1} parent=1 // pred_check_branch
      %40 = sbr.rel (0) target = $region17
    $region16: #{tpu_custom_call.1} parent=1 // pred_region
      _
    $region17: #{tpu_custom_call.1} parent=1 // pred_fallthru
      _
    // Predicated region
    $region18: #{tpu_custom_call.1} parent=1 // pred_check
      _
    $region19: #{tpu_custom_call.1} parent=1 // pred_check_branch
      %42 = sbr.rel (0) target = $region21
    $region20: #{tpu_custom_call.1} parent=1 // pred_region
      _
    $region21: #{tpu_custom_call.1} parent=1 // pred_fallthru
      _
    // Predicated region
    $region22: #{tpu_custom_call.1} parent=1 // pred_check
      _
    $region23: #{tpu_custom_call.1} parent=1 // pred_check_branch
      %44 = sbr.rel (0) target = $region25
    $region24: #{tpu_custom_call.1} parent=1 // pred_region
      _
    $region25: #{tpu_custom_call.1} parent=1 // pred_fallthru
      _
    // Predicated region
    $region26: #{tpu_custom_call.1} parent=1 // pred_check
      _
    $region27: #{tpu_custom_call.1} parent=1 // pred_check_branch
      %46 = sbr.rel (0) target = $region29
    $region28: #{tpu_custom_call.1} parent=1 // pred_region
      _
    $region29: #{tpu_custom_call.1} parent=1 // pred_fallthru
      _
    // Predicated region
    $region30: #{tpu_custom_call.1} parent=1 // pred_check
      _
    $region31: #{tpu_custom_call.1} parent=1 // pred_check_branch
      %48 = sbr.rel (0) target = $region33
    $region32: #{tpu_custom_call.1} parent=1 // pred_region
      _
    $region33: #{tpu_custom_call.1} parent=1 // pred_fallthru
      _
    // Predicated region
    $region34: #{tpu_custom_call.1} parent=1 // pred_check
      _
    $region35: #{tpu_custom_call.1} parent=1 // pred_check_branch
      %50 = sbr.rel (0) target = $region37
    $region36: #{tpu_custom_call.1} parent=1 // pred_region
      _
    $region37: #{tpu_custom_call.1} parent=1 // pred_fallthru
      _
    // Predicated region
    $region38: #{tpu_custom_call.1} parent=1 // pred_check
      _
    $region39: #{tpu_custom_call.1} parent=1 // pred_check_branch
      %52 = sbr.rel (0) target = $region41
    $region40: #{tpu_custom_call.1} parent=1 // pred_region
      _
    $region41: #{tpu_custom_call.1} parent=1 // pred_fallthru
      _
    // Predicated region
    $region42: #{tpu_custom_call.1} parent=1 // pred_check
      _
    $region43: #{tpu_custom_call.1} parent=1 // pred_check_branch
      %54 = sbr.rel (0) target = $region45
    $region44: #{tpu_custom_call.1} parent=1 // pred_region
      _
    $region45: #{tpu_custom_call.1} parent=1 // pred_fallthru
      _
    // Predicated region
    $region46: #{tpu_custom_call.1} parent=1 // pred_check
      _
    $region47: #{tpu_custom_call.1} parent=1 // pred_check_branch
      %56 = sbr.rel (0) target = $region49
    $region48: #{tpu_custom_call.1} parent=1 // pred_region
      _
    $region49: #{tpu_custom_call.1} parent=1 // pred_fallthru
      _
    // Predicated region
    $region50: #{tpu_custom_call.1} parent=1 // pred_check
      _
    $region51: #{tpu_custom_call.1} parent=1 // pred_check_branch
      %58 = sbr.rel (0) target = $region53
    $region52: #{tpu_custom_call.1} parent=1 // pred_region
      _
    $region53: #{tpu_custom_call.1} parent=1 // pred_fallthru
      _
    // Predicated region
    $region54: #{tpu_custom_call.1} parent=1 // pred_check
      _
    $region55: #{tpu_custom_call.1} parent=1 // pred_check_branch
      %60 = sbr.rel (0) target = $region57
    $region56: #{tpu_custom_call.1} parent=1 // pred_region
      _
    $region57: #{tpu_custom_call.1} parent=1 // pred_fallthru
      _
    // Predicated region
    $region58: #{tpu_custom_call.1} parent=1 // pred_check
      _
    $region59: #{tpu_custom_call.1} parent=1 // pred_check_branch
      %62 = sbr.rel (0) target = $region61
    $region60: #{tpu_custom_call.1} parent=1 // pred_region
      _
    $region61: #{tpu_custom_call.1} parent=1 // pred_fallthru
      _
    // Predicated region
    $region62: #{tpu_custom_call.1} parent=1 // pred_check
      _
    $region63: #{tpu_custom_call.1} parent=1 // pred_check_branch
      %64 = sbr.rel (0) target = $region65
    $region64: #{tpu_custom_call.1} parent=1 // pred_region
      _
    $region65: #{tpu_custom_call.1} parent=1 // pred_fallthru
      _
    // Predicated region
    $region66: #{tpu_custom_call.1} parent=1 // pred_check
      _
    $region67: #{tpu_custom_call.1} parent=1 // pred_check_branch
      %66 = sbr.rel (0) target = $region69
    $region68: #{tpu_custom_call.1} parent=1 // pred_region
      _
    $region69: #{tpu_custom_call.1} parent=1 // pred_fallthru
      _
    // Predicated region
    $region70: #{tpu_custom_call.1} parent=1 // pred_check
      _
    $region71: #{tpu_custom_call.1} parent=1 // pred_check_branch
      %68 = sbr.rel (0) target = $region73
    $region72: #{tpu_custom_call.1} parent=1 // pred_region
      _
    $region73: #{tpu_custom_call.1} parent=1 // pred_fallthru
      _
    // Predicated region
    $region74: #{tpu_custom_call.1} parent=1 // pred_check
      _
    $region75: #{tpu_custom_call.1} parent=1 // pred_check_branch
      %70 = sbr.rel (0) target = $region77
    $region76: #{tpu_custom_call.1} parent=1 // pred_region
      _
    $region77: #{tpu_custom_call.1} parent=1 // pred_fallthru
      _
    // Predicated region
    $region78: #{tpu_custom_call.1} parent=1 // pred_check
      _
    $region79: #{tpu_custom_call.1} parent=1 // pred_check_branch
      %72 = sbr.rel (0) target = $region81
    $region80: #{tpu_custom_call.1} parent=1 // pred_region
      _
    $region81: #{tpu_custom_call.1} parent=1 // pred_fallthru
      _
    // Predicated region
    $region82: #{tpu_custom_call.1} parent=1 // pred_check
      _
    $region83: #{tpu_custom_call.1} parent=1 // pred_check_branch
      %74 = sbr.rel (0) target = $region85
    $region84: #{tpu_custom_call.1} parent=1 // pred_region
      _
    $region85: #{tpu_custom_call.1} parent=1 // pred_fallthru
      _
    // Predicated region
    $region86: #{tpu_custom_call.1} parent=1 // pred_check
      _
    $region87: #{tpu_custom_call.1} parent=1 // pred_check_branch
      %76 = sbr.rel (0) target = $region89
    $region88: #{tpu_custom_call.1} parent=1 // pred_region
      _
    $region89: #{tpu_custom_call.1} parent=1 // pred_fallthru
      _
    // Predicated region
    $region90: #{tpu_custom_call.1} parent=1 // pred_check
      _
    $region91: #{tpu_custom_call.1} parent=1 // pred_check_branch
      %78 = sbr.rel (0) target = $region93
    $region92: #{tpu_custom_call.1} parent=1 // pred_region
      _
    $region93: #{tpu_custom_call.1} parent=1 // pred_fallthru
      _
    // Predicated region
    $region94: #{tpu_custom_call.1} parent=1 // pred_check
      _
    $region95: #{tpu_custom_call.1} parent=1 // pred_check_branch
      %80 = sbr.rel (0) target = $region97
    $region96: #{tpu_custom_call.1} parent=1 // pred_region
      _
    $region97: #{tpu_custom_call.1} parent=1 // pred_fallthru
      _
    // Predicated region
    $region98: #{tpu_custom_call.1} parent=1 // pred_check
      _
    $region99: #{tpu_custom_call.1} parent=1 // pred_check_branch
      %82 = sbr.rel (0) target = $region101
    $region100: #{tpu_custom_call.1} parent=1 // pred_region
      _
    $region101: #{tpu_custom_call.1} parent=1 // pred_fallthru
      _
    // Predicated region
    $region102: #{tpu_custom_call.1} parent=1 // pred_check
      _
    $region103: #{tpu_custom_call.1} parent=1 // pred_check_branch
      %84 = sbr.rel (0) target = $region105
    $region104: #{tpu_custom_call.1} parent=1 // pred_region
      _
    $region105: #{tpu_custom_call.1} parent=1 // pred_fallthru
      _
    // Predicated region
    $region106: #{tpu_custom_call.1} parent=1 // pred_check
      _
    $region107: #{tpu_custom_call.1} parent=1 // pred_check_branch
      %86 = sbr.rel (0) target = $region109
    $region108: #{tpu_custom_call.1} parent=1 // pred_region
      _
    $region109: #{tpu_custom_call.1} parent=1 // pred_fallthru
      _
    %v87 = vlaneseq
    %v88 = vand.u32 %v87, 127
    %v89 = vld [vmem:[%s4] sm:$0xff]
    %v90 = vld [vmem:[%s4 + $0x8] sm:$0xff]
    %v91 = vld [vmem:[%s4 + $0x10] sm:$0xff]
    %v92 = vld [vmem:[%s4 + $0x18] sm:$0xff]
    %v93 = vld [vmem:[%s4 + $0x20] sm:$0xff]
    %v94 = vld [vmem:[%s4 + $0x28] sm:$0xff]
    %v95 = vld [vmem:[%s4 + $0x30] sm:$0xff]
    %v96 = vld [vmem:[%s4 + $0x38] sm:$0xff]
    %97 = vset.pattern.permute.xlu0 0
    %98 = vperm.xlu0 %97, %v89
    %v99 = vpop.permute.xlu0 %98
    %100 = vset.pattern.permute.xlu0 0
    %101 = vperm.xlu0 %100, %v90
    %v102 = vpop.permute.xlu0 %101
    %103 = vset.pattern.permute.xlu0 0
    %104 = vperm.xlu0 %103, %v91
    %v105 = vpop.permute.xlu0 %104
    %106 = vset.pattern.permute.xlu0 0
    %107 = vperm.xlu0 %106, %v92
    %v108 = vpop.permute.xlu0 %107
    %109 = vset.pattern.permute.xlu0 0
    %110 = vperm.xlu0 %109, %v93
    %v111 = vpop.permute.xlu0 %110
    %112 = vset.pattern.permute.xlu0 0
    %113 = vperm.xlu0 %112, %v94
    %v114 = vpop.permute.xlu0 %113
    %115 = vset.pattern.permute.xlu0 0
    %116 = vperm.xlu0 %115, %v95
    %v117 = vpop.permute.xlu0 %116
    %118 = vset.pattern.permute.xlu0 0
    %119 = vperm.xlu0 %118, %v96
    %v120 = vpop.permute.xlu0 %119
    %vm121 = vcmp.eq.s32.totalorder %v88, %v99
    %vm122 = vcmp.eq.s32.totalorder %v88, %v102
    %vm123 = vcmp.eq.s32.totalorder %v88, %v105
    %vm124 = vcmp.eq.s32.totalorder %v88, %v108
    %vm125 = vcmp.eq.s32.totalorder %v88, %v111
    %vm126 = vcmp.eq.s32.totalorder %v88, %v114
    %vm127 = vcmp.eq.s32.totalorder %v88, %v117
    %vm128 = vcmp.eq.s32.totalorder %v88, %v120
    %v129 = vsel %vm121, 1, 0
    %v130 = vsel %vm122, 1, 0
    %v131 = vsel %vm123, 1, 0
    %v132 = vsel %vm124, 1, 0
    %v133 = vsel %vm125, 1, 0
    %v134 = vsel %vm126, 1, 0
    %v135 = vsel %vm127, 1, 0
    %v136 = vsel %vm128, 1, 0
    %v137 = vcvt.s32.f32 %v129
    %v138 = vcvt.s32.f32 %v130
    %v139 = vcvt.s32.f32 %v131
    %v140 = vcvt.s32.f32 %v132
    %v141 = vcvt.s32.f32 %v133
    %v142 = vcvt.s32.f32 %v134
    %v143 = vcvt.s32.f32 %v135
    %v144 = vcvt.s32.f32 %v136
    %v145 = vlaneseq
    %v146 = vshrl.u32 %v145, 7
    %v147 = vadd.s32 %v146, 8
    %v148 = vld [vmem:[%s5] sm:$0x1]
    %v149 = vlaneseq
    %v150 = vshrl.u32 %v149, 7
    %v151 = vsub.s32 0, %v150
    %v152 = vrot.slane %v148, %v151
    %vm153 = vcmp.eq.s32.totalorder %v146, %v152
    %vm154 = vcmp.eq.s32.totalorder %v147, %v152
    %v155 = vsel %vm153, 1, 0
    %v156 = vsel %vm154, 1, 0
    %v157 = vcvt.s32.f32 %v155
    %v158 = vcvt.s32.f32 %v156
    %v159 = vld [vmem:[%s0] sm:$0xff]
    %v160 = vld [vmem:[%s0 + $0x8] sm:$0xff]
    %v161 = vld [vmem:[%s6] sm:$0xff]
    %v162 = vld [vmem:[%s7] sm:$0x1]
    %v164 = vlaneseq
    %v165 = vshrl.u32 %v164, 7
    %v166 = vsub.s32 0, %v165
    %v167 = vrot.slane %v162, %v166
    %vm169 = vcmask 64512
    %v171 = vsel %vm169, %v159, 0
    %v174 = vsel %vm169, %v160, 0
    %176 = vmatprep.subr.mxu0 0.0
    %177 = vmatpush1.msra.mxu0 0.0
    %178 = vmatprep.subr.mxu0 0.0
    %179 = vmatpush1.msra.mxu0 0.0
    %180 = vmatprep.subr.mxu0 0.0
    %181 = vmatpush1.msra.mxu0 0.0
    %182 = vmatprep.subr.mxu0 0.0
    %183 = vmatpush1.msra.mxu0 0.0
    %184 = vmatprep.subr.mxu0 0.0
    %185 = vmatpush1.msra.mxu0 0.0
    %186 = vmatprep.subr.mxu0 0.0
    %187 = vmatpush1.msra.mxu0 0.0
    %188 = vmatprep.subr.mxu0 0.0
    %189 = vmatpush1.msra.mxu0 0.0
    %190 = vmatprep.subr.mxu0 0.0
    %191 = vmatpush1.msra.mxu0 0.0
    %192 = vmatprep.subr.mxu0 0.0
    %193 = vmatpush1.msra.mxu0 0.0
    %194 = vmatprep.subr.mxu0 0.0
    %195 = vmatpush1.msra.mxu0 0.0
    %196 = vmatprep.subr.mxu0 0.0
    %197 = vmatpush1.msra.mxu0 0.0
    %198 = vmatprep.subr.mxu0 0.0
    %199 = vmatpush1.msra.mxu0 0.0
    %200 = vmatprep.subr.mxu0 0.0
    %201 = vmatpush1.msra.mxu0 0.0
    %202 = vmatprep.subr.mxu0 0.0
    %203 = vmatpush1.msra.mxu0 0.0
    %204 = vmatprep.subr.mxu0 0.0
    %205 = vmatpush1.msra.mxu0 0.0
    %206 = vmatprep.subr.mxu0 0.0
    %207 = vmatpush1.msra.mxu0 %v161
    %208 = vmatprep.subr.mxu0 0.0
    %209 = vmatpush2.msra.mxu0 0.0
    %210 = vmatprep.subr.mxu0 0.0
    %211 = vmatpush2.msra.mxu0 0.0
    %212 = vmatprep.subr.mxu0 0.0
    %213 = vmatpush2.msra.mxu0 0.0
    %214 = vmatprep.subr.mxu0 0.0
    %215 = vmatpush2.msra.mxu0 0.0
    %216 = vmatprep.subr.mxu0 0.0
    %217 = vmatpush2.msra.mxu0 0.0
    %218 = vmatprep.subr.mxu0 0.0
    %219 = vmatpush2.msra.mxu0 0.0
    %220 = vmatprep.subr.mxu0 0.0
    %221 = vmatpush2.msra.mxu0 0.0
    %222 = vmatprep.subr.mxu0 0.0
    %223 = vmatpush2.msra.mxu0 0.0
    %224 = vmatprep.subr.mxu0 0.0
    %225 = vmatpush2.msra.mxu0 0.0
    %226 = vmatprep.subr.mxu0 0.0
    %227 = vmatpush2.msra.mxu0 0.0
    %228 = vmatprep.subr.mxu0 0.0
    %229 = vmatpush2.msra.mxu0 0.0
    %230 = vmatprep.subr.mxu0 0.0
    %231 = vmatpush2.msra.mxu0 0.0
    %232 = vmatprep.subr.mxu0 0.0
    %233 = vmatpush2.msra.mxu0 0.0
    %234 = vmatprep.subr.mxu0 0.0
    %235 = vmatpush2.msra.mxu0 0.0
    %236 = vmatprep.subr.mxu0 0.0
    %237 = vmatpush2.msra.mxu0 0.0
    %238 = vmatprep.subr.mxu0 0.0
    %239 = vmatpush2.msra.mxu0 0.0
    %240 = vmatprep.mubr.f32.mxu0 0.0
    %241 = vmatmul.mubr.f32.gmra.mxu0 %v171
    %v242 = vpop.f32.mrf.mxu0
    %v243 = vadd.f32 %v167, %v242
    %v244 = vpop.f32.mrf.mxu0
    %245 = vmatprep.mubr.f32.mxu0 0.0
    %246 = vmatmul.mubr.f32.gmra.mxu0 %v174
    %v247 = vpop.f32.mrf.mxu0
    %v248 = vadd.f32 %v167, %v247
    %v249 = vpop.f32.mrf.mxu0
    %250 = vdwg.mxu0
    %vm251 = vcmp.gt.f32.partialorder %v243, 0.0
    %vm252 = vcmp.gt.f32.partialorder %v248, 0.0
    %v253 = vmul.f32 %v243, 0.1
    %v254 = vmul.f32 %v248, 0.1
    %v255 = vsel %vm251, %v243, %v253
    %v256 = vsel %vm252, %v248, %v254
    %v257 = vld [vmem:[%s1] sm:$0xff]
    %v258 = vld [vmem:[%s1 + $0x8] sm:$0xff]
    %v259 = vld [vmem:[%s1 + $0x10] sm:$0xff]
    %v260 = vld [vmem:[%s1 + $0x18] sm:$0xff]
    %v261 = vld [vmem:[%s8] sm:$0xf]
    %v262 = vld [vmem:[%s9] sm:$0x1]
    %v264 = vlaneseq
    %v265 = vshrl.u32 %v264, 7
    %v266 = vsub.s32 0, %v265
    %v267 = vrot.slane %v262, %v266
    %vm269 = vcmask 31744
    %v271 = vsel %vm269, %v257, 0
    %v274 = vsel %vm269, %v258, 0
    %v277 = vsel %vm269, %v259, 0
    %v280 = vsel %vm269, %v260, 0
    %vm282 = vcmask 1043456
    %v284 = vsel %vm282, %v261, 0
    %286 = vmatprep.subr.mxu0 0.0
    %287 = vmatpush1.msra.mxu0 0.0
    %288 = vmatprep.subr.mxu0 0.0
    %289 = vmatpush1.msra.mxu0 0.0
    %290 = vmatprep.subr.mxu0 0.0
    %291 = vmatpush1.msra.mxu0 0.0
    %292 = vmatprep.subr.mxu0 0.0
    %293 = vmatpush1.msra.mxu0 0.0
    %294 = vmatprep.subr.mxu0 0.0
    %295 = vmatpush1.msra.mxu0 0.0
    %296 = vmatprep.subr.mxu0 0.0
    %297 = vmatpush1.msra.mxu0 0.0
    %298 = vmatprep.subr.mxu0 0.0
    %299 = vmatpush1.msra.mxu0 0.0
    %300 = vmatprep.subr.mxu0 0.0
    %301 = vmatpush1.msra.mxu0 0.0
    %302 = vmatprep.subr.mxu0 0.0
    %303 = vmatpush1.msra.mxu0 0.0
    %304 = vmatprep.subr.mxu0 0.0
    %305 = vmatpush1.msra.mxu0 0.0
    %306 = vmatprep.subr.mxu0 0.0
    %307 = vmatpush1.msra.mxu0 0.0
    %308 = vmatprep.subr.mxu0 0.0
    %309 = vmatpush1.msra.mxu0 0.0
    %310 = vmatprep.subr.mxu0 0.0
    %311 = vmatpush1.msra.mxu0 0.0
    %312 = vmatprep.subr.mxu0 0.0
    %313 = vmatpush1.msra.mxu0 0.0
    %314 = vmatprep.subr.mxu0 0.0
    %315 = vmatpush1.msra.mxu0 0.0
    %316 = vmatprep.subr.mxu0 0.0
    %317 = vmatpush1.msra.mxu0 %v284
    %318 = vmatprep.subr.mxu0 0.0
    %319 = vmatpush2.msra.mxu0 0.0
    %320 = vmatprep.subr.mxu0 0.0
    %321 = vmatpush2.msra.mxu0 0.0
    %322 = vmatprep.subr.mxu0 0.0
    %323 = vmatpush2.msra.mxu0 0.0
    %324 = vmatprep.subr.mxu0 0.0
    %325 = vmatpush2.msra.mxu0 0.0
    %326 = vmatprep.subr.mxu0 0.0
    %327 = vmatpush2.msra.mxu0 0.0
    %328 = vmatprep.subr.mxu0 0.0
    %329 = vmatpush2.msra.mxu0 0.0
    %330 = vmatprep.subr.mxu0 0.0
    %331 = vmatpush2.msra.mxu0 0.0
    %332 = vmatprep.subr.mxu0 0.0
    %333 = vmatpush2.msra.mxu0 0.0
    %334 = vmatprep.subr.mxu0 0.0
    %335 = vmatpush2.msra.mxu0 0.0
    %336 = vmatprep.subr.mxu0 0.0
    %337 = vmatpush2.msra.mxu0 0.0
    %338 = vmatprep.subr.mxu0 0.0
    %339 = vmatpush2.msra.mxu0 0.0
    %340 = vmatprep.subr.mxu0 0.0
    %341 = vmatpush2.msra.mxu0 0.0
    %342 = vmatprep.subr.mxu0 0.0
    %343 = vmatpush2.msra.mxu0 0.0
    %344 = vmatprep.subr.mxu0 0.0
    %345 = vmatpush2.msra.mxu0 0.0
    %346 = vmatprep.subr.mxu0 0.0
    %347 = vmatpush2.msra.mxu0 0.0
    %348 = vmatprep.subr.mxu0 0.0
    %349 = vmatpush2.msra.mxu0 0.0
    %350 = vmatprep.mubr.f32.mxu0 0.0
    %351 = vmatmul.mubr.f32.gmra.mxu0 %v271
    %v352 = vpop.f32.mrf.mxu0
    %v353 = vadd.f32 %v267, %v352
    %v354 = vpop.f32.mrf.mxu0
    %355 = vmatprep.mubr.f32.mxu0 0.0
    %356 = vmatmul.mubr.f32.gmra.mxu0 %v274
    %v357 = vpop.f32.mrf.mxu0
    %v358 = vadd.f32 %v267, %v357
    %v359 = vpop.f32.mrf.mxu0
    %360 = vmatprep.mubr.f32.mxu0 0.0
    %361 = vmatmul.mubr.f32.gmra.mxu0 %v277
    %v362 = vpop.f32.mrf.mxu0
    %v363 = vadd.f32 %v267, %v362
    %v364 = vpop.f32.mrf.mxu0
    %365 = vmatprep.mubr.f32.mxu0 0.0
    %366 = vmatmul.mubr.f32.gmra.mxu0 %v280
    %v367 = vpop.f32.mrf.mxu0
    %v368 = vadd.f32 %v267, %v367
    %v369 = vpop.f32.mrf.mxu0
    %370 = vdwg.mxu0
    %vm371 = vcmp.gt.f32.partialorder %v353, 0.0
    %vm372 = vcmp.gt.f32.partialorder %v358, 0.0
    %vm373 = vcmp.gt.f32.partialorder %v363, 0.0
    %vm374 = vcmp.gt.f32.partialorder %v368, 0.0
    %v375 = vmul.f32 %v353, 0.1
    %v376 = vmul.f32 %v358, 0.1
    %v377 = vmul.f32 %v363, 0.1
    %v378 = vmul.f32 %v368, 0.1
    %v379 = vsel %vm371, %v353, %v375
    %v380 = vsel %vm372, %v358, %v376
    %v381 = vsel %vm373, %v363, %v377
    %v382 = vsel %vm374, %v368, %v378
    %387 = vrot.lane.b32.xlu0 %v379, 64
    %v388 = vpop.permute.xlu0 %387
    %389 = vrot.lane.b32.xlu0 %v380, 64
    %v390 = vpop.permute.xlu0 %389
    %391 = vrot.lane.b32.xlu0 %v381, 64
    %v392 = vpop.permute.xlu0 %391
    %393 = vrot.lane.b32.xlu0 %v382, 64
    %v394 = vpop.permute.xlu0 %393
    %vm399 = vcmask 785920
    %400 = vst.msk [vmem:[#allocation2] sm:$0xff] %vm399, %v388
    %401 = vst.msk [vmem:[#allocation2 + $0x8] sm:$0xff] %vm399, %v390
    %402 = vst.msk [vmem:[#allocation2 + $0x10] sm:$0xff] %vm399, %v392
    %403 = vst.msk [vmem:[#allocation2 + $0x18] sm:$0xff] %vm399, %v394
    %vm404 = vcmask 130048
    %v406 = vsel %vm404, %v137, 0
    %v409 = vsel %vm404, %v138, 0
    %v412 = vsel %vm404, %v139, 0
    %v415 = vsel %vm404, %v140, 0
    %v418 = vsel %vm404, %v141, 0
    %v421 = vsel %vm404, %v142, 0
    %v424 = vsel %vm404, %v143, 0
    %v427 = vsel %vm404, %v144, 0
    %429 = vmatprep.subr.mxu0 0.0
    %430 = vmatpush1.msra.mxu0 0.0
    %431 = vmatprep.subr.mxu0 0.0
    %432 = vmatpush1.msra.mxu0 0.0
    %433 = vmatprep.subr.mxu0 0.0
    %434 = vmatpush1.msra.mxu0 0.0
    %435 = vmatprep.subr.mxu0 0.0
    %436 = vmatpush1.msra.mxu0 0.0
    %437 = vmatprep.subr.mxu0 0.0
    %438 = vmatpush1.msra.mxu0 0.0
    %439 = vmatprep.subr.mxu0 0.0
    %440 = vmatpush1.msra.mxu0 0.0
    %441 = vmatprep.subr.mxu0 0.0
    %442 = vmatpush1.msra.mxu0 0.0
    %443 = vmatprep.subr.mxu0 0.0
    %444 = vmatpush1.msra.mxu0 0.0
    %445 = vmatprep.subr.mxu0 0.0
    %446 = vmatpush1.msra.mxu0 0.0
    %447 = vmatprep.subr.mxu0 0.0
    %448 = vmatpush1.msra.mxu0 0.0
    %449 = vmatprep.subr.mxu0 0.0
    %450 = vmatpush1.msra.mxu0 0.0
    %451 = vmatprep.subr.mxu0 0.0
    %452 = vmatpush1.msra.mxu0 0.0
    %453 = vmatprep.subr.mxu0 0.0
    %454 = vmatpush1.msra.mxu0 0.0
    %455 = vmatprep.subr.mxu0 0.0
    %456 = vmatpush1.msra.mxu0 0.0
    %457 = vmatprep.subr.mxu0 0.0
    %458 = vmatpush1.msra.mxu0 %v256
    %459 = vmatprep.subr.mxu0 0.0
    %460 = vmatpush1.msra.mxu0 %v255
    %461 = vmatprep.subr.mxu0 0.0
    %462 = vmatpush2.msra.mxu0 0.0
    %463 = vmatprep.subr.mxu0 0.0
    %464 = vmatpush2.msra.mxu0 0.0
    %465 = vmatprep.subr.mxu0 0.0
    %466 = vmatpush2.msra.mxu0 0.0
    %467 = vmatprep.subr.mxu0 0.0
    %468 = vmatpush2.msra.mxu0 0.0
    %469 = vmatprep.subr.mxu0 0.0
    %470 = vmatpush2.msra.mxu0 0.0
    %471 = vmatprep.subr.mxu0 0.0
    %472 = vmatpush2.msra.mxu0 0.0
    %473 = vmatprep.subr.mxu0 0.0
    %474 = vmatpush2.msra.mxu0 0.0
    %475 = vmatprep.subr.mxu0 0.0
    %476 = vmatpush2.msra.mxu0 0.0
    %477 = vmatprep.subr.mxu0 0.0
    %478 = vmatpush2.msra.mxu0 0.0
    %479 = vmatprep.subr.mxu0 0.0
    %480 = vmatpush2.msra.mxu0 0.0
    %481 = vmatprep.subr.mxu0 0.0
    %482 = vmatpush2.msra.mxu0 0.0
    %483 = vmatprep.subr.mxu0 0.0
    %484 = vmatpush2.msra.mxu0 0.0
    %485 = vmatprep.subr.mxu0 0.0
    %486 = vmatpush2.msra.mxu0 0.0
    %487 = vmatprep.subr.mxu0 0.0
    %488 = vmatpush2.msra.mxu0 0.0
    %489 = vmatprep.subr.mxu0 0.0
    %490 = vmatpush2.msra.mxu0 0.0
    %491 = vmatprep.subr.mxu0 0.0
    %492 = vmatpush2.msra.mxu0 0.0
    %493 = vmatprep.mubr.f32.mxu0 0.0
    %494 = vmatmul.mubr.f32.gmra.mxu0 %v406
    %v495 = vpop.f32.mrf.mxu0
    %v496 = vadd.f32 0.0, %v495
    %v497 = vpop.f32.mrf.mxu0
    %498 = vmatprep.mubr.f32.mxu0 0.0
    %499 = vmatmul.mubr.f32.gmra.mxu0 %v409
    %v500 = vpop.f32.mrf.mxu0
    %v501 = vadd.f32 0.0, %v500
    %v502 = vpop.f32.mrf.mxu0
    %503 = vmatprep.mubr.f32.mxu0 0.0
    %504 = vmatmul.mubr.f32.gmra.mxu0 %v412
    %v505 = vpop.f32.mrf.mxu0
    %v506 = vadd.f32 0.0, %v505
    %v507 = vpop.f32.mrf.mxu0
    %508 = vmatprep.mubr.f32.mxu0 0.0
    %509 = vmatmul.mubr.f32.gmra.mxu0 %v415
    %v510 = vpop.f32.mrf.mxu0
    %v511 = vadd.f32 0.0, %v510
    %v512 = vpop.f32.mrf.mxu0
    %513 = vmatprep.mubr.f32.mxu0 0.0
    %514 = vmatmul.mubr.f32.gmra.mxu0 %v418
    %v515 = vpop.f32.mrf.mxu0
    %v516 = vadd.f32 0.0, %v515
    %v517 = vpop.f32.mrf.mxu0
    %518 = vmatprep.mubr.f32.mxu0 0.0
    %519 = vmatmul.mubr.f32.gmra.mxu0 %v421
    %v520 = vpop.f32.mrf.mxu0
    %v521 = vadd.f32 0.0, %v520
    %v522 = vpop.f32.mrf.mxu0
    %523 = vmatprep.mubr.f32.mxu0 0.0
    %524 = vmatmul.mubr.f32.gmra.mxu0 %v424
    %v525 = vpop.f32.mrf.mxu0
    %v526 = vadd.f32 0.0, %v525
    %v527 = vpop.f32.mrf.mxu0
    %528 = vmatprep.mubr.f32.mxu0 0.0
    %529 = vmatmul.mubr.f32.gmra.mxu0 %v427
    %v530 = vpop.f32.mrf.mxu0
    %v531 = vadd.f32 0.0, %v530
    %v532 = vpop.f32.mrf.mxu0
    %533 = vdwg.mxu0
    %vm534 = vcmask 261120
    %535 = vst.msk [vmem:[#allocation2] sm:$0xff] %vm534, %v496
    %536 = vst.msk [vmem:[#allocation2 + $0x8] sm:$0xff] %vm534, %v501
    %537 = vst.msk [vmem:[#allocation2 + $0x10] sm:$0xff] %vm534, %v506
    %538 = vst.msk [vmem:[#allocation2 + $0x18] sm:$0xff] %vm534, %v511
    %543 = vrot.lane.b32.xlu0 %v516, 32
    %v544 = vpop.permute.xlu0 %543
    %545 = vrot.lane.b32.xlu0 %v521, 32
    %v546 = vpop.permute.xlu0 %545
    %547 = vrot.lane.b32.xlu0 %v526, 32
    %v548 = vpop.permute.xlu0 %547
    %549 = vrot.lane.b32.xlu0 %v531, 32
    %v550 = vpop.permute.xlu0 %549
    %vm555 = vcmask 523520
    %556 = vst.msk [vmem:[#allocation2] sm:$0xff] %vm555, %v544
    %557 = vst.msk [vmem:[#allocation2 + $0x8] sm:$0xff] %vm555, %v546
    %558 = vst.msk [vmem:[#allocation2 + $0x10] sm:$0xff] %vm555, %v548
    %559 = vst.msk [vmem:[#allocation2 + $0x18] sm:$0xff] %vm555, %v550
    %v560 = vld [vmem:[#allocation2] sm:$0xff]
    %v561 = vld [vmem:[#allocation2 + $0x8] sm:$0xff]
    %v562 = vld [vmem:[#allocation2 + $0x10] sm:$0xff]
    %v563 = vld [vmem:[#allocation2 + $0x18] sm:$0xff]
    %v564 = vld [vmem:[%s10] sm:$0xff]
    %v565 = vld [vmem:[%s10 + $0x8] sm:$0xff]
    %v566 = vld [vmem:[%s10 + $0x10] sm:$0xff]
    %v567 = vld [vmem:[%s10 + $0x18] sm:$0xff]
    %v568 = vld [vmem:[%s10 + $0x20] sm:$0xff]
    %v569 = vld [vmem:[%s10 + $0x28] sm:$0xff]
    %v570 = vld [vmem:[%s10 + $0x30] sm:$0xff]
    %v571 = vld [vmem:[%s10 + $0x38] sm:$0xff]
    %v572 = vld [vmem:[%s10 + $0x40] sm:$0xff]
    %v573 = vld [vmem:[%s10 + $0x48] sm:$0xff]
    %v574 = vld [vmem:[%s10 + $0x50] sm:$0xff]
    %v575 = vld [vmem:[%s10 + $0x58] sm:$0xff]
    %v576 = vld [vmem:[%s11] sm:$0x1]
    %v578 = vlaneseq
    %v579 = vshrl.u32 %v578, 7
    %v580 = vsub.s32 0, %v579
    %v581 = vrot.slane %v576, %v580
    %vm583 = vcmask 785408
    %v585 = vsel %vm583, %v560, 0
    %v588 = vsel %vm583, %v561, 0
    %v591 = vsel %vm583, %v562, 0
    %v594 = vsel %vm583, %v563, 0
    %596 = vmatprep.subr.mxu0 0.0
    %597 = vmatpush1.msra.mxu0 0.0
    %598 = vmatprep.subr.mxu0 0.0
    %599 = vmatpush1.msra.mxu0 0.0
    %600 = vmatprep.subr.mxu0 0.0
    %601 = vmatpush1.msra.mxu0 0.0
    %602 = vmatprep.subr.mxu0 0.0
    %603 = vmatpush1.msra.mxu0 0.0
    %604 = vmatprep.subr.mxu0 0.0
    %605 = vmatpush1.msra.mxu0 %v575
    %606 = vmatprep.subr.mxu0 0.0
    %607 = vmatpush1.msra.mxu0 %v574
    %608 = vmatprep.subr.mxu0 0.0
    %609 = vmatpush1.msra.mxu0 %v573
    %610 = vmatprep.subr.mxu0 0.0
    %611 = vmatpush1.msra.mxu0 %v572
    %612 = vmatprep.subr.mxu0 0.0
    %613 = vmatpush1.msra.mxu0 %v571
    %614 = vmatprep.subr.mxu0 0.0
    %615 = vmatpush1.msra.mxu0 %v570
    %616 = vmatprep.subr.mxu0 0.0
    %617 = vmatpush1.msra.mxu0 %v569
    %618 = vmatprep.subr.mxu0 0.0
    %619 = vmatpush1.msra.mxu0 %v568
    %620 = vmatprep.subr.mxu0 0.0
    %621 = vmatpush1.msra.mxu0 %v567
    %622 = vmatprep.subr.mxu0 0.0
    %623 = vmatpush1.msra.mxu0 %v566
    %624 = vmatprep.subr.mxu0 0.0
    %625 = vmatpush1.msra.mxu0 %v565
    %626 = vmatprep.subr.mxu0 0.0
    %627 = vmatpush1.msra.mxu0 %v564
    %628 = vmatprep.subr.mxu0 0.0
    %629 = vmatpush2.msra.mxu0 0.0
    %630 = vmatprep.subr.mxu0 0.0
    %631 = vmatpush2.msra.mxu0 0.0
    %632 = vmatprep.subr.mxu0 0.0
    %633 = vmatpush2.msra.mxu0 0.0
    %634 = vmatprep.subr.mxu0 0.0
    %635 = vmatpush2.msra.mxu0 0.0
    %636 = vmatprep.subr.mxu0 0.0
    %637 = vmatpush2.msra.mxu0 0.0
    %638 = vmatprep.subr.mxu0 0.0
    %639 = vmatpush2.msra.mxu0 0.0
    %640 = vmatprep.subr.mxu0 0.0
    %641 = vmatpush2.msra.mxu0 0.0
    %642 = vmatprep.subr.mxu0 0.0
    %643 = vmatpush2.msra.mxu0 0.0
    %644 = vmatprep.subr.mxu0 0.0
    %645 = vmatpush2.msra.mxu0 0.0
    %646 = vmatprep.subr.mxu0 0.0
    %647 = vmatpush2.msra.mxu0 0.0
    %648 = vmatprep.subr.mxu0 0.0
    %649 = vmatpush2.msra.mxu0 0.0
    %650 = vmatprep.subr.mxu0 0.0
    %651 = vmatpush2.msra.mxu0 0.0
    %652 = vmatprep.subr.mxu0 0.0
    %653 = vmatpush2.msra.mxu0 0.0
    %654 = vmatprep.subr.mxu0 0.0
    %655 = vmatpush2.msra.mxu0 0.0
    %656 = vmatprep.subr.mxu0 0.0
    %657 = vmatpush2.msra.mxu0 0.0
    %658 = vmatprep.subr.mxu0 0.0
    %659 = vmatpush2.msra.mxu0 0.0
    %660 = vmatprep.mubr.f32.mxu0 0.0
    %661 = vmatmul.mubr.f32.gmra.mxu0 %v585
    %v662 = vpop.f32.mrf.mxu0
    %v663 = vadd.f32 %v581, %v662
    %v664 = vpop.f32.mrf.mxu0
    %665 = vmatprep.mubr.f32.mxu0 0.0
    %666 = vmatmul.mubr.f32.gmra.mxu0 %v588
    %v667 = vpop.f32.mrf.mxu0
    %v668 = vadd.f32 %v581, %v667
    %v669 = vpop.f32.mrf.mxu0
    %670 = vmatprep.mubr.f32.mxu0 0.0
    %671 = vmatmul.mubr.f32.gmra.mxu0 %v591
    %v672 = vpop.f32.mrf.mxu0
    %v673 = vadd.f32 %v581, %v672
    %v674 = vpop.f32.mrf.mxu0
    %675 = vmatprep.mubr.f32.mxu0 0.0
    %676 = vmatmul.mubr.f32.gmra.mxu0 %v594
    %v677 = vpop.f32.mrf.mxu0
    %v678 = vadd.f32 %v581, %v677
    %v679 = vpop.f32.mrf.mxu0
    %680 = vdwg.mxu0
    %v681 = vmul.f32 %v663, 0.5
    %v682 = vmul.f32 %v668, 0.5
    %v683 = vmul.f32 %v673, 0.5
    %v684 = vmul.f32 %v678, 0.5
    %v685 = vtanh.pop %v681
    %v686 = vtanh.pop %v682
    %v687 = vtanh.pop %v683
    %v688 = vtanh.pop %v684
    %v689 = vadd.f32 %v685, 1.0
    %v690 = vadd.f32 %v686, 1.0
    %v691 = vadd.f32 %v687, 1.0
    %v692 = vadd.f32 %v688, 1.0
    %v693 = vmul.f32 %v689, 0.5
    %v694 = vmul.f32 %v690, 0.5
    %v695 = vmul.f32 %v691, 0.5
    %v696 = vmul.f32 %v692, 0.5
    %v697 = vmax.f32 %v663, 0.0
    %v698 = vmax.f32 %v668, 0.0
    %v699 = vmax.f32 %v673, 0.0
    %v700 = vmax.f32 %v678, 0.0
    %v701 = vand.u32 2147483647, %v663
    %v702 = vand.u32 2147483647, %v668
    %v703 = vand.u32 2147483647, %v673
    %v704 = vand.u32 2147483647, %v678
    %v705 = vsub.f32 0.0, %v701
    %v706 = vsub.f32 0.0, %v702
    %v707 = vsub.f32 0.0, %v703
    %v708 = vsub.f32 0.0, %v704
    %v709 = vmul.f32 %v705, 1.442695
    %v710 = vpow.pop %v709
    %v711 = vmul.f32 %v706, 1.442695
    %v712 = vpow.pop %v711
    %v713 = vmul.f32 %v707, 1.442695
    %v714 = vpow.pop %v713
    %v715 = vmul.f32 %v708, 1.442695
    %v716 = vpow.pop %v715
    %v717 = vadd.f32 %v710, 1.0
    %v718 = vlog2.pop %v717
    %v719 = vmul.f32 %v718, 0.6931472
    %v720 = vmul.f32 -0.5, %v710
    %v721 = vadd.f32 %v720, 1.0
    %v722 = vmul.f32 %v721, %v710
    %v723 = vand.u32 2147483647, %v710
    %vm724 = vcmp.lt.f32.partialorder %v723, 0.0004427343
    %v725 = vsel %vm724, %v722, %v719
    %v726 = vadd.f32 %v712, 1.0
    %v727 = vlog2.pop %v726
    %v728 = vmul.f32 %v727, 0.6931472
    %v729 = vmul.f32 -0.5, %v712
    %v730 = vadd.f32 %v729, 1.0
    %v731 = vmul.f32 %v730, %v712
    %v732 = vand.u32 2147483647, %v712
    %vm733 = vcmp.lt.f32.partialorder %v732, 0.0004427343
    %v734 = vsel %vm733, %v731, %v728
    %v735 = vadd.f32 %v714, 1.0
    %v736 = vlog2.pop %v735
    %v737 = vmul.f32 %v736, 0.6931472
    %v738 = vmul.f32 -0.5, %v714
    %v739 = vadd.f32 %v738, 1.0
    %v740 = vmul.f32 %v739, %v714
    %v741 = vand.u32 2147483647, %v714
    %vm742 = vcmp.lt.f32.partialorder %v741, 0.0004427343
    %v743 = vsel %vm742, %v740, %v737
    %v744 = vadd.f32 %v716, 1.0
    %v745 = vlog2.pop %v744
    %v746 = vmul.f32 %v745, 0.6931472
    %v747 = vmul.f32 -0.5, %v716
    %v748 = vadd.f32 %v747, 1.0
    %v749 = vmul.f32 %v748, %v716
    %v750 = vand.u32 2147483647, %v716
    %vm751 = vcmp.lt.f32.partialorder %v750, 0.0004427343
    %v752 = vsel %vm751, %v749, %v746
    %v753 = vadd.f32 %v697, %v725
    %v754 = vadd.f32 %v698, %v734
    %v755 = vadd.f32 %v699, %v743
    %v756 = vadd.f32 %v700, %v752
    %761 = vrot.lane.b32.xlu0 %v753, 96
    %v762 = vpop.permute.xlu0 %761
    %763 = vrot.lane.b32.xlu0 %v754, 96
    %v764 = vpop.permute.xlu0 %763
    %765 = vrot.lane.b32.xlu0 %v755, 96
    %v766 = vpop.permute.xlu0 %765
    %767 = vrot.lane.b32.xlu0 %v756, 96
    %v768 = vpop.permute.xlu0 %767
    %v773 = vmul.f32 %v693, %v762
    %v774 = vmul.f32 %v694, %v764
    %v775 = vmul.f32 %v695, %v766
    %v776 = vmul.f32 %v696, %v768
    %v778 = vsel %vm534, %v157, 0
    %v781 = vsel %vm534, %v158, 0
    %783 = vmatprep.subr.mxu0 0.0
    %784 = vmatpush1.msra.mxu0 0.0
    %785 = vmatprep.subr.mxu0 0.0
    %786 = vmatpush1.msra.mxu0 0.0
    %787 = vmatprep.subr.mxu0 0.0
    %788 = vmatpush1.msra.mxu0 0.0
    %789 = vmatprep.subr.mxu0 0.0
    %790 = vmatpush1.msra.mxu0 0.0
    %791 = vmatprep.subr.mxu0 0.0
    %792 = vmatpush1.msra.mxu0 0.0
    %793 = vmatprep.subr.mxu0 0.0
    %794 = vmatpush1.msra.mxu0 0.0
    %795 = vmatprep.subr.mxu0 0.0
    %796 = vmatpush1.msra.mxu0 0.0
    %797 = vmatprep.subr.mxu0 0.0
    %798 = vmatpush1.msra.mxu0 0.0
    %799 = vmatprep.subr.mxu0 0.0
    %800 = vmatpush1.msra.mxu0 0.0
    %801 = vmatprep.subr.mxu0 0.0
    %802 = vmatpush1.msra.mxu0 0.0
    %803 = vmatprep.subr.mxu0 0.0
    %804 = vmatpush1.msra.mxu0 0.0
    %805 = vmatprep.subr.mxu0 0.0
    %806 = vmatpush1.msra.mxu0 0.0
    %807 = vmatprep.subr.mxu0 0.0
    %808 = vmatpush1.msra.mxu0 %v776
    %809 = vmatprep.subr.mxu0 0.0
    %810 = vmatpush1.msra.mxu0 %v775
    %811 = vmatprep.subr.mxu0 0.0
    %812 = vmatpush1.msra.mxu0 %v774
    %813 = vmatprep.subr.mxu0 0.0
    %814 = vmatpush1.msra.mxu0 %v773
    %815 = vmatprep.subr.mxu0 0.0
    %816 = vmatpush2.msra.mxu0 0.0
    %817 = vmatprep.subr.mxu0 0.0
    %818 = vmatpush2.msra.mxu0 0.0
    %819 = vmatprep.subr.mxu0 0.0
    %820 = vmatpush2.msra.mxu0 0.0
    %821 = vmatprep.subr.mxu0 0.0
    %822 = vmatpush2.msra.mxu0 0.0
    %823 = vmatprep.subr.mxu0 0.0
    %824 = vmatpush2.msra.mxu0 0.0
    %825 = vmatprep.subr.mxu0 0.0
    %826 = vmatpush2.msra.mxu0 0.0
    %827 = vmatprep.subr.mxu0 0.0
    %828 = vmatpush2.msra.mxu0 0.0
    %829 = vmatprep.subr.mxu0 0.0
    %830 = vmatpush2.msra.mxu0 0.0
    %831 = vmatprep.subr.mxu0 0.0
    %832 = vmatpush2.msra.mxu0 0.0
    %833 = vmatprep.subr.mxu0 0.0
    %834 = vmatpush2.msra.mxu0 0.0
    %835 = vmatprep.subr.mxu0 0.0
    %836 = vmatpush2.msra.mxu0 0.0
    %837 = vmatprep.subr.mxu0 0.0
    %838 = vmatpush2.msra.mxu0 0.0
    %839 = vmatprep.subr.mxu0 0.0
    %840 = vmatpush2.msra.mxu0 0.0
    %841 = vmatprep.subr.mxu0 0.0
    %842 = vmatpush2.msra.mxu0 0.0
    %843 = vmatprep.subr.mxu0 0.0
    %844 = vmatpush2.msra.mxu0 0.0
    %845 = vmatprep.subr.mxu0 0.0
    %846 = vmatpush2.msra.mxu0 0.0
    %847 = vmatprep.mubr.f32.mxu0 0.0
    %848 = vmatmul.mubr.f32.gmra.mxu0 %v778
    %v849 = vpop.f32.mrf.mxu0
    %v850 = vadd.f32 0.0, %v849
    %v851 = vpop.f32.mrf.mxu0
    %852 = vmatprep.mubr.f32.mxu0 0.0
    %853 = vmatmul.mubr.f32.gmra.mxu0 %v781
    %v854 = vpop.f32.mrf.mxu0
    %v855 = vadd.f32 0.0, %v854
    %v856 = vpop.f32.mrf.mxu0
    %857 = vdwg.mxu0
    %v858 = vadd.f32 %v255, %v850
    %v859 = vadd.f32 %v256, %v855
    %v860 = vld [vmem:[%s12] sm:$0x1]
    %v862 = vlaneseq
    %v863 = vshrl.u32 %v862, 7
    %v864 = vsub.s32 0, %v863
    %v865 = vrot.slane %v860, %v864
    %v867 = vmul.f32 %v858, %v865
    %v868 = vmul.f32 %v859, %v865
    %v869 = vld [vmem:[%s13] sm:$0x1]
    %v871 = vlaneseq
    %v872 = vshrl.u32 %v871, 7
    %v873 = vsub.s32 0, %v872
    %v874 = vrot.slane %v869, %v873
    %v876 = vadd.f32 %v867, %v874
    %v877 = vadd.f32 %v868, %v874
    %878 = vmatprep.subr.mxu0 0.0
    %879 = vmatpush1.msra.mxu0 0.0
    %880 = vmatprep.subr.mxu0 0.0
    %881 = vmatpush1.msra.mxu0 0.0
    %882 = vmatprep.subr.mxu0 0.0
    %883 = vmatpush1.msra.mxu0 0.0
    %884 = vmatprep.subr.mxu0 0.0
    %885 = vmatpush1.msra.mxu0 0.0
    %886 = vmatprep.subr.mxu0 0.0
    %887 = vmatpush1.msra.mxu0 0.0
    %888 = vmatprep.subr.mxu0 0.0
    %889 = vmatpush1.msra.mxu0 0.0
    %890 = vmatprep.subr.mxu0 0.0
    %891 = vmatpush1.msra.mxu0 0.0
    %892 = vmatprep.subr.mxu0 0.0
    %893 = vmatpush1.msra.mxu0 0.0
    %894 = vmatprep.subr.mxu0 0.0
    %895 = vmatpush1.msra.mxu0 0.0
    %896 = vmatprep.subr.mxu0 0.0
    %897 = vmatpush1.msra.mxu0 0.0
    %898 = vmatprep.subr.mxu0 0.0
    %899 = vmatpush1.msra.mxu0 0.0
    %900 = vmatprep.subr.mxu0 0.0
    %901 = vmatpush1.msra.mxu0 0.0
    %902 = vmatprep.subr.mxu0 0.0
    %903 = vmatpush1.msra.mxu0 0.0
    %904 = vmatprep.subr.mxu0 0.0
    %905 = vmatpush1.msra.mxu0 0.0
    %906 = vmatprep.subr.mxu0 0.0
    %907 = vmatpush1.msra.mxu0 %v877
    %908 = vmatprep.subr.mxu0 0.0
    %909 = vmatpush1.msra.mxu0 %v876
    %910 = vmatprep.subr.mxu0 0.0
    %911 = vmatpush2.msra.mxu0 0.0
    %912 = vmatprep.subr.mxu0 0.0
    %913 = vmatpush2.msra.mxu0 0.0
    %914 = vmatprep.subr.mxu0 0.0
    %915 = vmatpush2.msra.mxu0 0.0
    %916 = vmatprep.subr.mxu0 0.0
    %917 = vmatpush2.msra.mxu0 0.0
    %918 = vmatprep.subr.mxu0 0.0
    %919 = vmatpush2.msra.mxu0 0.0
    %920 = vmatprep.subr.mxu0 0.0
    %921 = vmatpush2.msra.mxu0 0.0
    %922 = vmatprep.subr.mxu0 0.0
    %923 = vmatpush2.msra.mxu0 0.0
    %924 = vmatprep.subr.mxu0 0.0
    %925 = vmatpush2.msra.mxu0 0.0
    %926 = vmatprep.subr.mxu0 0.0
    %927 = vmatpush2.msra.mxu0 0.0
    %928 = vmatprep.subr.mxu0 0.0
    %929 = vmatpush2.msra.mxu0 0.0
    %930 = vmatprep.subr.mxu0 0.0
    %931 = vmatpush2.msra.mxu0 0.0
    %932 = vmatprep.subr.mxu0 0.0
    %933 = vmatpush2.msra.mxu0 0.0
    %934 = vmatprep.subr.mxu0 0.0
    %935 = vmatpush2.msra.mxu0 0.0
    %936 = vmatprep.subr.mxu0 0.0
    %937 = vmatpush2.msra.mxu0 0.0
    %938 = vmatprep.subr.mxu0 0.0
    %939 = vmatpush2.msra.mxu0 0.0
    %940 = vmatprep.subr.mxu0 0.0
    %941 = vmatpush2.msra.mxu0 0.0
    %942 = vmatprep.mubr.f32.mxu0 0.0
    %943 = vmatmul.mubr.f32.gmra.mxu0 %v406
    %v944 = vpop.f32.mrf.mxu0
    %v945 = vadd.f32 0.0, %v944
    %v946 = vpop.f32.mrf.mxu0
    %947 = vmatprep.mubr.f32.mxu0 0.0
    %948 = vmatmul.mubr.f32.gmra.mxu0 %v409
    %v949 = vpop.f32.mrf.mxu0
    %v950 = vadd.f32 0.0, %v949
    %v951 = vpop.f32.mrf.mxu0
    %952 = vmatprep.mubr.f32.mxu0 0.0
    %953 = vmatmul.mubr.f32.gmra.mxu0 %v412
    %v954 = vpop.f32.mrf.mxu0
    %v955 = vadd.f32 0.0, %v954
    %v956 = vpop.f32.mrf.mxu0
    %957 = vmatprep.mubr.f32.mxu0 0.0
    %958 = vmatmul.mubr.f32.gmra.mxu0 %v415
    %v959 = vpop.f32.mrf.mxu0
    %v960 = vadd.f32 0.0, %v959
    %v961 = vpop.f32.mrf.mxu0
    %962 = vmatprep.mubr.f32.mxu0 0.0
    %963 = vmatmul.mubr.f32.gmra.mxu0 %v418
    %v964 = vpop.f32.mrf.mxu0
    %v965 = vadd.f32 0.0, %v964
    %v966 = vpop.f32.mrf.mxu0
    %967 = vmatprep.mubr.f32.mxu0 0.0
    %968 = vmatmul.mubr.f32.gmra.mxu0 %v421
    %v969 = vpop.f32.mrf.mxu0
    %v970 = vadd.f32 0.0, %v969
    %v971 = vpop.f32.mrf.mxu0
    %972 = vmatprep.mubr.f32.mxu0 0.0
    %973 = vmatmul.mubr.f32.gmra.mxu0 %v424
    %v974 = vpop.f32.mrf.mxu0
    %v975 = vadd.f32 0.0, %v974
    %v976 = vpop.f32.mrf.mxu0
    %977 = vmatprep.mubr.f32.mxu0 0.0
    %978 = vmatmul.mubr.f32.gmra.mxu0 %v427
    %v979 = vpop.f32.mrf.mxu0
    %v980 = vadd.f32 0.0, %v979
    %v981 = vpop.f32.mrf.mxu0
    %982 = vdwg.mxu0
    %983 = vst.msk [vmem:[#allocation2] sm:$0xff] %vm534, %v945
    %984 = vst.msk [vmem:[#allocation2 + $0x8] sm:$0xff] %vm534, %v950
    %985 = vst.msk [vmem:[#allocation2 + $0x10] sm:$0xff] %vm534, %v955
    %986 = vst.msk [vmem:[#allocation2 + $0x18] sm:$0xff] %vm534, %v960
    %991 = vrot.lane.b32.xlu0 %v965, 32
    %v992 = vpop.permute.xlu0 %991
    %993 = vrot.lane.b32.xlu0 %v970, 32
    %v994 = vpop.permute.xlu0 %993
    %995 = vrot.lane.b32.xlu0 %v975, 32
    %v996 = vpop.permute.xlu0 %995
    %997 = vrot.lane.b32.xlu0 %v980, 32
    %v998 = vpop.permute.xlu0 %997
    %1003 = vst.msk [vmem:[#allocation2] sm:$0xff] %vm555, %v992
    %1004 = vst.msk [vmem:[#allocation2 + $0x8] sm:$0xff] %vm555, %v994
    %1005 = vst.msk [vmem:[#allocation2 + $0x10] sm:$0xff] %vm555, %v996
    %1006 = vst.msk [vmem:[#allocation2 + $0x18] sm:$0xff] %vm555, %v998
    %v1007 = vld [vmem:[#allocation2] sm:$0xff]
    %v1008 = vld [vmem:[#allocation2 + $0x8] sm:$0xff]
    %v1009 = vld [vmem:[#allocation2 + $0x10] sm:$0xff]
    %v1010 = vld [vmem:[#allocation2 + $0x18] sm:$0xff]
    %s1011 = scalar_lea.vmem %s10, 96
    %v1012 = vld [vmem:[%s1011] sm:$0xff]
    %v1013 = vld [vmem:[%s1011 + $0x8] sm:$0xff]
    %v1014 = vld [vmem:[%s1011 + $0x10] sm:$0xff]
    %v1015 = vld [vmem:[%s1011 + $0x18] sm:$0xff]
    %v1016 = vld [vmem:[%s1011 + $0x20] sm:$0xff]
    %v1017 = vld [vmem:[%s1011 + $0x28] sm:$0xff]
    %v1018 = vld [vmem:[%s1011 + $0x30] sm:$0xff]
    %v1019 = vld [vmem:[%s1011 + $0x38] sm:$0xff]
    %v1020 = vld [vmem:[%s1011 + $0x40] sm:$0xff]
    %v1021 = vld [vmem:[%s1011 + $0x48] sm:$0xff]
    %v1022 = vld [vmem:[%s1011 + $0x50] sm:$0xff]
    %v1023 = vld [vmem:[%s1011 + $0x58] sm:$0xff]
    %s1024 = scalar_lea.vmem %s11, 1
    %v1025 = vld [vmem:[%s1024] sm:$0x1]
    %v1027 = vlaneseq
    %v1028 = vshrl.u32 %v1027, 7
    %v1029 = vsub.s32 0, %v1028
    %v1030 = vrot.slane %v1025, %v1029
    %v1033 = vsel %vm583, %v1007, 0
    %v1036 = vsel %vm583, %v1008, 0
    %v1039 = vsel %vm583, %v1009, 0
    %v1042 = vsel %vm583, %v1010, 0
    %1044 = vmatprep.subr.mxu0 0.0
    %1045 = vmatpush1.msra.mxu0 0.0
    %1046 = vmatprep.subr.mxu0 0.0
    %1047 = vmatpush1.msra.mxu0 0.0
    %1048 = vmatprep.subr.mxu0 0.0
    %1049 = vmatpush1.msra.mxu0 0.0
    %1050 = vmatprep.subr.mxu0 0.0
    %1051 = vmatpush1.msra.mxu0 0.0
    %1052 = vmatprep.subr.mxu0 0.0
    %1053 = vmatpush1.msra.mxu0 %v1023
    %1054 = vmatprep.subr.mxu0 0.0
    %1055 = vmatpush1.msra.mxu0 %v1022
    %1056 = vmatprep.subr.mxu0 0.0
    %1057 = vmatpush1.msra.mxu0 %v1021
    %1058 = vmatprep.subr.mxu0 0.0
    %1059 = vmatpush1.msra.mxu0 %v1020
    %1060 = vmatprep.subr.mxu0 0.0
    %1061 = vmatpush1.msra.mxu0 %v1019
    %1062 = vmatprep.subr.mxu0 0.0
    %1063 = vmatpush1.msra.mxu0 %v1018
    %1064 = vmatprep.subr.mxu0 0.0
    %1065 = vmatpush1.msra.mxu0 %v1017
    %1066 = vmatprep.subr.mxu0 0.0
    %1067 = vmatpush1.msra.mxu0 %v1016
    %1068 = vmatprep.subr.mxu0 0.0
    %1069 = vmatpush1.msra.mxu0 %v1015
    %1070 = vmatprep.subr.mxu0 0.0
    %1071 = vmatpush1.msra.mxu0 %v1014
    %1072 = vmatprep.subr.mxu0 0.0
    %1073 = vmatpush1.msra.mxu0 %v1013
    %1074 = vmatprep.subr.mxu0 0.0
    %1075 = vmatpush1.msra.mxu0 %v1012
    %1076 = vmatprep.subr.mxu0 0.0
    %1077 = vmatpush2.msra.mxu0 0.0
    %1078 = vmatprep.subr.mxu0 0.0
    %1079 = vmatpush2.msra.mxu0 0.0
    %1080 = vmatprep.subr.mxu0 0.0
    %1081 = vmatpush2.msra.mxu0 0.0
    %1082 = vmatprep.subr.mxu0 0.0
    %1083 = vmatpush2.msra.mxu0 0.0
    %1084 = vmatprep.subr.mxu0 0.0
    %1085 = vmatpush2.msra.mxu0 0.0
    %1086 = vmatprep.subr.mxu0 0.0
    %1087 = vmatpush2.msra.mxu0 0.0
    %1088 = vmatprep.subr.mxu0 0.0
    %1089 = vmatpush2.msra.mxu0 0.0
    %1090 = vmatprep.subr.mxu0 0.0
    %1091 = vmatpush2.msra.mxu0 0.0
    %1092 = vmatprep.subr.mxu0 0.0
    %1093 = vmatpush2.msra.mxu0 0.0
    %1094 = vmatprep.subr.mxu0 0.0
    %1095 = vmatpush2.msra.mxu0 0.0
    %1096 = vmatprep.subr.mxu0 0.0
    %1097 = vmatpush2.msra.mxu0 0.0
    %1098 = vmatprep.subr.mxu0 0.0
    %1099 = vmatpush2.msra.mxu0 0.0
    %1100 = vmatprep.subr.mxu0 0.0
    %1101 = vmatpush2.msra.mxu0 0.0
    %1102 = vmatprep.subr.mxu0 0.0
    %1103 = vmatpush2.msra.mxu0 0.0
    %1104 = vmatprep.subr.mxu0 0.0
    %1105 = vmatpush2.msra.mxu0 0.0
    %1106 = vmatprep.subr.mxu0 0.0
    %1107 = vmatpush2.msra.mxu0 0.0
    %1108 = vmatprep.mubr.f32.mxu0 0.0
    %1109 = vmatmul.mubr.f32.gmra.mxu0 %v1033
    %v1110 = vpop.f32.mrf.mxu0
    %v1111 = vadd.f32 %v1030, %v1110
    %v1112 = vpop.f32.mrf.mxu0
    %1113 = vmatprep.mubr.f32.mxu0 0.0
    %1114 = vmatmul.mubr.f32.gmra.mxu0 %v1036
    %v1115 = vpop.f32.mrf.mxu0
    %v1116 = vadd.f32 %v1030, %v1115
    %v1117 = vpop.f32.mrf.mxu0
    %1118 = vmatprep.mubr.f32.mxu0 0.0
    %1119 = vmatmul.mubr.f32.gmra.mxu0 %v1039
    %v1120 = vpop.f32.mrf.mxu0
    %v1121 = vadd.f32 %v1030, %v1120
    %v1122 = vpop.f32.mrf.mxu0
    %1123 = vmatprep.mubr.f32.mxu0 0.0
    %1124 = vmatmul.mubr.f32.gmra.mxu0 %v1042
    %v1125 = vpop.f32.mrf.mxu0
    %v1126 = vadd.f32 %v1030, %v1125
    %v1127 = vpop.f32.mrf.mxu0
    %1128 = vdwg.mxu0
    %v1129 = vmul.f32 %v1111, 0.5
    %v1130 = vmul.f32 %v1116, 0.5
    %v1131 = vmul.f32 %v1121, 0.5
    %v1132 = vmul.f32 %v1126, 0.5
    %v1133 = vtanh.pop %v1129
    %v1134 = vtanh.pop %v1130
    %v1135 = vtanh.pop %v1131
    %v1136 = vtanh.pop %v1132
    %v1137 = vadd.f32 %v1133, 1.0
    %v1138 = vadd.f32 %v1134, 1.0
    %v1139 = vadd.f32 %v1135, 1.0
    %v1140 = vadd.f32 %v1136, 1.0
    %v1141 = vmul.f32 %v1137, 0.5
    %v1142 = vmul.f32 %v1138, 0.5
    %v1143 = vmul.f32 %v1139, 0.5
    %v1144 = vmul.f32 %v1140, 0.5
    %v1145 = vmax.f32 %v1111, 0.0
    %v1146 = vmax.f32 %v1116, 0.0
    %v1147 = vmax.f32 %v1121, 0.0
    %v1148 = vmax.f32 %v1126, 0.0
    %v1149 = vand.u32 2147483647, %v1111
    %v1150 = vand.u32 2147483647, %v1116
    %v1151 = vand.u32 2147483647, %v1121
    %v1152 = vand.u32 2147483647, %v1126
    %v1153 = vsub.f32 0.0, %v1149
    %v1154 = vsub.f32 0.0, %v1150
    %v1155 = vsub.f32 0.0, %v1151
    %v1156 = vsub.f32 0.0, %v1152
    %v1157 = vmul.f32 %v1153, 1.442695
    %v1158 = vpow.pop %v1157
    %v1159 = vmul.f32 %v1154, 1.442695
    %v1160 = vpow.pop %v1159
    %v1161 = vmul.f32 %v1155, 1.442695
    %v1162 = vpow.pop %v1161
    %v1163 = vmul.f32 %v1156, 1.442695
    %v1164 = vpow.pop %v1163
    %v1165 = vadd.f32 %v1158, 1.0
    %v1166 = vlog2.pop %v1165
    %v1167 = vmul.f32 %v1166, 0.6931472
    %v1168 = vmul.f32 -0.5, %v1158
    %v1169 = vadd.f32 %v1168, 1.0
    %v1170 = vmul.f32 %v1169, %v1158
    %v1171 = vand.u32 2147483647, %v1158
    %vm1172 = vcmp.lt.f32.partialorder %v1171, 0.0004427343
    %v1173 = vsel %vm1172, %v1170, %v1167
    %v1174 = vadd.f32 %v1160, 1.0
    %v1175 = vlog2.pop %v1174
    %v1176 = vmul.f32 %v1175, 0.6931472
    %v1177 = vmul.f32 -0.5, %v1160
    %v1178 = vadd.f32 %v1177, 1.0
    %v1179 = vmul.f32 %v1178, %v1160
    %v1180 = vand.u32 2147483647, %v1160
    %vm1181 = vcmp.lt.f32.partialorder %v1180, 0.0004427343
    %v1182 = vsel %vm1181, %v1179, %v1176
    %v1183 = vadd.f32 %v1162, 1.0
    %v1184 = vlog2.pop %v1183
    %v1185 = vmul.f32 %v1184, 0.6931472
    %v1186 = vmul.f32 -0.5, %v1162
    %v1187 = vadd.f32 %v1186, 1.0
    %v1188 = vmul.f32 %v1187, %v1162
    %v1189 = vand.u32 2147483647, %v1162
    %vm1190 = vcmp.lt.f32.partialorder %v1189, 0.0004427343
    %v1191 = vsel %vm1190, %v1188, %v1185
    %v1192 = vadd.f32 %v1164, 1.0
    %v1193 = vlog2.pop %v1192
    %v1194 = vmul.f32 %v1193, 0.6931472
    %v1195 = vmul.f32 -0.5, %v1164
    %v1196 = vadd.f32 %v1195, 1.0
    %v1197 = vmul.f32 %v1196, %v1164
    %v1198 = vand.u32 2147483647, %v1164
    %vm1199 = vcmp.lt.f32.partialorder %v1198, 0.0004427343
    %v1200 = vsel %vm1199, %v1197, %v1194
    %v1201 = vadd.f32 %v1145, %v1173
    %v1202 = vadd.f32 %v1146, %v1182
    %v1203 = vadd.f32 %v1147, %v1191
    %v1204 = vadd.f32 %v1148, %v1200
    %1209 = vrot.lane.b32.xlu0 %v1201, 96
    %v1210 = vpop.permute.xlu0 %1209
    %1211 = vrot.lane.b32.xlu0 %v1202, 96
    %v1212 = vpop.permute.xlu0 %1211
    %1213 = vrot.lane.b32.xlu0 %v1203, 96
    %v1214 = vpop.permute.xlu0 %1213
    %1215 = vrot.lane.b32.xlu0 %v1204, 96
    %v1216 = vpop.permute.xlu0 %1215
    %v1221 = vmul.f32 %v1141, %v1210
    %v1222 = vmul.f32 %v1142, %v1212
    %v1223 = vmul.f32 %v1143, %v1214
    %v1224 = vmul.f32 %v1144, %v1216
    %1225 = vmatprep.subr.mxu0 0.0
    %1226 = vmatpush1.msra.mxu0 0.0
    %1227 = vmatprep.subr.mxu0 0.0
    %1228 = vmatpush1.msra.mxu0 0.0
    %1229 = vmatprep.subr.mxu0 0.0
    %1230 = vmatpush1.msra.mxu0 0.0
    %1231 = vmatprep.subr.mxu0 0.0
    %1232 = vmatpush1.msra.mxu0 0.0
    %1233 = vmatprep.subr.mxu0 0.0
    %1234 = vmatpush1.msra.mxu0 0.0
    %1235 = vmatprep.subr.mxu0 0.0
    %1236 = vmatpush1.msra.mxu0 0.0
    %1237 = vmatprep.subr.mxu0 0.0
    %1238 = vmatpush1.msra.mxu0 0.0
    %1239 = vmatprep.subr.mxu0 0.0
    %1240 = vmatpush1.msra.mxu0 0.0
    %1241 = vmatprep.subr.mxu0 0.0
    %1242 = vmatpush1.msra.mxu0 0.0
    %1243 = vmatprep.subr.mxu0 0.0
    %1244 = vmatpush1.msra.mxu0 0.0
    %1245 = vmatprep.subr.mxu0 0.0
    %1246 = vmatpush1.msra.mxu0 0.0
    %1247 = vmatprep.subr.mxu0 0.0
    %1248 = vmatpush1.msra.mxu0 0.0
    %1249 = vmatprep.subr.mxu0 0.0
    %1250 = vmatpush1.msra.mxu0 %v1224
    %1251 = vmatprep.subr.mxu0 0.0
    %1252 = vmatpush1.msra.mxu0 %v1223
    %1253 = vmatprep.subr.mxu0 0.0
    %1254 = vmatpush1.msra.mxu0 %v1222
    %1255 = vmatprep.subr.mxu0 0.0
    %1256 = vmatpush1.msra.mxu0 %v1221
    %1257 = vmatprep.subr.mxu0 0.0
    %1258 = vmatpush2.msra.mxu0 0.0
    %1259 = vmatprep.subr.mxu0 0.0
    %1260 = vmatpush2.msra.mxu0 0.0
    %1261 = vmatprep.subr.mxu0 0.0
    %1262 = vmatpush2.msra.mxu0 0.0
    %1263 = vmatprep.subr.mxu0 0.0
    %1264 = vmatpush2.msra.mxu0 0.0
    %1265 = vmatprep.subr.mxu0 0.0
    %1266 = vmatpush2.msra.mxu0 0.0
    %1267 = vmatprep.subr.mxu0 0.0
    %1268 = vmatpush2.msra.mxu0 0.0
    %1269 = vmatprep.subr.mxu0 0.0
    %1270 = vmatpush2.msra.mxu0 0.0
    %1271 = vmatprep.subr.mxu0 0.0
    %1272 = vmatpush2.msra.mxu0 0.0
    %1273 = vmatprep.subr.mxu0 0.0
    %1274 = vmatpush2.msra.mxu0 0.0
    %1275 = vmatprep.subr.mxu0 0.0
    %1276 = vmatpush2.msra.mxu0 0.0
    %1277 = vmatprep.subr.mxu0 0.0
    %1278 = vmatpush2.msra.mxu0 0.0
    %1279 = vmatprep.subr.mxu0 0.0
    %1280 = vmatpush2.msra.mxu0 0.0
    %1281 = vmatprep.subr.mxu0 0.0
    %1282 = vmatpush2.msra.mxu0 0.0
    %1283 = vmatprep.subr.mxu0 0.0
    %1284 = vmatpush2.msra.mxu0 0.0
    %1285 = vmatprep.subr.mxu0 0.0
    %1286 = vmatpush2.msra.mxu0 0.0
    %1287 = vmatprep.subr.mxu0 0.0
    %1288 = vmatpush2.msra.mxu0 0.0
    %1289 = vmatprep.mubr.f32.mxu0 0.0
    %1290 = vmatmul.mubr.f32.gmra.mxu0 %v778
    %v1291 = vpop.f32.mrf.mxu0
    %v1292 = vadd.f32 0.0, %v1291
    %v1293 = vpop.f32.mrf.mxu0
    %1294 = vmatprep.mubr.f32.mxu0 0.0
    %1295 = vmatmul.mubr.f32.gmra.mxu0 %v781
    %v1296 = vpop.f32.mrf.mxu0
    %v1297 = vadd.f32 0.0, %v1296
    %v1298 = vpop.f32.mrf.mxu0
    %1299 = vdwg.mxu0
    %v1300 = vadd.f32 %v876, %v1292
    %v1301 = vadd.f32 %v877, %v1297
    %s1302 = scalar_lea.vmem %s12, 1
    %v1303 = vld [vmem:[%s1302] sm:$0x1]
    %v1305 = vlaneseq
    %v1306 = vshrl.u32 %v1305, 7
    %v1307 = vsub.s32 0, %v1306
    %v1308 = vrot.slane %v1303, %v1307
    %v1310 = vmul.f32 %v1300, %v1308
    %v1311 = vmul.f32 %v1301, %v1308
    %s1312 = scalar_lea.vmem %s13, 1
    %v1313 = vld [vmem:[%s1312] sm:$0x1]
    %v1315 = vlaneseq
    %v1316 = vshrl.u32 %v1315, 7
    %v1317 = vsub.s32 0, %v1316
    %v1318 = vrot.slane %v1313, %v1317
    %v1320 = vadd.f32 %v1310, %v1318
    %v1321 = vadd.f32 %v1311, %v1318
    %v1322 = vld [vmem:[%s14] sm:$0xff]
    %v1323 = vld [vmem:[%s14 + $0x8] sm:$0xff]
    %v1324 = vld [vmem:[%s14 + $0x10] sm:$0xff]
    %v1325 = vld [vmem:[%s14 + $0x18] sm:$0xff]
    %v1326 = vld [vmem:[%s15] sm:$0x1]
    %v1328 = vlaneseq
    %v1329 = vshrl.u32 %v1328, 7
    %v1330 = vsub.s32 0, %v1329
    %v1331 = vrot.slane %v1326, %v1330
    %v1334 = vsel %vm534, %v1320, 0
    %v1337 = vsel %vm534, %v1321, 0
    %1339 = vmatprep.subr.mxu0 0.0
    %1340 = vmatpush1.msra.mxu0 0.0
    %1341 = vmatprep.subr.mxu0 0.0
    %1342 = vmatpush1.msra.mxu0 0.0
    %1343 = vmatprep.subr.mxu0 0.0
    %1344 = vmatpush1.msra.mxu0 0.0
    %1345 = vmatprep.subr.mxu0 0.0
    %1346 = vmatpush1.msra.mxu0 0.0
    %1347 = vmatprep.subr.mxu0 0.0
    %1348 = vmatpush1.msra.mxu0 0.0
    %1349 = vmatprep.subr.mxu0 0.0
    %1350 = vmatpush1.msra.mxu0 0.0
    %1351 = vmatprep.subr.mxu0 0.0
    %1352 = vmatpush1.msra.mxu0 0.0
    %1353 = vmatprep.subr.mxu0 0.0
    %1354 = vmatpush1.msra.mxu0 0.0
    %1355 = vmatprep.subr.mxu0 0.0
    %1356 = vmatpush1.msra.mxu0 0.0
    %1357 = vmatprep.subr.mxu0 0.0
    %1358 = vmatpush1.msra.mxu0 0.0
    %1359 = vmatprep.subr.mxu0 0.0
    %1360 = vmatpush1.msra.mxu0 0.0
    %1361 = vmatprep.subr.mxu0 0.0
    %1362 = vmatpush1.msra.mxu0 0.0
    %1363 = vmatprep.subr.mxu0 0.0
    %1364 = vmatpush1.msra.mxu0 %v1325
    %1365 = vmatprep.subr.mxu0 0.0
    %1366 = vmatpush1.msra.mxu0 %v1324
    %1367 = vmatprep.subr.mxu0 0.0
    %1368 = vmatpush1.msra.mxu0 %v1323
    %1369 = vmatprep.subr.mxu0 0.0
    %1370 = vmatpush1.msra.mxu0 %v1322
    %1371 = vmatprep.subr.mxu0 0.0
    %1372 = vmatpush2.msra.mxu0 0.0
    %1373 = vmatprep.subr.mxu0 0.0
    %1374 = vmatpush2.msra.mxu0 0.0
    %1375 = vmatprep.subr.mxu0 0.0
    %1376 = vmatpush2.msra.mxu0 0.0
    %1377 = vmatprep.subr.mxu0 0.0
    %1378 = vmatpush2.msra.mxu0 0.0
    %1379 = vmatprep.subr.mxu0 0.0
    %1380 = vmatpush2.msra.mxu0 0.0
    %1381 = vmatprep.subr.mxu0 0.0
    %1382 = vmatpush2.msra.mxu0 0.0
    %1383 = vmatprep.subr.mxu0 0.0
    %1384 = vmatpush2.msra.mxu0 0.0
    %1385 = vmatprep.subr.mxu0 0.0
    %1386 = vmatpush2.msra.mxu0 0.0
    %1387 = vmatprep.subr.mxu0 0.0
    %1388 = vmatpush2.msra.mxu0 0.0
    %1389 = vmatprep.subr.mxu0 0.0
    %1390 = vmatpush2.msra.mxu0 0.0
    %1391 = vmatprep.subr.mxu0 0.0
    %1392 = vmatpush2.msra.mxu0 0.0
    %1393 = vmatprep.subr.mxu0 0.0
    %1394 = vmatpush2.msra.mxu0 0.0
    %1395 = vmatprep.subr.mxu0 0.0
    %1396 = vmatpush2.msra.mxu0 0.0
    %1397 = vmatprep.subr.mxu0 0.0
    %1398 = vmatpush2.msra.mxu0 0.0
    %1399 = vmatprep.subr.mxu0 0.0
    %1400 = vmatpush2.msra.mxu0 0.0
    %1401 = vmatprep.subr.mxu0 0.0
    %1402 = vmatpush2.msra.mxu0 0.0
    %1403 = vmatprep.mubr.f32.mxu0 0.0
    %1404 = vmatmul.mubr.f32.gmra.mxu0 %v1334
    %v1405 = vpop.f32.mrf.mxu0
    %v1406 = vadd.f32 %v1331, %v1405
    %v1407 = vpop.f32.mrf.mxu0
    %1408 = vmatprep.mubr.f32.mxu0 0.0
    %1409 = vmatmul.mubr.f32.gmra.mxu0 %v1337
    %v1410 = vpop.f32.mrf.mxu0
    %v1411 = vadd.f32 %v1331, %v1410
    %v1412 = vpop.f32.mrf.mxu0
    %1413 = vdwg.mxu0
    %v1414 = vld [vmem:[%s3] sm:$0xff]
    %v1415 = vld [vmem:[%s3 + $0x8] sm:$0xff]
    %v1416 = vmul.f32 %v1406, 0.5
    %v1417 = vmul.f32 %v1411, 0.5
    %v1418 = vmul.f32 %v1416, 1.442695
    %v1419 = vpow.pop %v1418
    %v1420 = vmul.f32 %v1417, 1.442695
    %v1421 = vpow.pop %v1420
    %1424 = vrot.lane.b32.xlu0 %v1419, 124
    %v1425 = vpop.permute.xlu0 %1424
    %1426 = vrot.lane.b32.xlu0 %v1421, 124
    %v1427 = vpop.permute.xlu0 %1426
    %v1430 = vmul.f32 %v1414, %v1425
    %v1431 = vmul.f32 %v1415, %v1427
    %v1432 = vadd.f32 %v1406, %v1430
    %v1433 = vadd.f32 %v1411, %v1431
    %v1434 = vadd.f32 %v1406, 1.0
    %v1435 = vadd.f32 %v1411, 1.0
    %v1436 = vmul.f32 %v1406, %v1406
    %v1437 = vmul.f32 %v1411, %v1411
    %1440 = vrot.lane.b32.xlu0 %v1436, 4
    %v1441 = vpop.permute.xlu0 %1440
    %1442 = vrot.lane.b32.xlu0 %v1437, 4
    %v1443 = vpop.permute.xlu0 %1442
    %v1446 = vsub.f32 %v1434, %v1441
    %v1447 = vsub.f32 %v1435, %v1443
    %v1448 = vmul.f32 %v1406, 1.442695
    %v1449 = vpow.pop %v1448
    %v1450 = vmul.f32 %v1411, 1.442695
    %v1451 = vpow.pop %v1450
    %v1452 = vsub.f32 %v1446, %v1449
    %v1453 = vsub.f32 %v1447, %v1451
    %1456 = vrot.lane.b32.xlu0 %v1452, 124
    %v1457 = vpop.permute.xlu0 %1456
    %1458 = vrot.lane.b32.xlu0 %v1453, 124
    %v1459 = vpop.permute.xlu0 %1458
    %v1462 = vsel %vm269, %v1457, 0.0
    %1463 = vadd.xlane.f32.xlu0 %v1462
    %v1464 = vpop.xlane.xlu0 %1463
    %v1465 = vsel %vm269, %v1459, 0.0
    %1466 = vadd.xlane.f32.xlu0 %v1465
    %v1467 = vpop.xlane.xlu0 %1466
    %v1468 = vmul.f32 %v1464, -0.5
    %v1469 = vmul.f32 %v1467, -0.5
    %v1470 = vld [vmem:[%s16] sm:$0xf]
    %v1471 = vld [vmem:[%s2] sm:$0xff]
    %v1472 = vld [vmem:[%s2 + $0x8] sm:$0xff]
    %v1473 = vld [vmem:[%s17] sm:$0xf]
    %v1475 = vsel %vm269, %v1471, 0
    %v1478 = vsel %vm269, %v1472, 0
    %v1481 = vsel %vm282, %v1473, 0
    %1483 = vmatprep.subr.mxu0 0.0
    %1484 = vmatpush1.msra.mxu0 0.0
    %1485 = vmatprep.subr.mxu0 0.0
    %1486 = vmatpush1.msra.mxu0 0.0
    %1487 = vmatprep.subr.mxu0 0.0
    %1488 = vmatpush1.msra.mxu0 0.0
    %1489 = vmatprep.subr.mxu0 0.0
    %1490 = vmatpush1.msra.mxu0 0.0
    %1491 = vmatprep.subr.mxu0 0.0
    %1492 = vmatpush1.msra.mxu0 0.0
    %1493 = vmatprep.subr.mxu0 0.0
    %1494 = vmatpush1.msra.mxu0 0.0
    %1495 = vmatprep.subr.mxu0 0.0
    %1496 = vmatpush1.msra.mxu0 0.0
    %1497 = vmatprep.subr.mxu0 0.0
    %1498 = vmatpush1.msra.mxu0 0.0
    %1499 = vmatprep.subr.mxu0 0.0
    %1500 = vmatpush1.msra.mxu0 0.0
    %1501 = vmatprep.subr.mxu0 0.0
    %1502 = vmatpush1.msra.mxu0 0.0
    %1503 = vmatprep.subr.mxu0 0.0
    %1504 = vmatpush1.msra.mxu0 0.0
    %1505 = vmatprep.subr.mxu0 0.0
    %1506 = vmatpush1.msra.mxu0 0.0
    %1507 = vmatprep.subr.mxu0 0.0
    %1508 = vmatpush1.msra.mxu0 0.0
    %1509 = vmatprep.subr.mxu0 0.0
    %1510 = vmatpush1.msra.mxu0 0.0
    %1511 = vmatprep.subr.mxu0 0.0
    %1512 = vmatpush1.msra.mxu0 0.0
    %1513 = vmatprep.subr.mxu0 0.0
    %1514 = vmatpush1.msra.mxu0 %v1481
    %1515 = vmatprep.subr.mxu0 0.0
    %1516 = vmatpush2.msra.mxu0 0.0
    %1517 = vmatprep.subr.mxu0 0.0
    %1518 = vmatpush2.msra.mxu0 0.0
    %1519 = vmatprep.subr.mxu0 0.0
    %1520 = vmatpush2.msra.mxu0 0.0
    %1521 = vmatprep.subr.mxu0 0.0
    %1522 = vmatpush2.msra.mxu0 0.0
    %1523 = vmatprep.subr.mxu0 0.0
    %1524 = vmatpush2.msra.mxu0 0.0
    %1525 = vmatprep.subr.mxu0 0.0
    %1526 = vmatpush2.msra.mxu0 0.0
    %1527 = vmatprep.subr.mxu0 0.0
    %1528 = vmatpush2.msra.mxu0 0.0
    %1529 = vmatprep.subr.mxu0 0.0
    %1530 = vmatpush2.msra.mxu0 0.0
    %1531 = vmatprep.subr.mxu0 0.0
    %1532 = vmatpush2.msra.mxu0 0.0
    %1533 = vmatprep.subr.mxu0 0.0
    %1534 = vmatpush2.msra.mxu0 0.0
    %1535 = vmatprep.subr.mxu0 0.0
    %1536 = vmatpush2.msra.mxu0 0.0
    %1537 = vmatprep.subr.mxu0 0.0
    %1538 = vmatpush2.msra.mxu0 0.0
    %1539 = vmatprep.subr.mxu0 0.0
    %1540 = vmatpush2.msra.mxu0 0.0
    %1541 = vmatprep.subr.mxu0 0.0
    %1542 = vmatpush2.msra.mxu0 0.0
    %1543 = vmatprep.subr.mxu0 0.0
    %1544 = vmatpush2.msra.mxu0 0.0
    %1545 = vmatprep.subr.mxu0 0.0
    %1546 = vmatpush2.msra.mxu0 0.0
    %1547 = vmatprep.mubr.f32.mxu0 0.0
    %1548 = vmatmul.mubr.f32.gmra.mxu0 %v1475
    %v1549 = vpop.f32.mrf.mxu0
    %v1550 = vadd.f32 0.0, %v1549
    %v1551 = vpop.f32.mrf.mxu0
    %1552 = vmatprep.mubr.f32.mxu0 0.0
    %1553 = vmatmul.mubr.f32.gmra.mxu0 %v1478
    %v1554 = vpop.f32.mrf.mxu0
    %v1555 = vadd.f32 0.0, %v1554
    %v1556 = vpop.f32.mrf.mxu0
    %1557 = vdwg.mxu0
    %v1559 = vsel %vm269, %v1432, 0
    %v1562 = vsel %vm269, %v1433, 0
    %v1565 = vsel %vm282, %v1470, 0
    %1567 = vmatprep.subr.mxu0 0.0
    %1568 = vmatpush1.msra.mxu0 0.0
    %1569 = vmatprep.subr.mxu0 0.0
    %1570 = vmatpush1.msra.mxu0 0.0
    %1571 = vmatprep.subr.mxu0 0.0
    %1572 = vmatpush1.msra.mxu0 0.0
    %1573 = vmatprep.subr.mxu0 0.0
    %1574 = vmatpush1.msra.mxu0 0.0
    %1575 = vmatprep.subr.mxu0 0.0
    %1576 = vmatpush1.msra.mxu0 0.0
    %1577 = vmatprep.subr.mxu0 0.0
    %1578 = vmatpush1.msra.mxu0 0.0
    %1579 = vmatprep.subr.mxu0 0.0
    %1580 = vmatpush1.msra.mxu0 0.0
    %1581 = vmatprep.subr.mxu0 0.0
    %1582 = vmatpush1.msra.mxu0 0.0
    %1583 = vmatprep.subr.mxu0 0.0
    %1584 = vmatpush1.msra.mxu0 0.0
    %1585 = vmatprep.subr.mxu0 0.0
    %1586 = vmatpush1.msra.mxu0 0.0
    %1587 = vmatprep.subr.mxu0 0.0
    %1588 = vmatpush1.msra.mxu0 0.0
    %1589 = vmatprep.subr.mxu0 0.0
    %1590 = vmatpush1.msra.mxu0 0.0
    %1591 = vmatprep.subr.mxu0 0.0
    %1592 = vmatpush1.msra.mxu0 0.0
    %1593 = vmatprep.subr.mxu0 0.0
    %1594 = vmatpush1.msra.mxu0 0.0
    %1595 = vmatprep.subr.mxu0 0.0
    %1596 = vmatpush1.msra.mxu0 0.0
    %1597 = vmatprep.subr.mxu0 0.0
    %1598 = vmatpush1.msra.mxu0 %v1565
    %1599 = vmatprep.subr.mxu0 0.0
    %1600 = vmatpush2.msra.mxu0 0.0
    %1601 = vmatprep.subr.mxu0 0.0
    %1602 = vmatpush2.msra.mxu0 0.0
    %1603 = vmatprep.subr.mxu0 0.0
    %1604 = vmatpush2.msra.mxu0 0.0
    %1605 = vmatprep.subr.mxu0 0.0
    %1606 = vmatpush2.msra.mxu0 0.0
    %1607 = vmatprep.subr.mxu0 0.0
    %1608 = vmatpush2.msra.mxu0 0.0
    %1609 = vmatprep.subr.mxu0 0.0
    %1610 = vmatpush2.msra.mxu0 0.0
    %1611 = vmatprep.subr.mxu0 0.0
    %1612 = vmatpush2.msra.mxu0 0.0
    %1613 = vmatprep.subr.mxu0 0.0
    %1614 = vmatpush2.msra.mxu0 0.0
    %1615 = vmatprep.subr.mxu0 0.0
    %1616 = vmatpush2.msra.mxu0 0.0
    %1617 = vmatprep.subr.mxu0 0.0
    %1618 = vmatpush2.msra.mxu0 0.0
    %1619 = vmatprep.subr.mxu0 0.0
    %1620 = vmatpush2.msra.mxu0 0.0
    %1621 = vmatprep.subr.mxu0 0.0
    %1622 = vmatpush2.msra.mxu0 0.0
    %1623 = vmatprep.subr.mxu0 0.0
    %1624 = vmatpush2.msra.mxu0 0.0
    %1625 = vmatprep.subr.mxu0 0.0
    %1626 = vmatpush2.msra.mxu0 0.0
    %1627 = vmatprep.subr.mxu0 0.0
    %1628 = vmatpush2.msra.mxu0 0.0
    %1629 = vmatprep.subr.mxu0 0.0
    %1630 = vmatpush2.msra.mxu0 0.0
    %1631 = vmatprep.mubr.f32.mxu0 0.0
    %1632 = vmatmul.mubr.f32.gmra.mxu0 %v1559
    %v1633 = vpop.f32.mrf.mxu0
    %v1634 = vadd.f32 %v1550, %v1633
    %v1635 = vpop.f32.mrf.mxu0
    %1636 = vmatprep.mubr.f32.mxu0 0.0
    %1637 = vmatmul.mubr.f32.gmra.mxu0 %v1562
    %v1638 = vpop.f32.mrf.mxu0
    %v1639 = vadd.f32 %v1555, %v1638
    %v1640 = vpop.f32.mrf.mxu0
    %1641 = vdwg.mxu0
    %v1642 = vld [vmem:[%s18] sm:$0x1]
    %v1644 = vlaneseq
    %v1645 = vshrl.u32 %v1644, 7
    %v1646 = vsub.s32 0, %v1645
    %v1647 = vrot.slane %v1642, %v1646
    %v1649 = vadd.f32 %v1634, %v1647
    %v1650 = vadd.f32 %v1639, %v1647
    %vm1651 = vcmp.gt.f32.partialorder %v1649, 0.0
    %vm1652 = vcmp.gt.f32.partialorder %v1650, 0.0
    %v1653 = vmul.f32 %v1649, 0.1
    %v1654 = vmul.f32 %v1650, 0.1
    %v1655 = vsel %vm1651, %v1649, %v1653
    %v1656 = vsel %vm1652, %v1650, %v1654
    %v1657 = vld [vmem:[%s1] sm:$0xff]
    %v1658 = vld [vmem:[%s1 + $0x8] sm:$0xff]
    %v1659 = vld [vmem:[%s1 + $0x10] sm:$0xff]
    %v1660 = vld [vmem:[%s1 + $0x18] sm:$0xff]
    %v1661 = vld [vmem:[%s19] sm:$0xf]
    %v1662 = vld [vmem:[%s20] sm:$0x1]
    %v1664 = vlaneseq
    %v1665 = vshrl.u32 %v1664, 7
    %v1666 = vsub.s32 0, %v1665
    %v1667 = vrot.slane %v1662, %v1666
    %v1670 = vsel %vm269, %v1657, 0
    %v1673 = vsel %vm269, %v1658, 0
    %v1676 = vsel %vm269, %v1659, 0
    %v1679 = vsel %vm269, %v1660, 0
    %v1682 = vsel %vm282, %v1661, 0
    %1684 = vmatprep.subr.mxu0 0.0
    %1685 = vmatpush1.msra.mxu0 0.0
    %1686 = vmatprep.subr.mxu0 0.0
    %1687 = vmatpush1.msra.mxu0 0.0
    %1688 = vmatprep.subr.mxu0 0.0
    %1689 = vmatpush1.msra.mxu0 0.0
    %1690 = vmatprep.subr.mxu0 0.0
    %1691 = vmatpush1.msra.mxu0 0.0
    %1692 = vmatprep.subr.mxu0 0.0
    %1693 = vmatpush1.msra.mxu0 0.0
    %1694 = vmatprep.subr.mxu0 0.0
    %1695 = vmatpush1.msra.mxu0 0.0
    %1696 = vmatprep.subr.mxu0 0.0
    %1697 = vmatpush1.msra.mxu0 0.0
    %1698 = vmatprep.subr.mxu0 0.0
    %1699 = vmatpush1.msra.mxu0 0.0
    %1700 = vmatprep.subr.mxu0 0.0
    %1701 = vmatpush1.msra.mxu0 0.0
    %1702 = vmatprep.subr.mxu0 0.0
    %1703 = vmatpush1.msra.mxu0 0.0
    %1704 = vmatprep.subr.mxu0 0.0
    %1705 = vmatpush1.msra.mxu0 0.0
    %1706 = vmatprep.subr.mxu0 0.0
    %1707 = vmatpush1.msra.mxu0 0.0
    %1708 = vmatprep.subr.mxu0 0.0
    %1709 = vmatpush1.msra.mxu0 0.0
    %1710 = vmatprep.subr.mxu0 0.0
    %1711 = vmatpush1.msra.mxu0 0.0
    %1712 = vmatprep.subr.mxu0 0.0
    %1713 = vmatpush1.msra.mxu0 0.0
    %1714 = vmatprep.subr.mxu0 0.0
    %1715 = vmatpush1.msra.mxu0 %v1682
    %1716 = vmatprep.subr.mxu0 0.0
    %1717 = vmatpush2.msra.mxu0 0.0
    %1718 = vmatprep.subr.mxu0 0.0
    %1719 = vmatpush2.msra.mxu0 0.0
    %1720 = vmatprep.subr.mxu0 0.0
    %1721 = vmatpush2.msra.mxu0 0.0
    %1722 = vmatprep.subr.mxu0 0.0
    %1723 = vmatpush2.msra.mxu0 0.0
    %1724 = vmatprep.subr.mxu0 0.0
    %1725 = vmatpush2.msra.mxu0 0.0
    %1726 = vmatprep.subr.mxu0 0.0
    %1727 = vmatpush2.msra.mxu0 0.0
    %1728 = vmatprep.subr.mxu0 0.0
    %1729 = vmatpush2.msra.mxu0 0.0
    %1730 = vmatprep.subr.mxu0 0.0
    %1731 = vmatpush2.msra.mxu0 0.0
    %1732 = vmatprep.subr.mxu0 0.0
    %1733 = vmatpush2.msra.mxu0 0.0
    %1734 = vmatprep.subr.mxu0 0.0
    %1735 = vmatpush2.msra.mxu0 0.0
    %1736 = vmatprep.subr.mxu0 0.0
    %1737 = vmatpush2.msra.mxu0 0.0
    %1738 = vmatprep.subr.mxu0 0.0
    %1739 = vmatpush2.msra.mxu0 0.0
    %1740 = vmatprep.subr.mxu0 0.0
    %1741 = vmatpush2.msra.mxu0 0.0
    %1742 = vmatprep.subr.mxu0 0.0
    %1743 = vmatpush2.msra.mxu0 0.0
    %1744 = vmatprep.subr.mxu0 0.0
    %1745 = vmatpush2.msra.mxu0 0.0
    %1746 = vmatprep.subr.mxu0 0.0
    %1747 = vmatpush2.msra.mxu0 0.0
    %1748 = vmatprep.mubr.f32.mxu0 0.0
    %1749 = vmatmul.mubr.f32.gmra.mxu0 %v1670
    %v1750 = vpop.f32.mrf.mxu0
    %v1751 = vadd.f32 %v1667, %v1750
    %v1752 = vpop.f32.mrf.mxu0
    %1753 = vmatprep.mubr.f32.mxu0 0.0
    %1754 = vmatmul.mubr.f32.gmra.mxu0 %v1673
    %v1755 = vpop.f32.mrf.mxu0
    %v1756 = vadd.f32 %v1667, %v1755
    %v1757 = vpop.f32.mrf.mxu0
    %1758 = vmatprep.mubr.f32.mxu0 0.0
    %1759 = vmatmul.mubr.f32.gmra.mxu0 %v1676
    %v1760 = vpop.f32.mrf.mxu0
    %v1761 = vadd.f32 %v1667, %v1760
    %v1762 = vpop.f32.mrf.mxu0
    %1763 = vmatprep.mubr.f32.mxu0 0.0
    %1764 = vmatmul.mubr.f32.gmra.mxu0 %v1679
    %v1765 = vpop.f32.mrf.mxu0
    %v1766 = vadd.f32 %v1667, %v1765
    %v1767 = vpop.f32.mrf.mxu0
    %1768 = vdwg.mxu0
    %vm1769 = vcmp.gt.f32.partialorder %v1751, 0.0
    %vm1770 = vcmp.gt.f32.partialorder %v1756, 0.0
    %vm1771 = vcmp.gt.f32.partialorder %v1761, 0.0
    %vm1772 = vcmp.gt.f32.partialorder %v1766, 0.0
    %v1773 = vmul.f32 %v1751, 0.1
    %v1774 = vmul.f32 %v1756, 0.1
    %v1775 = vmul.f32 %v1761, 0.1
    %v1776 = vmul.f32 %v1766, 0.1
    %v1777 = vsel %vm1769, %v1751, %v1773
    %v1778 = vsel %vm1770, %v1756, %v1774
    %v1779 = vsel %vm1771, %v1761, %v1775
    %v1780 = vsel %vm1772, %v1766, %v1776
    %1785 = vrot.lane.b32.xlu0 %v1777, 64
    %v1786 = vpop.permute.xlu0 %1785
    %1787 = vrot.lane.b32.xlu0 %v1778, 64
    %v1788 = vpop.permute.xlu0 %1787
    %1789 = vrot.lane.b32.xlu0 %v1779, 64
    %v1790 = vpop.permute.xlu0 %1789
    %1791 = vrot.lane.b32.xlu0 %v1780, 64
    %v1792 = vpop.permute.xlu0 %1791
    %1797 = vst.msk [vmem:[#allocation2] sm:$0xff] %vm399, %v1786
    %1798 = vst.msk [vmem:[#allocation2 + $0x8] sm:$0xff] %vm399, %v1788
    %1799 = vst.msk [vmem:[#allocation2 + $0x10] sm:$0xff] %vm399, %v1790
    %1800 = vst.msk [vmem:[#allocation2 + $0x18] sm:$0xff] %vm399, %v1792
    %1801 = vmatprep.subr.mxu0 0.0
    %1802 = vmatpush1.msra.mxu0 0.0
    %1803 = vmatprep.subr.mxu0 0.0
    %1804 = vmatpush1.msra.mxu0 0.0
    %1805 = vmatprep.subr.mxu0 0.0
    %1806 = vmatpush1.msra.mxu0 0.0
    %1807 = vmatprep.subr.mxu0 0.0
    %1808 = vmatpush1.msra.mxu0 0.0
    %1809 = vmatprep.subr.mxu0 0.0
    %1810 = vmatpush1.msra.mxu0 0.0
    %1811 = vmatprep.subr.mxu0 0.0
    %1812 = vmatpush1.msra.mxu0 0.0
    %1813 = vmatprep.subr.mxu0 0.0
    %1814 = vmatpush1.msra.mxu0 0.0
    %1815 = vmatprep.subr.mxu0 0.0
    %1816 = vmatpush1.msra.mxu0 0.0
    %1817 = vmatprep.subr.mxu0 0.0
    %1818 = vmatpush1.msra.mxu0 0.0
    %1819 = vmatprep.subr.mxu0 0.0
    %1820 = vmatpush1.msra.mxu0 0.0
    %1821 = vmatprep.subr.mxu0 0.0
    %1822 = vmatpush1.msra.mxu0 0.0
    %1823 = vmatprep.subr.mxu0 0.0
    %1824 = vmatpush1.msra.mxu0 0.0
    %1825 = vmatprep.subr.mxu0 0.0
    %1826 = vmatpush1.msra.mxu0 0.0
    %1827 = vmatprep.subr.mxu0 0.0
    %1828 = vmatpush1.msra.mxu0 0.0
    %1829 = vmatprep.subr.mxu0 0.0
    %1830 = vmatpush1.msra.mxu0 %v1656
    %1831 = vmatprep.subr.mxu0 0.0
    %1832 = vmatpush1.msra.mxu0 %v1655
    %1833 = vmatprep.subr.mxu0 0.0
    %1834 = vmatpush2.msra.mxu0 0.0
    %1835 = vmatprep.subr.mxu0 0.0
    %1836 = vmatpush2.msra.mxu0 0.0
    %1837 = vmatprep.subr.mxu0 0.0
    %1838 = vmatpush2.msra.mxu0 0.0
    %1839 = vmatprep.subr.mxu0 0.0
    %1840 = vmatpush2.msra.mxu0 0.0
    %1841 = vmatprep.subr.mxu0 0.0
    %1842 = vmatpush2.msra.mxu0 0.0
    %1843 = vmatprep.subr.mxu0 0.0
    %1844 = vmatpush2.msra.mxu0 0.0
    %1845 = vmatprep.subr.mxu0 0.0
    %1846 = vmatpush2.msra.mxu0 0.0
    %1847 = vmatprep.subr.mxu0 0.0
    %1848 = vmatpush2.msra.mxu0 0.0
    %1849 = vmatprep.subr.mxu0 0.0
    %1850 = vmatpush2.msra.mxu0 0.0
    %1851 = vmatprep.subr.mxu0 0.0
    %1852 = vmatpush2.msra.mxu0 0.0
    %1853 = vmatprep.subr.mxu0 0.0
    %1854 = vmatpush2.msra.mxu0 0.0
    %1855 = vmatprep.subr.mxu0 0.0
    %1856 = vmatpush2.msra.mxu0 0.0
    %1857 = vmatprep.subr.mxu0 0.0
    %1858 = vmatpush2.msra.mxu0 0.0
    %1859 = vmatprep.subr.mxu0 0.0
    %1860 = vmatpush2.msra.mxu0 0.0
    %1861 = vmatprep.subr.mxu0 0.0
    %1862 = vmatpush2.msra.mxu0 0.0
    %1863 = vmatprep.subr.mxu0 0.0
    %1864 = vmatpush2.msra.mxu0 0.0
    %1865 = vmatprep.mubr.f32.mxu0 0.0
    %1866 = vmatmul.mubr.f32.gmra.mxu0 %v406
    %v1867 = vpop.f32.mrf.mxu0
    %v1868 = vadd.f32 0.0, %v1867
    %v1869 = vpop.f32.mrf.mxu0
    %1870 = vmatprep.mubr.f32.mxu0 0.0
    %1871 = vmatmul.mubr.f32.gmra.mxu0 %v409
    %v1872 = vpop.f32.mrf.mxu0
    %v1873 = vadd.f32 0.0, %v1872
    %v1874 = vpop.f32.mrf.mxu0
    %1875 = vmatprep.mubr.f32.mxu0 0.0
    %1876 = vmatmul.mubr.f32.gmra.mxu0 %v412
    %v1877 = vpop.f32.mrf.mxu0
    %v1878 = vadd.f32 0.0, %v1877
    %v1879 = vpop.f32.mrf.mxu0
    %1880 = vmatprep.mubr.f32.mxu0 0.0
    %1881 = vmatmul.mubr.f32.gmra.mxu0 %v415
    %v1882 = vpop.f32.mrf.mxu0
    %v1883 = vadd.f32 0.0, %v1882
    %v1884 = vpop.f32.mrf.mxu0
    %1885 = vmatprep.mubr.f32.mxu0 0.0
    %1886 = vmatmul.mubr.f32.gmra.mxu0 %v418
    %v1887 = vpop.f32.mrf.mxu0
    %v1888 = vadd.f32 0.0, %v1887
    %v1889 = vpop.f32.mrf.mxu0
    %1890 = vmatprep.mubr.f32.mxu0 0.0
    %1891 = vmatmul.mubr.f32.gmra.mxu0 %v421
    %v1892 = vpop.f32.mrf.mxu0
    %v1893 = vadd.f32 0.0, %v1892
    %v1894 = vpop.f32.mrf.mxu0
    %1895 = vmatprep.mubr.f32.mxu0 0.0
    %1896 = vmatmul.mubr.f32.gmra.mxu0 %v424
    %v1897 = vpop.f32.mrf.mxu0
    %v1898 = vadd.f32 0.0, %v1897
    %v1899 = vpop.f32.mrf.mxu0
    %1900 = vmatprep.mubr.f32.mxu0 0.0
    %1901 = vmatmul.mubr.f32.gmra.mxu0 %v427
    %v1902 = vpop.f32.mrf.mxu0
    %v1903 = vadd.f32 0.0, %v1902
    %v1904 = vpop.f32.mrf.mxu0
    %1905 = vdwg.mxu0
    %1906 = vst.msk [vmem:[#allocation2] sm:$0xff] %vm534, %v1868
    %1907 = vst.msk [vmem:[#allocation2 + $0x8] sm:$0xff] %vm534, %v1873
    %1908 = vst.msk [vmem:[#allocation2 + $0x10] sm:$0xff] %vm534, %v1878
    %1909 = vst.msk [vmem:[#allocation2 + $0x18] sm:$0xff] %vm534, %v1883
    %1914 = vrot.lane.b32.xlu0 %v1888, 32
    %v1915 = vpop.permute.xlu0 %1914
    %1916 = vrot.lane.b32.xlu0 %v1893, 32
    %v1917 = vpop.permute.xlu0 %1916
    %1918 = vrot.lane.b32.xlu0 %v1898, 32
    %v1919 = vpop.permute.xlu0 %1918
    %1920 = vrot.lane.b32.xlu0 %v1903, 32
    %v1921 = vpop.permute.xlu0 %1920
    %1926 = vst.msk [vmem:[#allocation2] sm:$0xff] %vm555, %v1915
    %1927 = vst.msk [vmem:[#allocation2 + $0x8] sm:$0xff] %vm555, %v1917
    %1928 = vst.msk [vmem:[#allocation2 + $0x10] sm:$0xff] %vm555, %v1919
    %1929 = vst.msk [vmem:[#allocation2 + $0x18] sm:$0xff] %vm555, %v1921
    %v1930 = vld [vmem:[#allocation2] sm:$0xff]
    %v1931 = vld [vmem:[#allocation2 + $0x8] sm:$0xff]
    %v1932 = vld [vmem:[#allocation2 + $0x10] sm:$0xff]
    %v1933 = vld [vmem:[#allocation2 + $0x18] sm:$0xff]
    %v1934 = vld [vmem:[%s21] sm:$0xff]
    %v1935 = vld [vmem:[%s21 + $0x8] sm:$0xff]
    %v1936 = vld [vmem:[%s21 + $0x10] sm:$0xff]
    %v1937 = vld [vmem:[%s21 + $0x18] sm:$0xff]
    %v1938 = vld [vmem:[%s21 + $0x20] sm:$0xff]
    %v1939 = vld [vmem:[%s21 + $0x28] sm:$0xff]
    %v1940 = vld [vmem:[%s21 + $0x30] sm:$0xff]
    %v1941 = vld [vmem:[%s21 + $0x38] sm:$0xff]
    %v1942 = vld [vmem:[%s21 + $0x40] sm:$0xff]
    %v1943 = vld [vmem:[%s21 + $0x48] sm:$0xff]
    %v1944 = vld [vmem:[%s21 + $0x50] sm:$0xff]
    %v1945 = vld [vmem:[%s21 + $0x58] sm:$0xff]
    %v1946 = vld [vmem:[%s22] sm:$0x1]
    %v1948 = vlaneseq
    %v1949 = vshrl.u32 %v1948, 7
    %v1950 = vsub.s32 0, %v1949
    %v1951 = vrot.slane %v1946, %v1950
    %v1954 = vsel %vm583, %v1930, 0
    %v1957 = vsel %vm583, %v1931, 0
    %v1960 = vsel %vm583, %v1932, 0
    %v1963 = vsel %vm583, %v1933, 0
    %1965 = vmatprep.subr.mxu0 0.0
    %1966 = vmatpush1.msra.mxu0 0.0
    %1967 = vmatprep.subr.mxu0 0.0
    %1968 = vmatpush1.msra.mxu0 0.0
    %1969 = vmatprep.subr.mxu0 0.0
    %1970 = vmatpush1.msra.mxu0 0.0
    %1971 = vmatprep.subr.mxu0 0.0
    %1972 = vmatpush1.msra.mxu0 0.0
    %1973 = vmatprep.subr.mxu0 0.0
    %1974 = vmatpush1.msra.mxu0 %v1945
    %1975 = vmatprep.subr.mxu0 0.0
    %1976 = vmatpush1.msra.mxu0 %v1944
    %1977 = vmatprep.subr.mxu0 0.0
    %1978 = vmatpush1.msra.mxu0 %v1943
    %1979 = vmatprep.subr.mxu0 0.0
    %1980 = vmatpush1.msra.mxu0 %v1942
    %1981 = vmatprep.subr.mxu0 0.0
    %1982 = vmatpush1.msra.mxu0 %v1941
    %1983 = vmatprep.subr.mxu0 0.0
    %1984 = vmatpush1.msra.mxu0 %v1940
    %1985 = vmatprep.subr.mxu0 0.0
    %1986 = vmatpush1.msra.mxu0 %v1939
    %1987 = vmatprep.subr.mxu0 0.0
    %1988 = vmatpush1.msra.mxu0 %v1938
    %1989 = vmatprep.subr.mxu0 0.0
    %1990 = vmatpush1.msra.mxu0 %v1937
    %1991 = vmatprep.subr.mxu0 0.0
    %1992 = vmatpush1.msra.mxu0 %v1936
    %1993 = vmatprep.subr.mxu0 0.0
    %1994 = vmatpush1.msra.mxu0 %v1935
    %1995 = vmatprep.subr.mxu0 0.0
    %1996 = vmatpush1.msra.mxu0 %v1934
    %1997 = vmatprep.subr.mxu0 0.0
    %1998 = vmatpush2.msra.mxu0 0.0
    %1999 = vmatprep.subr.mxu0 0.0
    %2000 = vmatpush2.msra.mxu0 0.0
    %2001 = vmatprep.subr.mxu0 0.0
    %2002 = vmatpush2.msra.mxu0 0.0
    %2003 = vmatprep.subr.mxu0 0.0
    %2004 = vmatpush2.msra.mxu0 0.0
    %2005 = vmatprep.subr.mxu0 0.0
    %2006 = vmatpush2.msra.mxu0 0.0
    %2007 = vmatprep.subr.mxu0 0.0
    %2008 = vmatpush2.msra.mxu0 0.0
    %2009 = vmatprep.subr.mxu0 0.0
    %2010 = vmatpush2.msra.mxu0 0.0
    %2011 = vmatprep.subr.mxu0 0.0
    %2012 = vmatpush2.msra.mxu0 0.0
    %2013 = vmatprep.subr.mxu0 0.0
    %2014 = vmatpush2.msra.mxu0 0.0
    %2015 = vmatprep.subr.mxu0 0.0
    %2016 = vmatpush2.msra.mxu0 0.0
    %2017 = vmatprep.subr.mxu0 0.0
    %2018 = vmatpush2.msra.mxu0 0.0
    %2019 = vmatprep.subr.mxu0 0.0
    %2020 = vmatpush2.msra.mxu0 0.0
    %2021 = vmatprep.subr.mxu0 0.0
    %2022 = vmatpush2.msra.mxu0 0.0
    %2023 = vmatprep.subr.mxu0 0.0
    %2024 = vmatpush2.msra.mxu0 0.0
    %2025 = vmatprep.subr.mxu0 0.0
    %2026 = vmatpush2.msra.mxu0 0.0
    %2027 = vmatprep.subr.mxu0 0.0
    %2028 = vmatpush2.msra.mxu0 0.0
    %2029 = vmatprep.mubr.f32.mxu0 0.0
    %2030 = vmatmul.mubr.f32.gmra.mxu0 %v1954
    %v2031 = vpop.f32.mrf.mxu0
    %v2032 = vadd.f32 %v1951, %v2031
    %v2033 = vpop.f32.mrf.mxu0
    %2034 = vmatprep.mubr.f32.mxu0 0.0
    %2035 = vmatmul.mubr.f32.gmra.mxu0 %v1957
    %v2036 = vpop.f32.mrf.mxu0
    %v2037 = vadd.f32 %v1951, %v2036
    %v2038 = vpop.f32.mrf.mxu0
    %2039 = vmatprep.mubr.f32.mxu0 0.0
    %2040 = vmatmul.mubr.f32.gmra.mxu0 %v1960
    %v2041 = vpop.f32.mrf.mxu0
    %v2042 = vadd.f32 %v1951, %v2041
    %v2043 = vpop.f32.mrf.mxu0
    %2044 = vmatprep.mubr.f32.mxu0 0.0
    %2045 = vmatmul.mubr.f32.gmra.mxu0 %v1963
    %v2046 = vpop.f32.mrf.mxu0
    %v2047 = vadd.f32 %v1951, %v2046
    %v2048 = vpop.f32.mrf.mxu0
    %2049 = vdwg.mxu0
    %v2050 = vmul.f32 %v2032, 0.5
    %v2051 = vmul.f32 %v2037, 0.5
    %v2052 = vmul.f32 %v2042, 0.5
    %v2053 = vmul.f32 %v2047, 0.5
    %v2054 = vtanh.pop %v2050
    %v2055 = vtanh.pop %v2051
    %v2056 = vtanh.pop %v2052
    %v2057 = vtanh.pop %v2053
    %v2058 = vadd.f32 %v2054, 1.0
    %v2059 = vadd.f32 %v2055, 1.0
    %v2060 = vadd.f32 %v2056, 1.0
    %v2061 = vadd.f32 %v2057, 1.0
    %v2062 = vmul.f32 %v2058, 0.5
    %v2063 = vmul.f32 %v2059, 0.5
    %v2064 = vmul.f32 %v2060, 0.5
    %v2065 = vmul.f32 %v2061, 0.5
    %v2066 = vmax.f32 %v2032, 0.0
    %v2067 = vmax.f32 %v2037, 0.0
    %v2068 = vmax.f32 %v2042, 0.0
    %v2069 = vmax.f32 %v2047, 0.0
    %v2070 = vand.u32 2147483647, %v2032
    %v2071 = vand.u32 2147483647, %v2037
    %v2072 = vand.u32 2147483647, %v2042
    %v2073 = vand.u32 2147483647, %v2047
    %v2074 = vsub.f32 0.0, %v2070
    %v2075 = vsub.f32 0.0, %v2071
    %v2076 = vsub.f32 0.0, %v2072
    %v2077 = vsub.f32 0.0, %v2073
    %v2078 = vmul.f32 %v2074, 1.442695
    %v2079 = vpow.pop %v2078
    %v2080 = vmul.f32 %v2075, 1.442695
    %v2081 = vpow.pop %v2080
    %v2082 = vmul.f32 %v2076, 1.442695
    %v2083 = vpow.pop %v2082
    %v2084 = vmul.f32 %v2077, 1.442695
    %v2085 = vpow.pop %v2084
    %v2086 = vadd.f32 %v2079, 1.0
    %v2087 = vlog2.pop %v2086
    %v2088 = vmul.f32 %v2087, 0.6931472
    %v2089 = vmul.f32 -0.5, %v2079
    %v2090 = vadd.f32 %v2089, 1.0
    %v2091 = vmul.f32 %v2090, %v2079
    %v2092 = vand.u32 2147483647, %v2079
    %vm2093 = vcmp.lt.f32.partialorder %v2092, 0.0004427343
    %v2094 = vsel %vm2093, %v2091, %v2088
    %v2095 = vadd.f32 %v2081, 1.0
    %v2096 = vlog2.pop %v2095
    %v2097 = vmul.f32 %v2096, 0.6931472
    %v2098 = vmul.f32 -0.5, %v2081
    %v2099 = vadd.f32 %v2098, 1.0
    %v2100 = vmul.f32 %v2099, %v2081
    %v2101 = vand.u32 2147483647, %v2081
    %vm2102 = vcmp.lt.f32.partialorder %v2101, 0.0004427343
    %v2103 = vsel %vm2102, %v2100, %v2097
    %v2104 = vadd.f32 %v2083, 1.0
    %v2105 = vlog2.pop %v2104
    %v2106 = vmul.f32 %v2105, 0.6931472
    %v2107 = vmul.f32 -0.5, %v2083
    %v2108 = vadd.f32 %v2107, 1.0
    %v2109 = vmul.f32 %v2108, %v2083
    %v2110 = vand.u32 2147483647, %v2083
    %vm2111 = vcmp.lt.f32.partialorder %v2110, 0.0004427343
    %v2112 = vsel %vm2111, %v2109, %v2106
    %v2113 = vadd.f32 %v2085, 1.0
    %v2114 = vlog2.pop %v2113
    %v2115 = vmul.f32 %v2114, 0.6931472
    %v2116 = vmul.f32 -0.5, %v2085
    %v2117 = vadd.f32 %v2116, 1.0
    %v2118 = vmul.f32 %v2117, %v2085
    %v2119 = vand.u32 2147483647, %v2085
    %vm2120 = vcmp.lt.f32.partialorder %v2119, 0.0004427343
    %v2121 = vsel %vm2120, %v2118, %v2115
    %v2122 = vadd.f32 %v2066, %v2094
    %v2123 = vadd.f32 %v2067, %v2103
    %v2124 = vadd.f32 %v2068, %v2112
    %v2125 = vadd.f32 %v2069, %v2121
    %2130 = vrot.lane.b32.xlu0 %v2122, 96
    %v2131 = vpop.permute.xlu0 %2130
    %2132 = vrot.lane.b32.xlu0 %v2123, 96
    %v2133 = vpop.permute.xlu0 %2132
    %2134 = vrot.lane.b32.xlu0 %v2124, 96
    %v2135 = vpop.permute.xlu0 %2134
    %2136 = vrot.lane.b32.xlu0 %v2125, 96
    %v2137 = vpop.permute.xlu0 %2136
    %v2142 = vmul.f32 %v2062, %v2131
    %v2143 = vmul.f32 %v2063, %v2133
    %v2144 = vmul.f32 %v2064, %v2135
    %v2145 = vmul.f32 %v2065, %v2137
    %2146 = vmatprep.subr.mxu0 0.0
    %2147 = vmatpush1.msra.mxu0 0.0
    %2148 = vmatprep.subr.mxu0 0.0
    %2149 = vmatpush1.msra.mxu0 0.0
    %2150 = vmatprep.subr.mxu0 0.0
    %2151 = vmatpush1.msra.mxu0 0.0
    %2152 = vmatprep.subr.mxu0 0.0
    %2153 = vmatpush1.msra.mxu0 0.0
    %2154 = vmatprep.subr.mxu0 0.0
    %2155 = vmatpush1.msra.mxu0 0.0
    %2156 = vmatprep.subr.mxu0 0.0
    %2157 = vmatpush1.msra.mxu0 0.0
    %2158 = vmatprep.subr.mxu0 0.0
    %2159 = vmatpush1.msra.mxu0 0.0
    %2160 = vmatprep.subr.mxu0 0.0
    %2161 = vmatpush1.msra.mxu0 0.0
    %2162 = vmatprep.subr.mxu0 0.0
    %2163 = vmatpush1.msra.mxu0 0.0
    %2164 = vmatprep.subr.mxu0 0.0
    %2165 = vmatpush1.msra.mxu0 0.0
    %2166 = vmatprep.subr.mxu0 0.0
    %2167 = vmatpush1.msra.mxu0 0.0
    %2168 = vmatprep.subr.mxu0 0.0
    %2169 = vmatpush1.msra.mxu0 0.0
    %2170 = vmatprep.subr.mxu0 0.0
    %2171 = vmatpush1.msra.mxu0 %v2145
    %2172 = vmatprep.subr.mxu0 0.0
    %2173 = vmatpush1.msra.mxu0 %v2144
    %2174 = vmatprep.subr.mxu0 0.0
    %2175 = vmatpush1.msra.mxu0 %v2143
    %2176 = vmatprep.subr.mxu0 0.0
    %2177 = vmatpush1.msra.mxu0 %v2142
    %2178 = vmatprep.subr.mxu0 0.0
    %2179 = vmatpush2.msra.mxu0 0.0
    %2180 = vmatprep.subr.mxu0 0.0
    %2181 = vmatpush2.msra.mxu0 0.0
    %2182 = vmatprep.subr.mxu0 0.0
    %2183 = vmatpush2.msra.mxu0 0.0
    %2184 = vmatprep.subr.mxu0 0.0
    %2185 = vmatpush2.msra.mxu0 0.0
    %2186 = vmatprep.subr.mxu0 0.0
    %2187 = vmatpush2.msra.mxu0 0.0
    %2188 = vmatprep.subr.mxu0 0.0
    %2189 = vmatpush2.msra.mxu0 0.0
    %2190 = vmatprep.subr.mxu0 0.0
    %2191 = vmatpush2.msra.mxu0 0.0
    %2192 = vmatprep.subr.mxu0 0.0
    %2193 = vmatpush2.msra.mxu0 0.0
    %2194 = vmatprep.subr.mxu0 0.0
    %2195 = vmatpush2.msra.mxu0 0.0
    %2196 = vmatprep.subr.mxu0 0.0
    %2197 = vmatpush2.msra.mxu0 0.0
    %2198 = vmatprep.subr.mxu0 0.0
    %2199 = vmatpush2.msra.mxu0 0.0
    %2200 = vmatprep.subr.mxu0 0.0
    %2201 = vmatpush2.msra.mxu0 0.0
    %2202 = vmatprep.subr.mxu0 0.0
    %2203 = vmatpush2.msra.mxu0 0.0
    %2204 = vmatprep.subr.mxu0 0.0
    %2205 = vmatpush2.msra.mxu0 0.0
    %2206 = vmatprep.subr.mxu0 0.0
    %2207 = vmatpush2.msra.mxu0 0.0
    %2208 = vmatprep.subr.mxu0 0.0
    %2209 = vmatpush2.msra.mxu0 0.0
    %2210 = vmatprep.mubr.f32.mxu0 0.0
    %2211 = vmatmul.mubr.f32.gmra.mxu0 %v778
    %v2212 = vpop.f32.mrf.mxu0
    %v2213 = vadd.f32 0.0, %v2212
    %v2214 = vpop.f32.mrf.mxu0
    %2215 = vmatprep.mubr.f32.mxu0 0.0
    %2216 = vmatmul.mubr.f32.gmra.mxu0 %v781
    %v2217 = vpop.f32.mrf.mxu0
    %v2218 = vadd.f32 0.0, %v2217
    %v2219 = vpop.f32.mrf.mxu0
    %2220 = vdwg.mxu0
    %v2221 = vadd.f32 %v1655, %v2213
    %v2222 = vadd.f32 %v1656, %v2218
    %v2223 = vld [vmem:[%s23] sm:$0x1]
    %v2225 = vlaneseq
    %v2226 = vshrl.u32 %v2225, 7
    %v2227 = vsub.s32 0, %v2226
    %v2228 = vrot.slane %v2223, %v2227
    %v2230 = vmul.f32 %v2221, %v2228
    %v2231 = vmul.f32 %v2222, %v2228
    %v2232 = vld [vmem:[%s24] sm:$0x1]
    %v2234 = vlaneseq
    %v2235 = vshrl.u32 %v2234, 7
    %v2236 = vsub.s32 0, %v2235
    %v2237 = vrot.slane %v2232, %v2236
    %v2239 = vadd.f32 %v2230, %v2237
    %v2240 = vadd.f32 %v2231, %v2237
    %2241 = vmatprep.subr.mxu0 0.0
    %2242 = vmatpush1.msra.mxu0 0.0
    %2243 = vmatprep.subr.mxu0 0.0
    %2244 = vmatpush1.msra.mxu0 0.0
    %2245 = vmatprep.subr.mxu0 0.0
    %2246 = vmatpush1.msra.mxu0 0.0
    %2247 = vmatprep.subr.mxu0 0.0
    %2248 = vmatpush1.msra.mxu0 0.0
    %2249 = vmatprep.subr.mxu0 0.0
    %2250 = vmatpush1.msra.mxu0 0.0
    %2251 = vmatprep.subr.mxu0 0.0
    %2252 = vmatpush1.msra.mxu0 0.0
    %2253 = vmatprep.subr.mxu0 0.0
    %2254 = vmatpush1.msra.mxu0 0.0
    %2255 = vmatprep.subr.mxu0 0.0
    %2256 = vmatpush1.msra.mxu0 0.0
    %2257 = vmatprep.subr.mxu0 0.0
    %2258 = vmatpush1.msra.mxu0 0.0
    %2259 = vmatprep.subr.mxu0 0.0
    %2260 = vmatpush1.msra.mxu0 0.0
    %2261 = vmatprep.subr.mxu0 0.0
    %2262 = vmatpush1.msra.mxu0 0.0
    %2263 = vmatprep.subr.mxu0 0.0
    %2264 = vmatpush1.msra.mxu0 0.0
    %2265 = vmatprep.subr.mxu0 0.0
    %2266 = vmatpush1.msra.mxu0 0.0
    %2267 = vmatprep.subr.mxu0 0.0
    %2268 = vmatpush1.msra.mxu0 0.0
    %2269 = vmatprep.subr.mxu0 0.0
    %2270 = vmatpush1.msra.mxu0 %v2240
    %2271 = vmatprep.subr.mxu0 0.0
    %2272 = vmatpush1.msra.mxu0 %v2239
    %2273 = vmatprep.subr.mxu0 0.0
    %2274 = vmatpush2.msra.mxu0 0.0
    %2275 = vmatprep.subr.mxu0 0.0
    %2276 = vmatpush2.msra.mxu0 0.0
    %2277 = vmatprep.subr.mxu0 0.0
    %2278 = vmatpush2.msra.mxu0 0.0
    %2279 = vmatprep.subr.mxu0 0.0
    %2280 = vmatpush2.msra.mxu0 0.0
    %2281 = vmatprep.subr.mxu0 0.0
    %2282 = vmatpush2.msra.mxu0 0.0
    %2283 = vmatprep.subr.mxu0 0.0
    %2284 = vmatpush2.msra.mxu0 0.0
    %2285 = vmatprep.subr.mxu0 0.0
    %2286 = vmatpush2.msra.mxu0 0.0
    %2287 = vmatprep.subr.mxu0 0.0
    %2288 = vmatpush2.msra.mxu0 0.0
    %2289 = vmatprep.subr.mxu0 0.0
    %2290 = vmatpush2.msra.mxu0 0.0
    %2291 = vmatprep.subr.mxu0 0.0
    %2292 = vmatpush2.msra.mxu0 0.0
    %2293 = vmatprep.subr.mxu0 0.0
    %2294 = vmatpush2.msra.mxu0 0.0
    %2295 = vmatprep.subr.mxu0 0.0
    %2296 = vmatpush2.msra.mxu0 0.0
    %2297 = vmatprep.subr.mxu0 0.0
    %2298 = vmatpush2.msra.mxu0 0.0
    %2299 = vmatprep.subr.mxu0 0.0
    %2300 = vmatpush2.msra.mxu0 0.0
    %2301 = vmatprep.subr.mxu0 0.0
    %2302 = vmatpush2.msra.mxu0 0.0
    %2303 = vmatprep.subr.mxu0 0.0
    %2304 = vmatpush2.msra.mxu0 0.0
    %2305 = vmatprep.mubr.f32.mxu0 0.0
    %2306 = vmatmul.mubr.f32.gmra.mxu0 %v406
    %v2307 = vpop.f32.mrf.mxu0
    %v2308 = vadd.f32 0.0, %v2307
    %v2309 = vpop.f32.mrf.mxu0
    %2310 = vmatprep.mubr.f32.mxu0 0.0
    %2311 = vmatmul.mubr.f32.gmra.mxu0 %v409
    %v2312 = vpop.f32.mrf.mxu0
    %v2313 = vadd.f32 0.0, %v2312
    %v2314 = vpop.f32.mrf.mxu0
    %2315 = vmatprep.mubr.f32.mxu0 0.0
    %2316 = vmatmul.mubr.f32.gmra.mxu0 %v412
    %v2317 = vpop.f32.mrf.mxu0
    %v2318 = vadd.f32 0.0, %v2317
    %v2319 = vpop.f32.mrf.mxu0
    %2320 = vmatprep.mubr.f32.mxu0 0.0
    %2321 = vmatmul.mubr.f32.gmra.mxu0 %v415
    %v2322 = vpop.f32.mrf.mxu0
    %v2323 = vadd.f32 0.0, %v2322
    %v2324 = vpop.f32.mrf.mxu0
    %2325 = vmatprep.mubr.f32.mxu0 0.0
    %2326 = vmatmul.mubr.f32.gmra.mxu0 %v418
    %v2327 = vpop.f32.mrf.mxu0
    %v2328 = vadd.f32 0.0, %v2327
    %v2329 = vpop.f32.mrf.mxu0
    %2330 = vmatprep.mubr.f32.mxu0 0.0
    %2331 = vmatmul.mubr.f32.gmra.mxu0 %v421
    %v2332 = vpop.f32.mrf.mxu0
    %v2333 = vadd.f32 0.0, %v2332
    %v2334 = vpop.f32.mrf.mxu0
    %2335 = vmatprep.mubr.f32.mxu0 0.0
    %2336 = vmatmul.mubr.f32.gmra.mxu0 %v424
    %v2337 = vpop.f32.mrf.mxu0
    %v2338 = vadd.f32 0.0, %v2337
    %v2339 = vpop.f32.mrf.mxu0
    %2340 = vmatprep.mubr.f32.mxu0 0.0
    %2341 = vmatmul.mubr.f32.gmra.mxu0 %v427
    %v2342 = vpop.f32.mrf.mxu0
    %v2343 = vadd.f32 0.0, %v2342
    %v2344 = vpop.f32.mrf.mxu0
    %2345 = vdwg.mxu0
    %2346 = vst.msk [vmem:[#allocation2] sm:$0xff] %vm534, %v2308
    %2347 = vst.msk [vmem:[#allocation2 + $0x8] sm:$0xff] %vm534, %v2313
    %2348 = vst.msk [vmem:[#allocation2 + $0x10] sm:$0xff] %vm534, %v2318
    %2349 = vst.msk [vmem:[#allocation2 + $0x18] sm:$0xff] %vm534, %v2323
    %2354 = vrot.lane.b32.xlu0 %v2328, 32
    %v2355 = vpop.permute.xlu0 %2354
    %2356 = vrot.lane.b32.xlu0 %v2333, 32
    %v2357 = vpop.permute.xlu0 %2356
    %2358 = vrot.lane.b32.xlu0 %v2338, 32
    %v2359 = vpop.permute.xlu0 %2358
    %2360 = vrot.lane.b32.xlu0 %v2343, 32
    %v2361 = vpop.permute.xlu0 %2360
    %2366 = vst.msk [vmem:[#allocation2] sm:$0xff] %vm555, %v2355
    %2367 = vst.msk [vmem:[#allocation2 + $0x8] sm:$0xff] %vm555, %v2357
    %2368 = vst.msk [vmem:[#allocation2 + $0x10] sm:$0xff] %vm555, %v2359
    %2369 = vst.msk [vmem:[#allocation2 + $0x18] sm:$0xff] %vm555, %v2361
    %v2370 = vld [vmem:[#allocation2] sm:$0xff]
    %v2371 = vld [vmem:[#allocation2 + $0x8] sm:$0xff]
    %v2372 = vld [vmem:[#allocation2 + $0x10] sm:$0xff]
    %v2373 = vld [vmem:[#allocation2 + $0x18] sm:$0xff]
    %s2374 = scalar_lea.vmem %s21, 96
    %v2375 = vld [vmem:[%s2374] sm:$0xff]
    %v2376 = vld [vmem:[%s2374 + $0x8] sm:$0xff]
    %v2377 = vld [vmem:[%s2374 + $0x10] sm:$0xff]
    %v2378 = vld [vmem:[%s2374 + $0x18] sm:$0xff]
    %v2379 = vld [vmem:[%s2374 + $0x20] sm:$0xff]
    %v2380 = vld [vmem:[%s2374 + $0x28] sm:$0xff]
    %v2381 = vld [vmem:[%s2374 + $0x30] sm:$0xff]
    %v2382 = vld [vmem:[%s2374 + $0x38] sm:$0xff]
    %v2383 = vld [vmem:[%s2374 + $0x40] sm:$0xff]
    %v2384 = vld [vmem:[%s2374 + $0x48] sm:$0xff]
    %v2385 = vld [vmem:[%s2374 + $0x50] sm:$0xff]
    %v2386 = vld [vmem:[%s2374 + $0x58] sm:$0xff]
    %s2387 = scalar_lea.vmem %s22, 1
    %v2388 = vld [vmem:[%s2387] sm:$0x1]
    %v2390 = vlaneseq
    %v2391 = vshrl.u32 %v2390, 7
    %v2392 = vsub.s32 0, %v2391
    %v2393 = vrot.slane %v2388, %v2392
    %v2396 = vsel %vm583, %v2370, 0
    %v2399 = vsel %vm583, %v2371, 0
    %v2402 = vsel %vm583, %v2372, 0
    %v2405 = vsel %vm583, %v2373, 0
    %2407 = vmatprep.subr.mxu0 0.0
    %2408 = vmatpush1.msra.mxu0 0.0
    %2409 = vmatprep.subr.mxu0 0.0
    %2410 = vmatpush1.msra.mxu0 0.0
    %2411 = vmatprep.subr.mxu0 0.0
    %2412 = vmatpush1.msra.mxu0 0.0
    %2413 = vmatprep.subr.mxu0 0.0
    %2414 = vmatpush1.msra.mxu0 0.0
    %2415 = vmatprep.subr.mxu0 0.0
    %2416 = vmatpush1.msra.mxu0 %v2386
    %2417 = vmatprep.subr.mxu0 0.0
    %2418 = vmatpush1.msra.mxu0 %v2385
    %2419 = vmatprep.subr.mxu0 0.0
    %2420 = vmatpush1.msra.mxu0 %v2384
    %2421 = vmatprep.subr.mxu0 0.0
    %2422 = vmatpush1.msra.mxu0 %v2383
    %2423 = vmatprep.subr.mxu0 0.0
    %2424 = vmatpush1.msra.mxu0 %v2382
    %2425 = vmatprep.subr.mxu0 0.0
    %2426 = vmatpush1.msra.mxu0 %v2381
    %2427 = vmatprep.subr.mxu0 0.0
    %2428 = vmatpush1.msra.mxu0 %v2380
    %2429 = vmatprep.subr.mxu0 0.0
    %2430 = vmatpush1.msra.mxu0 %v2379
    %2431 = vmatprep.subr.mxu0 0.0
    %2432 = vmatpush1.msra.mxu0 %v2378
    %2433 = vmatprep.subr.mxu0 0.0
    %2434 = vmatpush1.msra.mxu0 %v2377
    %2435 = vmatprep.subr.mxu0 0.0
    %2436 = vmatpush1.msra.mxu0 %v2376
    %2437 = vmatprep.subr.mxu0 0.0
    %2438 = vmatpush1.msra.mxu0 %v2375
    %2439 = vmatprep.subr.mxu0 0.0
    %2440 = vmatpush2.msra.mxu0 0.0
    %2441 = vmatprep.subr.mxu0 0.0
    %2442 = vmatpush2.msra.mxu0 0.0
    %2443 = vmatprep.subr.mxu0 0.0
    %2444 = vmatpush2.msra.mxu0 0.0
    %2445 = vmatprep.subr.mxu0 0.0
    %2446 = vmatpush2.msra.mxu0 0.0
    %2447 = vmatprep.subr.mxu0 0.0
    %2448 = vmatpush2.msra.mxu0 0.0
    %2449 = vmatprep.subr.mxu0 0.0
    %2450 = vmatpush2.msra.mxu0 0.0
    %2451 = vmatprep.subr.mxu0 0.0
    %2452 = vmatpush2.msra.mxu0 0.0
    %2453 = vmatprep.subr.mxu0 0.0
    %2454 = vmatpush2.msra.mxu0 0.0
    %2455 = vmatprep.subr.mxu0 0.0
    %2456 = vmatpush2.msra.mxu0 0.0
    %2457 = vmatprep.subr.mxu0 0.0
    %2458 = vmatpush2.msra.mxu0 0.0
    %2459 = vmatprep.subr.mxu0 0.0
    %2460 = vmatpush2.msra.mxu0 0.0
    %2461 = vmatprep.subr.mxu0 0.0
    %2462 = vmatpush2.msra.mxu0 0.0
    %2463 = vmatprep.subr.mxu0 0.0
    %2464 = vmatpush2.msra.mxu0 0.0
    %2465 = vmatprep.subr.mxu0 0.0
    %2466 = vmatpush2.msra.mxu0 0.0
    %2467 = vmatprep.subr.mxu0 0.0
    %2468 = vmatpush2.msra.mxu0 0.0
    %2469 = vmatprep.subr.mxu0 0.0
    %2470 = vmatpush2.msra.mxu0 0.0
    %2471 = vmatprep.mubr.f32.mxu0 0.0
    %2472 = vmatmul.mubr.f32.gmra.mxu0 %v2396
    %v2473 = vpop.f32.mrf.mxu0
    %v2474 = vadd.f32 %v2393, %v2473
    %v2475 = vpop.f32.mrf.mxu0
    %2476 = vmatprep.mubr.f32.mxu0 0.0
    %2477 = vmatmul.mubr.f32.gmra.mxu0 %v2399
    %v2478 = vpop.f32.mrf.mxu0
    %v2479 = vadd.f32 %v2393, %v2478
    %v2480 = vpop.f32.mrf.mxu0
    %2481 = vmatprep.mubr.f32.mxu0 0.0
    %2482 = vmatmul.mubr.f32.gmra.mxu0 %v2402
    %v2483 = vpop.f32.mrf.mxu0
    %v2484 = vadd.f32 %v2393, %v2483
    %v2485 = vpop.f32.mrf.mxu0
    %2486 = vmatprep.mubr.f32.mxu0 0.0
    %2487 = vmatmul.mubr.f32.gmra.mxu0 %v2405
    %v2488 = vpop.f32.mrf.mxu0
    %v2489 = vadd.f32 %v2393, %v2488
    %v2490 = vpop.f32.mrf.mxu0
    %2491 = vdwg.mxu0
    %v2492 = vmul.f32 %v2474, 0.5
    %v2493 = vmul.f32 %v2479, 0.5
    %v2494 = vmul.f32 %v2484, 0.5
    %v2495 = vmul.f32 %v2489, 0.5
    %v2496 = vtanh.pop %v2492
    %v2497 = vtanh.pop %v2493
    %v2498 = vtanh.pop %v2494
    %v2499 = vtanh.pop %v2495
    %v2500 = vadd.f32 %v2496, 1.0
    %v2501 = vadd.f32 %v2497, 1.0
    %v2502 = vadd.f32 %v2498, 1.0
    %v2503 = vadd.f32 %v2499, 1.0
    %v2504 = vmul.f32 %v2500, 0.5
    %v2505 = vmul.f32 %v2501, 0.5
    %v2506 = vmul.f32 %v2502, 0.5
    %v2507 = vmul.f32 %v2503, 0.5
    %v2508 = vmax.f32 %v2474, 0.0
    %v2509 = vmax.f32 %v2479, 0.0
    %v2510 = vmax.f32 %v2484, 0.0
    %v2511 = vmax.f32 %v2489, 0.0
    %v2512 = vand.u32 2147483647, %v2474
    %v2513 = vand.u32 2147483647, %v2479
    %v2514 = vand.u32 2147483647, %v2484
    %v2515 = vand.u32 2147483647, %v2489
    %v2516 = vsub.f32 0.0, %v2512
    %v2517 = vsub.f32 0.0, %v2513
    %v2518 = vsub.f32 0.0, %v2514
    %v2519 = vsub.f32 0.0, %v2515
    %v2520 = vmul.f32 %v2516, 1.442695
    %v2521 = vpow.pop %v2520
    %v2522 = vmul.f32 %v2517, 1.442695
    %v2523 = vpow.pop %v2522
    %v2524 = vmul.f32 %v2518, 1.442695
    %v2525 = vpow.pop %v2524
    %v2526 = vmul.f32 %v2519, 1.442695
    %v2527 = vpow.pop %v2526
    %v2528 = vadd.f32 %v2521, 1.0
    %v2529 = vlog2.pop %v2528
    %v2530 = vmul.f32 %v2529, 0.6931472
    %v2531 = vmul.f32 -0.5, %v2521
    %v2532 = vadd.f32 %v2531, 1.0
    %v2533 = vmul.f32 %v2532, %v2521
    %v2534 = vand.u32 2147483647, %v2521
    %vm2535 = vcmp.lt.f32.partialorder %v2534, 0.0004427343
    %v2536 = vsel %vm2535, %v2533, %v2530
    %v2537 = vadd.f32 %v2523, 1.0
    %v2538 = vlog2.pop %v2537
    %v2539 = vmul.f32 %v2538, 0.6931472
    %v2540 = vmul.f32 -0.5, %v2523
    %v2541 = vadd.f32 %v2540, 1.0
    %v2542 = vmul.f32 %v2541, %v2523
    %v2543 = vand.u32 2147483647, %v2523
    %vm2544 = vcmp.lt.f32.partialorder %v2543, 0.0004427343
    %v2545 = vsel %vm2544, %v2542, %v2539
    %v2546 = vadd.f32 %v2525, 1.0
    %v2547 = vlog2.pop %v2546
    %v2548 = vmul.f32 %v2547, 0.6931472
    %v2549 = vmul.f32 -0.5, %v2525
    %v2550 = vadd.f32 %v2549, 1.0
    %v2551 = vmul.f32 %v2550, %v2525
    %v2552 = vand.u32 2147483647, %v2525
    %vm2553 = vcmp.lt.f32.partialorder %v2552, 0.0004427343
    %v2554 = vsel %vm2553, %v2551, %v2548
    %v2555 = vadd.f32 %v2527, 1.0
    %v2556 = vlog2.pop %v2555
    %v2557 = vmul.f32 %v2556, 0.6931472
    %v2558 = vmul.f32 -0.5, %v2527
    %v2559 = vadd.f32 %v2558, 1.0
    %v2560 = vmul.f32 %v2559, %v2527
    %v2561 = vand.u32 2147483647, %v2527
    %vm2562 = vcmp.lt.f32.partialorder %v2561, 0.0004427343
    %v2563 = vsel %vm2562, %v2560, %v2557
    %v2564 = vadd.f32 %v2508, %v2536
    %v2565 = vadd.f32 %v2509, %v2545
    %v2566 = vadd.f32 %v2510, %v2554
    %v2567 = vadd.f32 %v2511, %v2563
    %2572 = vrot.lane.b32.xlu0 %v2564, 96
    %v2573 = vpop.permute.xlu0 %2572
    %2574 = vrot.lane.b32.xlu0 %v2565, 96
    %v2575 = vpop.permute.xlu0 %2574
    %2576 = vrot.lane.b32.xlu0 %v2566, 96
    %v2577 = vpop.permute.xlu0 %2576
    %2578 = vrot.lane.b32.xlu0 %v2567, 96
    %v2579 = vpop.permute.xlu0 %2578
    %v2584 = vmul.f32 %v2504, %v2573
    %v2585 = vmul.f32 %v2505, %v2575
    %v2586 = vmul.f32 %v2506, %v2577
    %v2587 = vmul.f32 %v2507, %v2579
    %2588 = vmatprep.subr.mxu0 0.0
    %2589 = vmatpush1.msra.mxu0 0.0
    %2590 = vmatprep.subr.mxu0 0.0
    %2591 = vmatpush1.msra.mxu0 0.0
    %2592 = vmatprep.subr.mxu0 0.0
    %2593 = vmatpush1.msra.mxu0 0.0
    %2594 = vmatprep.subr.mxu0 0.0
    %2595 = vmatpush1.msra.mxu0 0.0
    %2596 = vmatprep.subr.mxu0 0.0
    %2597 = vmatpush1.msra.mxu0 0.0
    %2598 = vmatprep.subr.mxu0 0.0
    %2599 = vmatpush1.msra.mxu0 0.0
    %2600 = vmatprep.subr.mxu0 0.0
    %2601 = vmatpush1.msra.mxu0 0.0
    %2602 = vmatprep.subr.mxu0 0.0
    %2603 = vmatpush1.msra.mxu0 0.0
    %2604 = vmatprep.subr.mxu0 0.0
    %2605 = vmatpush1.msra.mxu0 0.0
    %2606 = vmatprep.subr.mxu0 0.0
    %2607 = vmatpush1.msra.mxu0 0.0
    %2608 = vmatprep.subr.mxu0 0.0
    %2609 = vmatpush1.msra.mxu0 0.0
    %2610 = vmatprep.subr.mxu0 0.0
    %2611 = vmatpush1.msra.mxu0 0.0
    %2612 = vmatprep.subr.mxu0 0.0
    %2613 = vmatpush1.msra.mxu0 %v2587
    %2614 = vmatprep.subr.mxu0 0.0
    %2615 = vmatpush1.msra.mxu0 %v2586
    %2616 = vmatprep.subr.mxu0 0.0
    %2617 = vmatpush1.msra.mxu0 %v2585
    %2618 = vmatprep.subr.mxu0 0.0
    %2619 = vmatpush1.msra.mxu0 %v2584
    %2620 = vmatprep.subr.mxu0 0.0
    %2621 = vmatpush2.msra.mxu0 0.0
    %2622 = vmatprep.subr.mxu0 0.0
    %2623 = vmatpush2.msra.mxu0 0.0
    %2624 = vmatprep.subr.mxu0 0.0
    %2625 = vmatpush2.msra.mxu0 0.0
    %2626 = vmatprep.subr.mxu0 0.0
    %2627 = vmatpush2.msra.mxu0 0.0
    %2628 = vmatprep.subr.mxu0 0.0
    %2629 = vmatpush2.msra.mxu0 0.0
    %2630 = vmatprep.subr.mxu0 0.0
    %2631 = vmatpush2.msra.mxu0 0.0
    %2632 = vmatprep.subr.mxu0 0.0
    %2633 = vmatpush2.msra.mxu0 0.0
    %2634 = vmatprep.subr.mxu0 0.0
    %2635 = vmatpush2.msra.mxu0 0.0
    %2636 = vmatprep.subr.mxu0 0.0
    %2637 = vmatpush2.msra.mxu0 0.0
    %2638 = vmatprep.subr.mxu0 0.0
    %2639 = vmatpush2.msra.mxu0 0.0
    %2640 = vmatprep.subr.mxu0 0.0
    %2641 = vmatpush2.msra.mxu0 0.0
    %2642 = vmatprep.subr.mxu0 0.0
    %2643 = vmatpush2.msra.mxu0 0.0
    %2644 = vmatprep.subr.mxu0 0.0
    %2645 = vmatpush2.msra.mxu0 0.0
    %2646 = vmatprep.subr.mxu0 0.0
    %2647 = vmatpush2.msra.mxu0 0.0
    %2648 = vmatprep.subr.mxu0 0.0
    %2649 = vmatpush2.msra.mxu0 0.0
    %2650 = vmatprep.subr.mxu0 0.0
    %2651 = vmatpush2.msra.mxu0 0.0
    %2652 = vmatprep.mubr.f32.mxu0 0.0
    %2653 = vmatmul.mubr.f32.gmra.mxu0 %v778
    %v2654 = vpop.f32.mrf.mxu0
    %v2655 = vadd.f32 0.0, %v2654
    %v2656 = vpop.f32.mrf.mxu0
    %2657 = vmatprep.mubr.f32.mxu0 0.0
    %2658 = vmatmul.mubr.f32.gmra.mxu0 %v781
    %v2659 = vpop.f32.mrf.mxu0
    %v2660 = vadd.f32 0.0, %v2659
    %v2661 = vpop.f32.mrf.mxu0
    %2662 = vdwg.mxu0
    %v2663 = vadd.f32 %v2239, %v2655
    %v2664 = vadd.f32 %v2240, %v2660
    %s2665 = scalar_lea.vmem %s23, 1
    %v2666 = vld [vmem:[%s2665] sm:$0x1]
    %v2668 = vlaneseq
    %v2669 = vshrl.u32 %v2668, 7
    %v2670 = vsub.s32 0, %v2669
    %v2671 = vrot.slane %v2666, %v2670
    %v2673 = vmul.f32 %v2663, %v2671
    %v2674 = vmul.f32 %v2664, %v2671
    %s2675 = scalar_lea.vmem %s24, 1
    %v2676 = vld [vmem:[%s2675] sm:$0x1]
    %v2678 = vlaneseq
    %v2679 = vshrl.u32 %v2678, 7
    %v2680 = vsub.s32 0, %v2679
    %v2681 = vrot.slane %v2676, %v2680
    %v2683 = vadd.f32 %v2673, %v2681
    %v2684 = vadd.f32 %v2674, %v2681
    %v2685 = vld [vmem:[%s25] sm:$0xff]
    %v2686 = vld [vmem:[%s25 + $0x8] sm:$0xff]
    %v2687 = vld [vmem:[%s25 + $0x10] sm:$0xff]
    %v2688 = vld [vmem:[%s25 + $0x18] sm:$0xff]
    %v2689 = vld [vmem:[%s26] sm:$0x1]
    %v2691 = vlaneseq
    %v2692 = vshrl.u32 %v2691, 7
    %v2693 = vsub.s32 0, %v2692
    %v2694 = vrot.slane %v2689, %v2693
    %v2697 = vsel %vm534, %v2683, 0
    %v2700 = vsel %vm534, %v2684, 0
    %2702 = vmatprep.subr.mxu0 0.0
    %2703 = vmatpush1.msra.mxu0 0.0
    %2704 = vmatprep.subr.mxu0 0.0
    %2705 = vmatpush1.msra.mxu0 0.0
    %2706 = vmatprep.subr.mxu0 0.0
    %2707 = vmatpush1.msra.mxu0 0.0
    %2708 = vmatprep.subr.mxu0 0.0
    %2709 = vmatpush1.msra.mxu0 0.0
    %2710 = vmatprep.subr.mxu0 0.0
    %2711 = vmatpush1.msra.mxu0 0.0
    %2712 = vmatprep.subr.mxu0 0.0
    %2713 = vmatpush1.msra.mxu0 0.0
    %2714 = vmatprep.subr.mxu0 0.0
    %2715 = vmatpush1.msra.mxu0 0.0
    %2716 = vmatprep.subr.mxu0 0.0
    %2717 = vmatpush1.msra.mxu0 0.0
    %2718 = vmatprep.subr.mxu0 0.0
    %2719 = vmatpush1.msra.mxu0 0.0
    %2720 = vmatprep.subr.mxu0 0.0
    %2721 = vmatpush1.msra.mxu0 0.0
    %2722 = vmatprep.subr.mxu0 0.0
    %2723 = vmatpush1.msra.mxu0 0.0
    %2724 = vmatprep.subr.mxu0 0.0
    %2725 = vmatpush1.msra.mxu0 0.0
    %2726 = vmatprep.subr.mxu0 0.0
    %2727 = vmatpush1.msra.mxu0 %v2688
    %2728 = vmatprep.subr.mxu0 0.0
    %2729 = vmatpush1.msra.mxu0 %v2687
    %2730 = vmatprep.subr.mxu0 0.0
    %2731 = vmatpush1.msra.mxu0 %v2686
    %2732 = vmatprep.subr.mxu0 0.0
    %2733 = vmatpush1.msra.mxu0 %v2685
    %2734 = vmatprep.subr.mxu0 0.0
    %2735 = vmatpush2.msra.mxu0 0.0
    %2736 = vmatprep.subr.mxu0 0.0
    %2737 = vmatpush2.msra.mxu0 0.0
    %2738 = vmatprep.subr.mxu0 0.0
    %2739 = vmatpush2.msra.mxu0 0.0
    %2740 = vmatprep.subr.mxu0 0.0
    %2741 = vmatpush2.msra.mxu0 0.0
    %2742 = vmatprep.subr.mxu0 0.0
    %2743 = vmatpush2.msra.mxu0 0.0
    %2744 = vmatprep.subr.mxu0 0.0
    %2745 = vmatpush2.msra.mxu0 0.0
    %2746 = vmatprep.subr.mxu0 0.0
    %2747 = vmatpush2.msra.mxu0 0.0
    %2748 = vmatprep.subr.mxu0 0.0
    %2749 = vmatpush2.msra.mxu0 0.0
    %2750 = vmatprep.subr.mxu0 0.0
    %2751 = vmatpush2.msra.mxu0 0.0
    %2752 = vmatprep.subr.mxu0 0.0
    %2753 = vmatpush2.msra.mxu0 0.0
    %2754 = vmatprep.subr.mxu0 0.0
    %2755 = vmatpush2.msra.mxu0 0.0
    %2756 = vmatprep.subr.mxu0 0.0
    %2757 = vmatpush2.msra.mxu0 0.0
    %2758 = vmatprep.subr.mxu0 0.0
    %2759 = vmatpush2.msra.mxu0 0.0
    %2760 = vmatprep.subr.mxu0 0.0
    %2761 = vmatpush2.msra.mxu0 0.0
    %2762 = vmatprep.subr.mxu0 0.0
    %2763 = vmatpush2.msra.mxu0 0.0
    %2764 = vmatprep.subr.mxu0 0.0
    %2765 = vmatpush2.msra.mxu0 0.0
    %2766 = vmatprep.mubr.f32.mxu0 0.0
    %2767 = vmatmul.mubr.f32.gmra.mxu0 %v2697
    %v2768 = vpop.f32.mrf.mxu0
    %v2769 = vadd.f32 %v2694, %v2768
    %v2770 = vpop.f32.mrf.mxu0
    %2771 = vmatprep.mubr.f32.mxu0 0.0
    %2772 = vmatmul.mubr.f32.gmra.mxu0 %v2700
    %v2773 = vpop.f32.mrf.mxu0
    %v2774 = vadd.f32 %v2694, %v2773
    %v2775 = vpop.f32.mrf.mxu0
    %2776 = vdwg.mxu0
    %2777 = vst [vmem:[#allocation3] sm:$0xff] %v2769
    %2778 = vst [vmem:[#allocation3 + $0x8] sm:$0xff] %v2774
    %2781 = vrot.lane.b32.xlu0 %v1406, 8
    %v2782 = vpop.permute.xlu0 %2781
    %2783 = vrot.lane.b32.xlu0 %v1411, 8
    %v2784 = vpop.permute.xlu0 %2783
    %vm2787 = vcmask 130112
    %2788 = vst.msk [vmem:[#allocation3] sm:$0xff] %vm2787, %v2782
    %2789 = vst.msk [vmem:[#allocation3 + $0x8] sm:$0xff] %vm2787, %v2784
    %2790 = vrot.lane.b32.xlu0 %v1432, 16
    %v2791 = vpop.permute.xlu0 %2790
    %2792 = vrot.lane.b32.xlu0 %v1433, 16
    %v2793 = vpop.permute.xlu0 %2792
    %vm2796 = vcmask 162944
    %2797 = vst.msk [vmem:[#allocation3] sm:$0xff] %vm2796, %v2791
    %2798 = vst.msk [vmem:[#allocation3 + $0x8] sm:$0xff] %vm2796, %v2793
    %vm2799 = vcmask 171168
    %2800 = vst.msk [vmem:[#allocation3] sm:$0xff] %vm2799, %v1468
    %2801 = vst.msk [vmem:[#allocation3 + $0x8] sm:$0xff] %vm2799, %v1469
    // Predicated region
    $region110: #{tpu_custom_call.1} parent=1 // pred_check
      _
    $region111: #{tpu_custom_call.1} parent=1 // pred_check_branch
      %2803 = sbr.rel (0) target = $region113
    $region112: #{tpu_custom_call.1} parent=1 // pred_region
      %s2805 = ssub.s32 256, 256
      %2806 = vsyncadd [#allocation4], %s2805
      %s2807 = sshll.u32 [#allocation3], 4
      %s2808 = int_to_ptr.vmem [resolvable:$true] %s2807
      %2813 = dma.vmem_to_hbm [thread:$0]  %s2808, 256, %s27, [#allocation4], 128, 128, 8
    $region113: #{tpu_custom_call.1} parent=1 // pred_fallthru
      _
    // Predicated region
    $region114: #{tpu_custom_call.1} parent=1 // pred_check
      _
    $region115: #{tpu_custom_call.1} parent=1 // pred_check_branch
      %2815 = sbr.rel (0) target = $region117
    $region116: #{tpu_custom_call.1} parent=1 // pred_region
      %2816 = dma.done [#allocation4], 256
    $region117: #{tpu_custom_call.1} parent=1 // pred_fallthru
      _
    %2817 = vsyncpa [#allocation4], 1

</llo_original>
